<compile_context>
chip_gen: v5e
topology: v5e:2x2
jax: 0.10.0
libtpu: 0.0.40
codegen_flags: <defaults>
</compile_context>

<pallas_src>
import functools
import math

import jax
import jax.numpy as jnp
from jax.experimental import pallas as pl
from jax.experimental.pallas import tpu as pltpu


_W_ORDER = ("wq", "wk", "wv", "wo", "w1", "w2")
_VEC_ORDER = ("gq", "bq_ln", "gk", "bk_ln", "gv", "bv_ln", "gn", "bn",
              "bq", "bk", "bv", "bo", "b1", "b2")


def _layer_norm(x, gamma, beta, eps=1e-5):
    mu = jnp.mean(x, axis=-1, keepdims=True)
    xc = x - mu
    var = jnp.mean(xc * xc, axis=-1, keepdims=True)
    return xc * jax.lax.rsqrt(var + eps) * gamma + beta


def _zero_index_map(ndim, *_grid_indices):
    return (0,) * ndim


def _decoder_layer_kernel(num_heads, dim_key, has_mask, dense_out, vec_rows, *refs):
    # TODO(synk): dropout is treated as identity (inference-mode forward); training-mode
    # dropout RNG is not implemented.
    if has_mask:
        q_ref, k_ref, v_ref, mbias_ref, *rest = refs
    else:
        q_ref, k_ref, v_ref, *rest = refs
        mbias_ref = None
    (wq_ref, wk_ref, wv_ref, wo_ref, w1_ref, w2_ref, vec_ref, o_ref) = rest

    bt, s_len, d_model = q_ref.shape
    n = bt * s_len
    dk_total = num_heads * dim_key

    def vec(name):
        row, width = vec_rows[name]          # static python ints
        return vec_ref[row:row + 1, 0:width]  # (1, width) f32, broadcasts over rows

    # Flatten (bt, S, D) -> (bt*S, D): large-M slabs for every MXU matmul.
    # (Free reshape: sublane/lane layout of the last two dims is unchanged.)
    q = q_ref[...].reshape(n, d_model).astype(jnp.float32)
    k = k_ref[...].reshape(n, d_model).astype(jnp.float32)
    v = v_ref[...].reshape(n, d_model).astype(jnp.float32)

    qn = _layer_norm(q, vec("gq"), vec("bq_ln"))
    kn = _layer_norm(k, vec("gk"), vec("bk_ln"))
    vn = _layer_norm(v, vec("gv"), vec("bv_ln"))

    # Q/K/V projections: bf16 operands into the MXU, f32 accumulation, f32 biases.
    qp = jnp.dot(qn.astype(jnp.bfloat16), wq_ref[...],
                 preferred_element_type=jnp.float32) + vec("bq")
    kp = jnp.dot(kn.astype(jnp.bfloat16), wk_ref[...],
                 preferred_element_type=jnp.float32) + vec("bk")
    vp = jnp.dot(vn.astype(jnp.bfloat16), wv_ref[...],
                 preferred_element_type=jnp.float32) + vec("bv")

    # (bt*S, H*dk) -> (bt, S, H*dk); attention mixes only within each batch element.
    qp = qp.reshape(bt, s_len, dk_total)
    kp = kp.reshape(bt, s_len, dk_total)
    vp = vp.reshape(bt, s_len, dk_total)

    if has_mask:
        bias = mbias_ref[...]                # (bt, S, S) additive -1e9/0 bias, f32

    scale = 1.0 / math.sqrt(dim_key)
    ctx_heads = []
    for h in range(num_heads):
        lo, hi = h * dim_key, (h + 1) * dim_key
        qh = qp[..., lo:hi]                  # (bt, S, dk)
        kh = kp[..., lo:hi]
        vh = vp[..., lo:hi]
        # S and dk are tiny: compute scores/context on the VPU (broadcast-multiply +
        # reduce) instead of bt-batched 8x8x8 MXU einsums that serialize on push/drain.
        scores = jnp.sum(qh[:, :, None, :] * kh[:, None, :, :], axis=-1) * scale
        if has_mask:
            scores = scores + bias           # masked_fill(mask==0, -1e9) semantics
        scores = scores - jnp.max(scores, axis=-1, keepdims=True)
        p = jnp.exp(scores)
        p = p * pl.reciprocal(jnp.sum(p, axis=-1, keepdims=True), approx=True)
        ctx_heads.append(jnp.sum(p[:, :, :, None] * vh[:, None, :, :], axis=2))

    # Single K = H*dk output projection for all heads (no per-head K=dk matmuls).
    ctx = jnp.concatenate(ctx_heads, axis=-1).reshape(n, dk_total)
    attn = jnp.dot(ctx.astype(jnp.bfloat16), wo_ref[...],
                   preferred_element_type=jnp.float32) + vec("bo")

    # Residual + post-norm + position-wise feed forward (dropout == identity).
    x = q + attn
    xn = _layer_norm(x, vec("gn"), vec("bn"))
    h1 = jnp.maximum(
        jnp.dot(xn.astype(jnp.bfloat16), w1_ref[...],
                preferred_element_type=jnp.float32) + vec("b1"), 0.0)
    ff = jnp.dot(h1.astype(jnp.bfloat16), w2_ref[...],
                 preferred_element_type=jnp.float32) + vec("b2")
    out = (x + ff).astype(o_ref.dtype)       # (n, D)

    if dense_out:
        # Lane-dense store: (bt, S*D) with S*D a multiple of 128 -> unmasked vst
        # instead of D/128-lane-occupancy masked stores.  Built with sublane slices +
        # a lane concat (well-trodden lowering) rather than a sublane<->lane reshape.
        y = out.reshape(bt, s_len, d_model)
        o_ref[...] = jnp.concatenate([y[:, i, :] for i in range(s_len)], axis=-1)
    else:
        o_ref[...] = out.reshape(bt, s_len, d_model)


def _choose_block_b(batch, seq_len, requested=None):
    """Pick the batch tile size.

    * >= 8 grid steps when the batch allows it (pipelining steady state; both
      TensorCores of dual-TC chips get work).
    * capped so the lane-padded per-head attention temporaries
      (~block_b * S * S * 512 bytes f32) stay around <= 4 MiB.
    * multiple of 8 (or the whole batch) so the lane-dense (block_b, S*D) output
      block satisfies the (8, 128) sublane tiling constraint.
    * best effort: even number of grid steps (v7x has two TensorCores).
    """
    if requested is not None:
        bb = int(requested)
    else:
        temp_cap = max(8, (4 * 1024 * 1024) // max(1, seq_len * seq_len * 512))
        bb = min(temp_cap, pl.cdiv(batch, 8))
    bb = max(1, min(bb, batch))
    if bb != batch and bb % 8 != 0:
        bb = min(batch, max(8, (bb // 8) * 8))
    steps = pl.cdiv(batch, bb)
    if steps > 1 and steps % 2 == 1:
        alt = (pl.cdiv(batch, steps + 1) + 7) // 8 * 8
        if 0 < alt <= bb and pl.cdiv(batch, alt) % 2 == 0:
            bb = alt
    return bb


def _default_vmem_limit_bytes():
    """Scoped-VMEM limit per TPU generation (best effort, safe fallback)."""
    try:
        kind = jax.devices()[0].device_kind.lower()
    except Exception:
        return None
    if "v5e" in kind or "v5 lite" in kind or "v6" in kind:
        return 64 * 1024 * 1024      # 128 MiB physical VMEM: deeper DMA/compute overlap
    if "v7" in kind:
        return 32 * 1024 * 1024      # 64 MiB physical VMEM: stay conservative
    return None                      # other chips: leave the compiler default


def amortized_decoder_layer(queries, keys, values, mask, params, *,
                            num_heads, dim_key, block_b=None):
    B, S, D = queries.shape
    block_b = _choose_block_b(B, S, block_b)
    grid = (pl.cdiv(B, block_b),)
    # Lane-dense output only when it helps (D not already lane-dense) and the per-row
    # slice+concat in the kernel stays a short unrolled sequence.
    dense_out = (D % 128 != 0) and ((S * D) % 128 == 0) and (S <= 32)

    act_spec = pl.BlockSpec((block_b, S, D), lambda b: (b, 0, 0))
    in_specs = [act_spec, act_spec, act_spec]
    args = [queries, keys, values]

    has_mask = mask is not None
    if has_mask:
        # masked_fill(mask==0, -1e9) turned into an additive f32 bias once, outside the
        # kernel (no per-head where / dtype cast inside). Callers that reuse one mask
        # across many layers/steps should precompute and pass this bias themselves.
        mask_b = jnp.broadcast_to(mask, (B, S, S))
        mask_bias = jnp.where(mask_b == 0, jnp.float32(-1e9), jnp.float32(0.0))
        in_specs.append(pl.BlockSpec((block_b, S, S), lambda b: (b, 0, 0)))
        args.append(mask_bias)

    # Weights feed the MXU as bf16 (f32 accumulation in the kernel).
    w_args = [params[name].astype(jnp.bfloat16) for name in _W_ORDER]
    w_specs = [pl.BlockSpec(params[name].shape,
                            functools.partial(_zero_index_map, params[name].ndim))
               for name in _W_ORDER]

    # Pack all gamma/beta/bias rows into one f32 block: one DMA descriptor / VMEM slot.
    widths = [int(params[name].shape[-1]) for name in _VEC_ORDER]
    max_w = max(widths)
    rows, vec_rows = [], {}
    for i, (name, w) in enumerate(zip(_VEC_ORDER, widths)):
        row = params[name].reshape(1, w).astype(jnp.float32)
        if w < max_w:
            row = jnp.pad(row, ((0, 0), (0, max_w - w)))
        rows.append(row)
        vec_rows[name] = (i, w)
    vec_pack = jnp.concatenate(rows, axis=0)
    vec_spec = pl.BlockSpec(vec_pack.shape, functools.partial(_zero_index_map, 2))

    if dense_out:
        out_shape = jax.ShapeDtypeStruct((B, S * D), queries.dtype)
        out_spec = pl.BlockSpec((block_b, S * D), lambda b: (b, 0))
    else:
        out_shape = jax.ShapeDtypeStruct((B, S, D), queries.dtype)
        out_spec = act_spec

    kernel = functools.partial(_decoder_layer_kernel, num_heads, dim_key,
                               has_mask, dense_out, vec_rows)

    compiler_kwargs = dict(dimension_semantics=("parallel",))
    vmem_limit = _default_vmem_limit_bytes()
    if vmem_limit is not None:
        compiler_kwargs["vmem_limit_bytes"] = vmem_limit

    out = pl.pallas_call(
        kernel,
        out_shape=out_shape,
        grid_spec=pltpu.PrefetchScalarGridSpec(
            num_scalar_prefetch=0,
            grid=grid,
            in_specs=in_specs + w_specs + [vec_spec],
            out_specs=out_spec,
        ),
        compiler_params=pltpu.CompilerParams(**compiler_kwargs),
    )(*args, *w_args, vec_pack)

    if dense_out:
        out = out.reshape(B, S, D)
    return out


def init_params(key, d_model, num_heads, dim_key, d_ff):
    dk_total = num_heads * dim_key
    ks = jax.random.split(key, 20)

    def w(k, shape, scale=0.1):
        return scale * jax.random.normal(k, shape, jnp.float32)

    return {
        # layer-norm params kept as (1, D) rows
        "gq": 1.0 + w(ks[0], (1, d_model)), "bq_ln": w(ks[1], (1, d_model), 0.05),
        "gk": 1.0 + w(ks[2], (1, d_model)), "bk_ln": w(ks[3], (1, d_model), 0.05),
        "gv": 1.0 + w(ks[4], (1, d_model)), "bv_ln": w(ks[5], (1, d_model), 0.05),
        "gn": 1.0 + w(ks[6], (1, d_model)), "bn":    w(ks[7], (1, d_model), 0.05),
        # attention projections
        "wq": w(ks[8], (d_model, dk_total)),  "bq": w(ks[9], (1, dk_total), 0.02),
        "wk": w(ks[10], (d_model, dk_total)), "bk": w(ks[11], (1, dk_total), 0.02),
        "wv": w(ks[12], (d_model, dk_total)), "bv": w(ks[13], (1, dk_total), 0.02),
        "wo": w(ks[14], (dk_total, d_model)), "bo": w(ks[15], (1, d_model), 0.02),
        # position-wise feed forward
        "w1": w(ks[16], (d_model, d_ff)), "b1": w(ks[17], (1, d_ff), 0.02),
        "w2": w(ks[18], (d_ff, d_model)), "b2": w(ks[19], (1, d_model), 0.02),
    }


def reference_decoder_layer(queries, keys, values, mask, params, *, num_heads, dim_key):
    """Pure-JAX f32 reference mirroring the PyTorch forward."""
    def ln(x, g, b):
        mu = jnp.mean(x, -1, keepdims=True)
        var = jnp.mean((x - mu) ** 2, -1, keepdims=True)
        return (x - mu) / jnp.sqrt(var + 1e-5) * g + b

    B, S, _ = queries.shape
    qn = ln(queries, params["gq"], params["bq_ln"])
    kn = ln(keys, params["gk"], params["bk_ln"])
    vn = ln(values, params["gv"], params["bv_ln"])
    qp = qn @ params["wq"] + params["bq"]
    kp = kn @ params["wk"] + params["bk"]
    vp = vn @ params["wv"] + params["bv"]

    def split(x):
        return x.reshape(B, S, num_heads, dim_key).transpose(0, 2, 1, 3)

    Q, K, V = split(qp), split(kp), split(vp)
    s = jnp.einsum("bhqd,bhkd->bhqk", Q, K) / math.sqrt(dim_key)
    if mask is not None:
        s = jnp.where(mask[:, None] == 0, -1e9, s)
    p = jax.nn.softmax(s, axis=-1)
    o = jnp.einsum("bhqk,bhkd->bhqd", p, V)
    o = o.transpose(0, 2, 1, 3).reshape(B, S, num_heads * dim_key)
    attn = o @ params["wo"] + params["bo"]
    x = queries + attn
    xn = ln(x, params["gn"], params["bn"])
    ff = jnp.maximum(xn @ params["w1"] + params["b1"], 0.0) @ params["w2"] + params["b2"]
    return x + ff


if __name__ == "__main__":
    # Shapes consistent with the module: d_model=32, num_heads=4, dim_key=8,
    # d_ff=64, max_seq_length=8, batch=2 (dropout irrelevant -> identity).
    B, S, D = 2, 8, 32
    H, DK, DFF = 4, 8, 64

    key = jax.random.PRNGKey(0)
    kq, kk, kv, kp = jax.random.split(key, 4)
    queries = jax.random.normal(kq, (B, S, D), jnp.float32)
    keys_ = jax.random.normal(kk, (B, S, D), jnp.float32)
    values = jax.random.normal(kv, (B, S, D), jnp.float32)
    params = init_params(kp, D, H, DK, DFF)

    # mask=None path (no mask input, no bias add in the compiled kernel).
    out = amortized_decoder_layer(queries, keys_, values, None, params,
                                  num_heads=H, dim_key=DK)
    out = jax.block_until_ready(out)
    ref = reference_decoder_layer(queries, keys_, values, None, params,
                                  num_heads=H, dim_key=DK)
    assert out.shape == (B, S, D)
    # bf16 matmuls (f32 accumulation) + approx softmax reciprocal vs. f32 reference.
    assert jnp.allclose(out, ref, atol=2e-2, rtol=2e-2), "mismatch vs reference (no mask)"

    # masked path (causal mask handed to the kernel as a precomputed additive bias).
    causal = jnp.broadcast_to(jnp.tril(jnp.ones((S, S), jnp.float32)), (B, S, S))
    out_m = amortized_decoder_layer(queries, keys_, values, causal, params,
                                    num_heads=H, dim_key=DK)
    out_m = jax.block_until_ready(out_m)
    ref_m = reference_decoder_layer(queries, keys_, values, causal, params,
                                    num_heads=H, dim_key=DK)
    assert jnp.allclose(out_m, ref_m, atol=2e-2, rtol=2e-2), "mismatch vs reference (mask)"

    print("KERNEL_OK")
</pallas_src>

<mosaic_0001>
module attributes {stable_mosaic.version = 11 : i64} {
  func.func @_decoder_layer_kernel(%arg0: i32, %arg1: memref<2x8x32xf32, #tpu.memory_space<vmem>>, %arg2: memref<2x8x32xf32, #tpu.memory_space<vmem>>, %arg3: memref<2x8x32xf32, #tpu.memory_space<vmem>>, %arg4: memref<32x32xbf16, #tpu.memory_space<vmem>>, %arg5: memref<32x32xbf16, #tpu.memory_space<vmem>>, %arg6: memref<32x32xbf16, #tpu.memory_space<vmem>>, %arg7: memref<32x32xbf16, #tpu.memory_space<vmem>>, %arg8: memref<32x64xbf16, #tpu.memory_space<vmem>>, %arg9: memref<64x32xbf16, #tpu.memory_space<vmem>>, %arg10: memref<14x64xf32, #tpu.memory_space<vmem>>, %arg11: memref<2x256xf32, #tpu.memory_space<vmem>>) attributes {dimension_semantics = [#tpu.dimension_semantics<parallel>], iteration_bounds = array<i64: 1>, scalar_prefetch = 0 : i64, scratch_operands = 0 : i64, tpu.core_type = #tpu.core_type<tc>, window_params = [{transform_indices = @transform_0, window_bounds = array<i64: 2, 8, 32>}, {transform_indices = @transform_1, window_bounds = array<i64: 2, 8, 32>}, {transform_indices = @transform_2, window_bounds = array<i64: 2, 8, 32>}, {pipeline_mode = #tpu.pipeline_mode<synchronous>, transform_indices = @transform_3, window_bounds = array<i64: 32, 32>}, {pipeline_mode = #tpu.pipeline_mode<synchronous>, transform_indices = @transform_4, window_bounds = array<i64: 32, 32>}, {pipeline_mode = #tpu.pipeline_mode<synchronous>, transform_indices = @transform_5, window_bounds = array<i64: 32, 32>}, {pipeline_mode = #tpu.pipeline_mode<synchronous>, transform_indices = @transform_6, window_bounds = array<i64: 32, 32>}, {pipeline_mode = #tpu.pipeline_mode<synchronous>, transform_indices = @transform_7, window_bounds = array<i64: 32, 64>}, {pipeline_mode = #tpu.pipeline_mode<synchronous>, transform_indices = @transform_8, window_bounds = array<i64: 64, 32>}, {pipeline_mode = #tpu.pipeline_mode<synchronous>, transform_indices = @transform_9, window_bounds = array<i64: 14, 64>}, {transform_indices = @transform_10, window_bounds = array<i64: 2, 256>}]} {
    %c0 = arith.constant 0 : index
    %c0_0 = arith.constant 0 : index
    %c0_1 = arith.constant 0 : index
    %0 = vector.load %arg1[%c0, %c0_0, %c0_1] : memref<2x8x32xf32, #tpu.memory_space<vmem>>, vector<2x8x32xf32>
    %1 = vector.shape_cast %0 : vector<2x8x32xf32> to vector<16x32xf32>
    %c0_2 = arith.constant 0 : index
    %c0_3 = arith.constant 0 : index
    %c0_4 = arith.constant 0 : index
    %2 = vector.load %arg2[%c0_2, %c0_3, %c0_4] : memref<2x8x32xf32, #tpu.memory_space<vmem>>, vector<2x8x32xf32>
    %3 = vector.shape_cast %2 : vector<2x8x32xf32> to vector<16x32xf32>
    %c0_5 = arith.constant 0 : index
    %c0_6 = arith.constant 0 : index
    %c0_7 = arith.constant 0 : index
    %4 = vector.load %arg3[%c0_5, %c0_6, %c0_7] : memref<2x8x32xf32, #tpu.memory_space<vmem>>, vector<2x8x32xf32>
    %5 = vector.shape_cast %4 : vector<2x8x32xf32> to vector<16x32xf32>
    %c0_8 = arith.constant 0 : index
    %c0_9 = arith.constant 0 : index
    %6 = vector.load %arg10[%c0_8, %c0_9] : memref<14x64xf32, #tpu.memory_space<vmem>>, vector<1x32xf32>
    %c1 = arith.constant 1 : index
    %c0_10 = arith.constant 0 : index
    %7 = vector.load %arg10[%c1, %c0_10] : memref<14x64xf32, #tpu.memory_space<vmem>>, vector<1x32xf32>
    %cst = arith.constant dense<0.000000e+00> : vector<16xf32>
    %8 = vector.multi_reduction <add>, %1, %cst [1] : vector<16x32xf32> to vector<16xf32>
    %9 = vector.shape_cast %8 : vector<16xf32> to vector<16x1xf32>
    %cst_11 = arith.constant 3.200000e+01 : f32
    %10 = vector.broadcast %cst_11 : f32 to vector<16x1xf32>
    %11 = arith.divf %9, %10 : vector<16x1xf32>
    %12 = vector.broadcast %11 : vector<16x1xf32> to vector<16x32xf32>
    %13 = arith.subf %1, %12 : vector<16x32xf32>
    %14 = arith.mulf %13, %13 : vector<16x32xf32>
    %cst_12 = arith.constant dense<0.000000e+00> : vector<16xf32>
    %15 = vector.multi_reduction <add>, %14, %cst_12 [1] : vector<16x32xf32> to vector<16xf32>
    %16 = vector.shape_cast %15 : vector<16xf32> to vector<16x1xf32>
    %cst_13 = arith.constant 3.200000e+01 : f32
    %17 = vector.broadcast %cst_13 : f32 to vector<16x1xf32>
    %18 = arith.divf %16, %17 : vector<16x1xf32>
    %cst_14 = arith.constant 9.99999974E-6 : f32
    %19 = vector.broadcast %cst_14 : f32 to vector<16x1xf32>
    %20 = arith.addf %18, %19 : vector<16x1xf32>
    %21 = math.rsqrt %20 : vector<16x1xf32>
    %22 = vector.broadcast %21 : vector<16x1xf32> to vector<16x32xf32>
    %23 = arith.mulf %13, %22 : vector<16x32xf32>
    %24 = vector.broadcast %6 : vector<1x32xf32> to vector<16x32xf32>
    %25 = arith.mulf %23, %24 : vector<16x32xf32>
    %26 = vector.broadcast %7 : vector<1x32xf32> to vector<16x32xf32>
    %27 = arith.addf %25, %26 : vector<16x32xf32>
    %c2 = arith.constant 2 : index
    %c0_15 = arith.constant 0 : index
    %28 = vector.load %arg10[%c2, %c0_15] : memref<14x64xf32, #tpu.memory_space<vmem>>, vector<1x32xf32>
    %c3 = arith.constant 3 : index
    %c0_16 = arith.constant 0 : index
    %29 = vector.load %arg10[%c3, %c0_16] : memref<14x64xf32, #tpu.memory_space<vmem>>, vector<1x32xf32>
    %cst_17 = arith.constant dense<0.000000e+00> : vector<16xf32>
    %30 = vector.multi_reduction <add>, %3, %cst_17 [1] : vector<16x32xf32> to vector<16xf32>
    %31 = vector.shape_cast %30 : vector<16xf32> to vector<16x1xf32>
    %cst_18 = arith.constant 3.200000e+01 : f32
    %32 = vector.broadcast %cst_18 : f32 to vector<16x1xf32>
    %33 = arith.divf %31, %32 : vector<16x1xf32>
    %34 = vector.broadcast %33 : vector<16x1xf32> to vector<16x32xf32>
    %35 = arith.subf %3, %34 : vector<16x32xf32>
    %36 = arith.mulf %35, %35 : vector<16x32xf32>
    %cst_19 = arith.constant dense<0.000000e+00> : vector<16xf32>
    %37 = vector.multi_reduction <add>, %36, %cst_19 [1] : vector<16x32xf32> to vector<16xf32>
    %38 = vector.shape_cast %37 : vector<16xf32> to vector<16x1xf32>
    %cst_20 = arith.constant 3.200000e+01 : f32
    %39 = vector.broadcast %cst_20 : f32 to vector<16x1xf32>
    %40 = arith.divf %38, %39 : vector<16x1xf32>
    %cst_21 = arith.constant 9.99999974E-6 : f32
    %41 = vector.broadcast %cst_21 : f32 to vector<16x1xf32>
    %42 = arith.addf %40, %41 : vector<16x1xf32>
    %43 = math.rsqrt %42 : vector<16x1xf32>
    %44 = vector.broadcast %43 : vector<16x1xf32> to vector<16x32xf32>
    %45 = arith.mulf %35, %44 : vector<16x32xf32>
    %46 = vector.broadcast %28 : vector<1x32xf32> to vector<16x32xf32>
    %47 = arith.mulf %45, %46 : vector<16x32xf32>
    %48 = vector.broadcast %29 : vector<1x32xf32> to vector<16x32xf32>
    %49 = arith.addf %47, %48 : vector<16x32xf32>
    %c4 = arith.constant 4 : index
    %c0_22 = arith.constant 0 : index
    %50 = vector.load %arg10[%c4, %c0_22] : memref<14x64xf32, #tpu.memory_space<vmem>>, vector<1x32xf32>
    %c5 = arith.constant 5 : index
    %c0_23 = arith.constant 0 : index
    %51 = vector.load %arg10[%c5, %c0_23] : memref<14x64xf32, #tpu.memory_space<vmem>>, vector<1x32xf32>
    %cst_24 = arith.constant dense<0.000000e+00> : vector<16xf32>
    %52 = vector.multi_reduction <add>, %5, %cst_24 [1] : vector<16x32xf32> to vector<16xf32>
    %53 = vector.shape_cast %52 : vector<16xf32> to vector<16x1xf32>
    %cst_25 = arith.constant 3.200000e+01 : f32
    %54 = vector.broadcast %cst_25 : f32 to vector<16x1xf32>
    %55 = arith.divf %53, %54 : vector<16x1xf32>
    %56 = vector.broadcast %55 : vector<16x1xf32> to vector<16x32xf32>
    %57 = arith.subf %5, %56 : vector<16x32xf32>
    %58 = arith.mulf %57, %57 : vector<16x32xf32>
    %cst_26 = arith.constant dense<0.000000e+00> : vector<16xf32>
    %59 = vector.multi_reduction <add>, %58, %cst_26 [1] : vector<16x32xf32> to vector<16xf32>
    %60 = vector.shape_cast %59 : vector<16xf32> to vector<16x1xf32>
    %cst_27 = arith.constant 3.200000e+01 : f32
    %61 = vector.broadcast %cst_27 : f32 to vector<16x1xf32>
    %62 = arith.divf %60, %61 : vector<16x1xf32>
    %cst_28 = arith.constant 9.99999974E-6 : f32
    %63 = vector.broadcast %cst_28 : f32 to vector<16x1xf32>
    %64 = arith.addf %62, %63 : vector<16x1xf32>
    %65 = math.rsqrt %64 : vector<16x1xf32>
    %66 = vector.broadcast %65 : vector<16x1xf32> to vector<16x32xf32>
    %67 = arith.mulf %57, %66 : vector<16x32xf32>
    %68 = vector.broadcast %50 : vector<1x32xf32> to vector<16x32xf32>
    %69 = arith.mulf %67, %68 : vector<16x32xf32>
    %70 = vector.broadcast %51 : vector<1x32xf32> to vector<16x32xf32>
    %71 = arith.addf %69, %70 : vector<16x32xf32>
    %72 = arith.truncf %27 : vector<16x32xf32> to vector<16x32xbf16>
    %c0_29 = arith.constant 0 : index
    %c0_30 = arith.constant 0 : index
    %73 = vector.load %arg4[%c0_29, %c0_30] : memref<32x32xbf16, #tpu.memory_space<vmem>>, vector<32x32xbf16>
    %cst_31 = arith.constant dense<0.000000e+00> : vector<16x32xf32>
    %74 = tpu.matmul %72, %73, %cst_31 {dimension_numbers = #tpu.dot_dimension_numbers<[1], [0], [0], [1], [0, 0, 1, 1], [], []>} : vector<16x32xbf16>, vector<32x32xbf16>, vector<16x32xf32> -> vector<16x32xf32>
    %c8 = arith.constant 8 : index
    %c0_32 = arith.constant 0 : index
    %75 = vector.load %arg10[%c8, %c0_32] : memref<14x64xf32, #tpu.memory_space<vmem>>, vector<1x32xf32>
    %76 = vector.broadcast %75 : vector<1x32xf32> to vector<16x32xf32>
    %77 = arith.addf %74, %76 : vector<16x32xf32>
    %78 = arith.truncf %49 : vector<16x32xf32> to vector<16x32xbf16>
    %c0_33 = arith.constant 0 : index
    %c0_34 = arith.constant 0 : index
    %79 = vector.load %arg5[%c0_33, %c0_34] : memref<32x32xbf16, #tpu.memory_space<vmem>>, vector<32x32xbf16>
    %cst_35 = arith.constant dense<0.000000e+00> : vector<16x32xf32>
    %80 = tpu.matmul %78, %79, %cst_35 {dimension_numbers = #tpu.dot_dimension_numbers<[1], [0], [0], [1], [0, 0, 1, 1], [], []>} : vector<16x32xbf16>, vector<32x32xbf16>, vector<16x32xf32> -> vector<16x32xf32>
    %c9 = arith.constant 9 : index
    %c0_36 = arith.constant 0 : index
    %81 = vector.load %arg10[%c9, %c0_36] : memref<14x64xf32, #tpu.memory_space<vmem>>, vector<1x32xf32>
    %82 = vector.broadcast %81 : vector<1x32xf32> to vector<16x32xf32>
    %83 = arith.addf %80, %82 : vector<16x32xf32>
    %84 = arith.truncf %71 : vector<16x32xf32> to vector<16x32xbf16>
    %c0_37 = arith.constant 0 : index
    %c0_38 = arith.constant 0 : index
    %85 = vector.load %arg6[%c0_37, %c0_38] : memref<32x32xbf16, #tpu.memory_space<vmem>>, vector<32x32xbf16>
    %cst_39 = arith.constant dense<0.000000e+00> : vector<16x32xf32>
    %86 = tpu.matmul %84, %85, %cst_39 {dimension_numbers = #tpu.dot_dimension_numbers<[1], [0], [0], [1], [0, 0, 1, 1], [], []>} : vector<16x32xbf16>, vector<32x32xbf16>, vector<16x32xf32> -> vector<16x32xf32>
    %c10 = arith.constant 10 : index
    %c0_40 = arith.constant 0 : index
    %87 = vector.load %arg10[%c10, %c0_40] : memref<14x64xf32, #tpu.memory_space<vmem>>, vector<1x32xf32>
    %88 = vector.broadcast %87 : vector<1x32xf32> to vector<16x32xf32>
    %89 = arith.addf %86, %88 : vector<16x32xf32>
    %90 = vector.shape_cast %77 : vector<16x32xf32> to vector<2x8x32xf32>
    %91 = vector.shape_cast %83 : vector<16x32xf32> to vector<2x8x32xf32>
    %92 = vector.shape_cast %89 : vector<16x32xf32> to vector<2x8x32xf32>
    %93 = vector.extract_strided_slice %90 {offsets = [0, 0, 0], sizes = [2, 8, 8], strides = [1, 1, 1]} : vector<2x8x32xf32> to vector<2x8x8xf32>
    %94 = vector.extract_strided_slice %91 {offsets = [0, 0, 0], sizes = [2, 8, 8], strides = [1, 1, 1]} : vector<2x8x32xf32> to vector<2x8x8xf32>
    %95 = vector.extract_strided_slice %92 {offsets = [0, 0, 0], sizes = [2, 8, 8], strides = [1, 1, 1]} : vector<2x8x32xf32> to vector<2x8x8xf32>
    %96 = vector.shape_cast %93 : vector<2x8x8xf32> to vector<2x8x1x8xf32>
    %97 = vector.shape_cast %94 : vector<2x8x8xf32> to vector<2x1x8x8xf32>
    %98 = vector.broadcast %96 : vector<2x8x1x8xf32> to vector<2x8x8x8xf32>
    %99 = vector.broadcast %97 : vector<2x1x8x8xf32> to vector<2x8x8x8xf32>
    %100 = arith.mulf %98, %99 : vector<2x8x8x8xf32>
    %cst_41 = arith.constant dense<0.000000e+00> : vector<2x8x8xf32>
    %101 = vector.multi_reduction <add>, %100, %cst_41 [3] : vector<2x8x8x8xf32> to vector<2x8x8xf32>
    %cst_42 = arith.constant 0.353553385 : f32
    %102 = vector.broadcast %cst_42 : f32 to vector<2x8x8xf32>
    %103 = arith.mulf %101, %102 : vector<2x8x8xf32>
    %cst_43 = arith.constant dense<0xFF800000> : vector<2x8xf32>
    %104 = vector.multi_reduction <maximumf>, %103, %cst_43 [2] : vector<2x8x8xf32> to vector<2x8xf32>
    %105 = vector.shape_cast %104 : vector<2x8xf32> to vector<2x8x1xf32>
    %106 = vector.broadcast %105 : vector<2x8x1xf32> to vector<2x8x8xf32>
    %107 = arith.subf %103, %106 : vector<2x8x8xf32>
    %108 = math.exp %107 : vector<2x8x8xf32>
    %cst_44 = arith.constant dense<0.000000e+00> : vector<2x8xf32>
    %109 = vector.multi_reduction <add>, %108, %cst_44 [2] : vector<2x8x8xf32> to vector<2x8xf32>
    %110 = vector.shape_cast %109 : vector<2x8xf32> to vector<2x8x1xf32>
    %111 = tpu.reciprocal %110 {approx = true} : vector<2x8x1xf32> -> vector<2x8x1xf32>
    %112 = vector.broadcast %111 : vector<2x8x1xf32> to vector<2x8x8xf32>
    %113 = arith.mulf %108, %112 : vector<2x8x8xf32>
    %114 = vector.shape_cast %113 : vector<2x8x8xf32> to vector<2x8x8x1xf32>
    %115 = vector.shape_cast %95 : vector<2x8x8xf32> to vector<2x1x8x8xf32>
    %116 = vector.broadcast %114 : vector<2x8x8x1xf32> to vector<2x8x8x8xf32>
    %117 = vector.broadcast %115 : vector<2x1x8x8xf32> to vector<2x8x8x8xf32>
    %118 = arith.mulf %116, %117 : vector<2x8x8x8xf32>
    %cst_45 = arith.constant dense<0.000000e+00> : vector<2x8x8xf32>
    %119 = vector.multi_reduction <add>, %118, %cst_45 [2] : vector<2x8x8x8xf32> to vector<2x8x8xf32>
    %120 = vector.extract_strided_slice %90 {offsets = [0, 0, 8], sizes = [2, 8, 8], strides = [1, 1, 1]} : vector<2x8x32xf32> to vector<2x8x8xf32>
    %121 = vector.extract_strided_slice %91 {offsets = [0, 0, 8], sizes = [2, 8, 8], strides = [1, 1, 1]} : vector<2x8x32xf32> to vector<2x8x8xf32>
    %122 = vector.extract_strided_slice %92 {offsets = [0, 0, 8], sizes = [2, 8, 8], strides = [1, 1, 1]} : vector<2x8x32xf32> to vector<2x8x8xf32>
    %123 = vector.shape_cast %120 : vector<2x8x8xf32> to vector<2x8x1x8xf32>
    %124 = vector.shape_cast %121 : vector<2x8x8xf32> to vector<2x1x8x8xf32>
    %125 = vector.broadcast %123 : vector<2x8x1x8xf32> to vector<2x8x8x8xf32>
    %126 = vector.broadcast %124 : vector<2x1x8x8xf32> to vector<2x8x8x8xf32>
    %127 = arith.mulf %125, %126 : vector<2x8x8x8xf32>
    %cst_46 = arith.constant dense<0.000000e+00> : vector<2x8x8xf32>
    %128 = vector.multi_reduction <add>, %127, %cst_46 [3] : vector<2x8x8x8xf32> to vector<2x8x8xf32>
    %cst_47 = arith.constant 0.353553385 : f32
    %129 = vector.broadcast %cst_47 : f32 to vector<2x8x8xf32>
    %130 = arith.mulf %128, %129 : vector<2x8x8xf32>
    %cst_48 = arith.constant dense<0xFF800000> : vector<2x8xf32>
    %131 = vector.multi_reduction <maximumf>, %130, %cst_48 [2] : vector<2x8x8xf32> to vector<2x8xf32>
    %132 = vector.shape_cast %131 : vector<2x8xf32> to vector<2x8x1xf32>
    %133 = vector.broadcast %132 : vector<2x8x1xf32> to vector<2x8x8xf32>
    %134 = arith.subf %130, %133 : vector<2x8x8xf32>
    %135 = math.exp %134 : vector<2x8x8xf32>
    %cst_49 = arith.constant dense<0.000000e+00> : vector<2x8xf32>
    %136 = vector.multi_reduction <add>, %135, %cst_49 [2] : vector<2x8x8xf32> to vector<2x8xf32>
    %137 = vector.shape_cast %136 : vector<2x8xf32> to vector<2x8x1xf32>
    %138 = tpu.reciprocal %137 {approx = true} : vector<2x8x1xf32> -> vector<2x8x1xf32>
    %139 = vector.broadcast %138 : vector<2x8x1xf32> to vector<2x8x8xf32>
    %140 = arith.mulf %135, %139 : vector<2x8x8xf32>
    %141 = vector.shape_cast %140 : vector<2x8x8xf32> to vector<2x8x8x1xf32>
    %142 = vector.shape_cast %122 : vector<2x8x8xf32> to vector<2x1x8x8xf32>
    %143 = vector.broadcast %141 : vector<2x8x8x1xf32> to vector<2x8x8x8xf32>
    %144 = vector.broadcast %142 : vector<2x1x8x8xf32> to vector<2x8x8x8xf32>
    %145 = arith.mulf %143, %144 : vector<2x8x8x8xf32>
    %cst_50 = arith.constant dense<0.000000e+00> : vector<2x8x8xf32>
    %146 = vector.multi_reduction <add>, %145, %cst_50 [2] : vector<2x8x8x8xf32> to vector<2x8x8xf32>
    %147 = vector.extract_strided_slice %90 {offsets = [0, 0, 16], sizes = [2, 8, 8], strides = [1, 1, 1]} : vector<2x8x32xf32> to vector<2x8x8xf32>
    %148 = vector.extract_strided_slice %91 {offsets = [0, 0, 16], sizes = [2, 8, 8], strides = [1, 1, 1]} : vector<2x8x32xf32> to vector<2x8x8xf32>
    %149 = vector.extract_strided_slice %92 {offsets = [0, 0, 16], sizes = [2, 8, 8], strides = [1, 1, 1]} : vector<2x8x32xf32> to vector<2x8x8xf32>
    %150 = vector.shape_cast %147 : vector<2x8x8xf32> to vector<2x8x1x8xf32>
    %151 = vector.shape_cast %148 : vector<2x8x8xf32> to vector<2x1x8x8xf32>
    %152 = vector.broadcast %150 : vector<2x8x1x8xf32> to vector<2x8x8x8xf32>
    %153 = vector.broadcast %151 : vector<2x1x8x8xf32> to vector<2x8x8x8xf32>
    %154 = arith.mulf %152, %153 : vector<2x8x8x8xf32>
    %cst_51 = arith.constant dense<0.000000e+00> : vector<2x8x8xf32>
    %155 = vector.multi_reduction <add>, %154, %cst_51 [3] : vector<2x8x8x8xf32> to vector<2x8x8xf32>
    %cst_52 = arith.constant 0.353553385 : f32
    %156 = vector.broadcast %cst_52 : f32 to vector<2x8x8xf32>
    %157 = arith.mulf %155, %156 : vector<2x8x8xf32>
    %cst_53 = arith.constant dense<0xFF800000> : vector<2x8xf32>
    %158 = vector.multi_reduction <maximumf>, %157, %cst_53 [2] : vector<2x8x8xf32> to vector<2x8xf32>
    %159 = vector.shape_cast %158 : vector<2x8xf32> to vector<2x8x1xf32>
    %160 = vector.broadcast %159 : vector<2x8x1xf32> to vector<2x8x8xf32>
    %161 = arith.subf %157, %160 : vector<2x8x8xf32>
    %162 = math.exp %161 : vector<2x8x8xf32>
    %cst_54 = arith.constant dense<0.000000e+00> : vector<2x8xf32>
    %163 = vector.multi_reduction <add>, %162, %cst_54 [2] : vector<2x8x8xf32> to vector<2x8xf32>
    %164 = vector.shape_cast %163 : vector<2x8xf32> to vector<2x8x1xf32>
    %165 = tpu.reciprocal %164 {approx = true} : vector<2x8x1xf32> -> vector<2x8x1xf32>
    %166 = vector.broadcast %165 : vector<2x8x1xf32> to vector<2x8x8xf32>
    %167 = arith.mulf %162, %166 : vector<2x8x8xf32>
    %168 = vector.shape_cast %167 : vector<2x8x8xf32> to vector<2x8x8x1xf32>
    %169 = vector.shape_cast %149 : vector<2x8x8xf32> to vector<2x1x8x8xf32>
    %170 = vector.broadcast %168 : vector<2x8x8x1xf32> to vector<2x8x8x8xf32>
    %171 = vector.broadcast %169 : vector<2x1x8x8xf32> to vector<2x8x8x8xf32>
    %172 = arith.mulf %170, %171 : vector<2x8x8x8xf32>
    %cst_55 = arith.constant dense<0.000000e+00> : vector<2x8x8xf32>
    %173 = vector.multi_reduction <add>, %172, %cst_55 [2] : vector<2x8x8x8xf32> to vector<2x8x8xf32>
    %174 = vector.extract_strided_slice %90 {offsets = [0, 0, 24], sizes = [2, 8, 8], strides = [1, 1, 1]} : vector<2x8x32xf32> to vector<2x8x8xf32>
    %175 = vector.extract_strided_slice %91 {offsets = [0, 0, 24], sizes = [2, 8, 8], strides = [1, 1, 1]} : vector<2x8x32xf32> to vector<2x8x8xf32>
    %176 = vector.extract_strided_slice %92 {offsets = [0, 0, 24], sizes = [2, 8, 8], strides = [1, 1, 1]} : vector<2x8x32xf32> to vector<2x8x8xf32>
    %177 = vector.shape_cast %174 : vector<2x8x8xf32> to vector<2x8x1x8xf32>
    %178 = vector.shape_cast %175 : vector<2x8x8xf32> to vector<2x1x8x8xf32>
    %179 = vector.broadcast %177 : vector<2x8x1x8xf32> to vector<2x8x8x8xf32>
    %180 = vector.broadcast %178 : vector<2x1x8x8xf32> to vector<2x8x8x8xf32>
    %181 = arith.mulf %179, %180 : vector<2x8x8x8xf32>
    %cst_56 = arith.constant dense<0.000000e+00> : vector<2x8x8xf32>
    %182 = vector.multi_reduction <add>, %181, %cst_56 [3] : vector<2x8x8x8xf32> to vector<2x8x8xf32>
    %cst_57 = arith.constant 0.353553385 : f32
    %183 = vector.broadcast %cst_57 : f32 to vector<2x8x8xf32>
    %184 = arith.mulf %182, %183 : vector<2x8x8xf32>
    %cst_58 = arith.constant dense<0xFF800000> : vector<2x8xf32>
    %185 = vector.multi_reduction <maximumf>, %184, %cst_58 [2] : vector<2x8x8xf32> to vector<2x8xf32>
    %186 = vector.shape_cast %185 : vector<2x8xf32> to vector<2x8x1xf32>
    %187 = vector.broadcast %186 : vector<2x8x1xf32> to vector<2x8x8xf32>
    %188 = arith.subf %184, %187 : vector<2x8x8xf32>
    %189 = math.exp %188 : vector<2x8x8xf32>
    %cst_59 = arith.constant dense<0.000000e+00> : vector<2x8xf32>
    %190 = vector.multi_reduction <add>, %189, %cst_59 [2] : vector<2x8x8xf32> to vector<2x8xf32>
    %191 = vector.shape_cast %190 : vector<2x8xf32> to vector<2x8x1xf32>
    %192 = tpu.reciprocal %191 {approx = true} : vector<2x8x1xf32> -> vector<2x8x1xf32>
    %193 = vector.broadcast %192 : vector<2x8x1xf32> to vector<2x8x8xf32>
    %194 = arith.mulf %189, %193 : vector<2x8x8xf32>
    %195 = vector.shape_cast %194 : vector<2x8x8xf32> to vector<2x8x8x1xf32>
    %196 = vector.shape_cast %176 : vector<2x8x8xf32> to vector<2x1x8x8xf32>
    %197 = vector.broadcast %195 : vector<2x8x8x1xf32> to vector<2x8x8x8xf32>
    %198 = vector.broadcast %196 : vector<2x1x8x8xf32> to vector<2x8x8x8xf32>
    %199 = arith.mulf %197, %198 : vector<2x8x8x8xf32>
    %cst_60 = arith.constant dense<0.000000e+00> : vector<2x8x8xf32>
    %200 = vector.multi_reduction <add>, %199, %cst_60 [2] : vector<2x8x8x8xf32> to vector<2x8x8xf32>
    %201 = tpu.concatenate %119, %146, %173, %200 in 2 : vector<2x8x8xf32>, vector<2x8x8xf32>, vector<2x8x8xf32>, vector<2x8x8xf32> -> vector<2x8x32xf32>
    %202 = vector.shape_cast %201 : vector<2x8x32xf32> to vector<16x32xf32>
    %203 = arith.truncf %202 : vector<16x32xf32> to vector<16x32xbf16>
    %c0_61 = arith.constant 0 : index
    %c0_62 = arith.constant 0 : index
    %204 = vector.load %arg7[%c0_61, %c0_62] : memref<32x32xbf16, #tpu.memory_space<vmem>>, vector<32x32xbf16>
    %cst_63 = arith.constant dense<0.000000e+00> : vector<16x32xf32>
    %205 = tpu.matmul %203, %204, %cst_63 {dimension_numbers = #tpu.dot_dimension_numbers<[1], [0], [0], [1], [0, 0, 1, 1], [], []>} : vector<16x32xbf16>, vector<32x32xbf16>, vector<16x32xf32> -> vector<16x32xf32>
    %c11 = arith.constant 11 : index
    %c0_64 = arith.constant 0 : index
    %206 = vector.load %arg10[%c11, %c0_64] : memref<14x64xf32, #tpu.memory_space<vmem>>, vector<1x32xf32>
    %207 = vector.broadcast %206 : vector<1x32xf32> to vector<16x32xf32>
    %208 = arith.addf %205, %207 : vector<16x32xf32>
    %209 = arith.addf %1, %208 : vector<16x32xf32>
    %c6 = arith.constant 6 : index
    %c0_65 = arith.constant 0 : index
    %210 = vector.load %arg10[%c6, %c0_65] : memref<14x64xf32, #tpu.memory_space<vmem>>, vector<1x32xf32>
    %c7 = arith.constant 7 : index
    %c0_66 = arith.constant 0 : index
    %211 = vector.load %arg10[%c7, %c0_66] : memref<14x64xf32, #tpu.memory_space<vmem>>, vector<1x32xf32>
    %cst_67 = arith.constant dense<0.000000e+00> : vector<16xf32>
    %212 = vector.multi_reduction <add>, %209, %cst_67 [1] : vector<16x32xf32> to vector<16xf32>
    %213 = vector.shape_cast %212 : vector<16xf32> to vector<16x1xf32>
    %cst_68 = arith.constant 3.200000e+01 : f32
    %214 = vector.broadcast %cst_68 : f32 to vector<16x1xf32>
    %215 = arith.divf %213, %214 : vector<16x1xf32>
    %216 = vector.broadcast %215 : vector<16x1xf32> to vector<16x32xf32>
    %217 = arith.subf %209, %216 : vector<16x32xf32>
    %218 = arith.mulf %217, %217 : vector<16x32xf32>
    %cst_69 = arith.constant dense<0.000000e+00> : vector<16xf32>
    %219 = vector.multi_reduction <add>, %218, %cst_69 [1] : vector<16x32xf32> to vector<16xf32>
    %220 = vector.shape_cast %219 : vector<16xf32> to vector<16x1xf32>
    %cst_70 = arith.constant 3.200000e+01 : f32
    %221 = vector.broadcast %cst_70 : f32 to vector<16x1xf32>
    %222 = arith.divf %220, %221 : vector<16x1xf32>
    %cst_71 = arith.constant 9.99999974E-6 : f32
    %223 = vector.broadcast %cst_71 : f32 to vector<16x1xf32>
    %224 = arith.addf %222, %223 : vector<16x1xf32>
    %225 = math.rsqrt %224 : vector<16x1xf32>
    %226 = vector.broadcast %225 : vector<16x1xf32> to vector<16x32xf32>
    %227 = arith.mulf %217, %226 : vector<16x32xf32>
    %228 = vector.broadcast %210 : vector<1x32xf32> to vector<16x32xf32>
    %229 = arith.mulf %227, %228 : vector<16x32xf32>
    %230 = vector.broadcast %211 : vector<1x32xf32> to vector<16x32xf32>
    %231 = arith.addf %229, %230 : vector<16x32xf32>
    %232 = arith.truncf %231 : vector<16x32xf32> to vector<16x32xbf16>
    %c0_72 = arith.constant 0 : index
    %c0_73 = arith.constant 0 : index
    %233 = vector.load %arg8[%c0_72, %c0_73] : memref<32x64xbf16, #tpu.memory_space<vmem>>, vector<32x64xbf16>
    %cst_74 = arith.constant dense<0.000000e+00> : vector<16x64xf32>
    %234 = tpu.matmul %232, %233, %cst_74 {dimension_numbers = #tpu.dot_dimension_numbers<[1], [0], [0], [1], [0, 0, 1, 1], [], []>} : vector<16x32xbf16>, vector<32x64xbf16>, vector<16x64xf32> -> vector<16x64xf32>
    %c12 = arith.constant 12 : index
    %c0_75 = arith.constant 0 : index
    %235 = vector.load %arg10[%c12, %c0_75] : memref<14x64xf32, #tpu.memory_space<vmem>>, vector<1x64xf32>
    %236 = vector.broadcast %235 : vector<1x64xf32> to vector<16x64xf32>
    %237 = arith.addf %234, %236 : vector<16x64xf32>
    %cst_76 = arith.constant 0.000000e+00 : f32
    %238 = vector.broadcast %cst_76 : f32 to vector<16x64xf32>
    %239 = arith.maximumf %237, %238 : vector<16x64xf32>
    %240 = arith.truncf %239 : vector<16x64xf32> to vector<16x64xbf16>
    %c0_77 = arith.constant 0 : index
    %c0_78 = arith.constant 0 : index
    %241 = vector.load %arg9[%c0_77, %c0_78] : memref<64x32xbf16, #tpu.memory_space<vmem>>, vector<64x32xbf16>
    %cst_79 = arith.constant dense<0.000000e+00> : vector<16x32xf32>
    %242 = tpu.matmul %240, %241, %cst_79 {dimension_numbers = #tpu.dot_dimension_numbers<[1], [0], [0], [1], [0, 0, 1, 1], [], []>} : vector<16x64xbf16>, vector<64x32xbf16>, vector<16x32xf32> -> vector<16x32xf32>
    %c13 = arith.constant 13 : index
    %c0_80 = arith.constant 0 : index
    %243 = vector.load %arg10[%c13, %c0_80] : memref<14x64xf32, #tpu.memory_space<vmem>>, vector<1x32xf32>
    %244 = vector.broadcast %243 : vector<1x32xf32> to vector<16x32xf32>
    %245 = arith.addf %242, %244 : vector<16x32xf32>
    %246 = arith.addf %209, %245 : vector<16x32xf32>
    %247 = vector.shape_cast %246 : vector<16x32xf32> to vector<2x8x32xf32>
    %248 = vector.extract_strided_slice %247 {offsets = [0, 0, 0], sizes = [2, 1, 32], strides = [1, 1, 1]} : vector<2x8x32xf32> to vector<2x1x32xf32>
    %249 = vector.shape_cast %248 : vector<2x1x32xf32> to vector<2x32xf32>
    %250 = vector.extract_strided_slice %247 {offsets = [0, 1, 0], sizes = [2, 1, 32], strides = [1, 1, 1]} : vector<2x8x32xf32> to vector<2x1x32xf32>
    %251 = vector.shape_cast %250 : vector<2x1x32xf32> to vector<2x32xf32>
    %252 = vector.extract_strided_slice %247 {offsets = [0, 2, 0], sizes = [2, 1, 32], strides = [1, 1, 1]} : vector<2x8x32xf32> to vector<2x1x32xf32>
    %253 = vector.shape_cast %252 : vector<2x1x32xf32> to vector<2x32xf32>
    %254 = vector.extract_strided_slice %247 {offsets = [0, 3, 0], sizes = [2, 1, 32], strides = [1, 1, 1]} : vector<2x8x32xf32> to vector<2x1x32xf32>
    %255 = vector.shape_cast %254 : vector<2x1x32xf32> to vector<2x32xf32>
    %256 = vector.extract_strided_slice %247 {offsets = [0, 4, 0], sizes = [2, 1, 32], strides = [1, 1, 1]} : vector<2x8x32xf32> to vector<2x1x32xf32>
    %257 = vector.shape_cast %256 : vector<2x1x32xf32> to vector<2x32xf32>
    %258 = vector.extract_strided_slice %247 {offsets = [0, 5, 0], sizes = [2, 1, 32], strides = [1, 1, 1]} : vector<2x8x32xf32> to vector<2x1x32xf32>
    %259 = vector.shape_cast %258 : vector<2x1x32xf32> to vector<2x32xf32>
    %260 = vector.extract_strided_slice %247 {offsets = [0, 6, 0], sizes = [2, 1, 32], strides = [1, 1, 1]} : vector<2x8x32xf32> to vector<2x1x32xf32>
    %261 = vector.shape_cast %260 : vector<2x1x32xf32> to vector<2x32xf32>
    %262 = vector.extract_strided_slice %247 {offsets = [0, 7, 0], sizes = [2, 1, 32], strides = [1, 1, 1]} : vector<2x8x32xf32> to vector<2x1x32xf32>
    %263 = vector.shape_cast %262 : vector<2x1x32xf32> to vector<2x32xf32>
    %264 = tpu.concatenate %249, %251, %253, %255, %257, %259, %261, %263 in 1 : vector<2x32xf32>, vector<2x32xf32>, vector<2x32xf32>, vector<2x32xf32>, vector<2x32xf32>, vector<2x32xf32>, vector<2x32xf32>, vector<2x32xf32> -> vector<2x256xf32>
    %c0_81 = arith.constant 0 : index
    %c0_82 = arith.constant 0 : index
    %265 = vector.load %arg11[%c0_81, %c0_82] : memref<2x256xf32, #tpu.memory_space<vmem>>, vector<2x256xf32>
    tpu.vector_store %arg11[%c0_81, %c0_82], %264 {strides = array<i32>} : memref<2x256xf32, #tpu.memory_space<vmem>>, vector<2x256xf32>,
    return
  }
  func.func @transform_0(%arg0: i32) -> (i32, i32, i32) {
    %c0_i32 = arith.constant 0 : i32
    %c0_i32_0 = arith.constant 0 : i32
    %c0_i32_1 = arith.constant 0 : i32
    return %arg0, %c0_i32, %c0_i32_0 : i32, i32, i32
  }
  func.func @transform_1(%arg0: i32) -> (i32, i32, i32) {
    %c0_i32 = arith.constant 0 : i32
    %c0_i32_0 = arith.constant 0 : i32
    %c0_i32_1 = arith.constant 0 : i32
    return %arg0, %c0_i32, %c0_i32_0 : i32, i32, i32
  }
  func.func @transform_2(%arg0: i32) -> (i32, i32, i32) {
    %c0_i32 = arith.constant 0 : i32
    %c0_i32_0 = arith.constant 0 : i32
    %c0_i32_1 = arith.constant 0 : i32
    return %arg0, %c0_i32, %c0_i32_0 : i32, i32, i32
  }
  func.func @transform_3(%arg0: i32) -> (i32, i32) {
    %c0_i32 = arith.constant 0 : i32
    %c0_i32_0 = arith.constant 0 : i32
    %c0_i32_1 = arith.constant 0 : i32
    return %c0_i32, %c0_i32_0 : i32, i32
  }
  func.func @transform_4(%arg0: i32) -> (i32, i32) {
    %c0_i32 = arith.constant 0 : i32
    %c0_i32_0 = arith.constant 0 : i32
    %c0_i32_1 = arith.constant 0 : i32
    return %c0_i32, %c0_i32_0 : i32, i32
  }
  func.func @transform_5(%arg0: i32) -> (i32, i32) {
    %c0_i32 = arith.constant 0 : i32
    %c0_i32_0 = arith.constant 0 : i32
    %c0_i32_1 = arith.constant 0 : i32
    return %c0_i32, %c0_i32_0 : i32, i32
  }
  func.func @transform_6(%arg0: i32) -> (i32, i32) {
    %c0_i32 = arith.constant 0 : i32
    %c0_i32_0 = arith.constant 0 : i32
    %c0_i32_1 = arith.constant 0 : i32
    return %c0_i32, %c0_i32_0 : i32, i32
  }
  func.func @transform_7(%arg0: i32) -> (i32, i32) {
    %c0_i32 = arith.constant 0 : i32
    %c0_i32_0 = arith.constant 0 : i32
    %c0_i32_1 = arith.constant 0 : i32
    return %c0_i32, %c0_i32_0 : i32, i32
  }
  func.func @transform_8(%arg0: i32) -> (i32, i32) {
    %c0_i32 = arith.constant 0 : i32
    %c0_i32_0 = arith.constant 0 : i32
    %c0_i32_1 = arith.constant 0 : i32
    return %c0_i32, %c0_i32_0 : i32, i32
  }
  func.func @transform_9(%arg0: i32) -> (i32, i32) {
    %c0_i32 = arith.constant 0 : i32
    %c0_i32_0 = arith.constant 0 : i32
    %c0_i32_1 = arith.constant 0 : i32
    return %c0_i32, %c0_i32_0 : i32, i32
  }
  func.func @transform_10(%arg0: i32) -> (i32, i32) {
    %c0_i32 = arith.constant 0 : i32
    %c0_i32_0 = arith.constant 0 : i32
    return %arg0, %c0_i32 : i32, i32
  }
}

</mosaic_0001>

<llo_original>
// kernel: tpu_custom_call.1
$region0: #{tpu_custom_call.1}
  #allocation0 [shape = 'u32[]', space=smem, size = 0x4, offset = 0x4, fixed_abs, tag = 'smem constant byte address 0x4 - core index']
  #allocation1 [shape = 'u32[72,128]{1,0:T(1,128)}', space=vmem, size = 0x9000, scoped, tag = 'internal scratch']
  %s0 = inlined_call_operand.vmem [shape: f32[2,8,32], index: 0, kind: input, shape index: {}]
  %s1 = inlined_call_operand.vmem [shape: f32[2,8,32], index: 1, kind: input, shape index: {}]
  %s2 = inlined_call_operand.vmem [shape: f32[2,8,32], index: 2, kind: input, shape index: {}]
  %s3 = inlined_call_operand.hbm [shape: bf16[32,32], index: 3, kind: input, shape index: {}]
  %s4 = inlined_call_operand.hbm [shape: bf16[32,32], index: 4, kind: input, shape index: {}]
  %s5 = inlined_call_operand.hbm [shape: bf16[32,32], index: 5, kind: input, shape index: {}]
  %s6 = inlined_call_operand.hbm [shape: bf16[32,32], index: 6, kind: input, shape index: {}]
  %s7 = inlined_call_operand.hbm [shape: bf16[32,64], index: 7, kind: input, shape index: {}]
  %s8 = inlined_call_operand.vmem [shape: bf16[64,32], index: 8, kind: input, shape index: {}]
  %s9 = inlined_call_operand.hbm [shape: f32[14,64], index: 9, kind: input, shape index: {}]
  %s10 = inlined_call_operand.hbm [shape: f32[2,256], index: 10, kind: output, shape index: {}]
  %s11 = sld [smem:[#allocation0]]
  $region74: #{tpu_custom_call.1} parent=0
    _
  %s13 = ssub.s32 1, %s11
  %s14 = scalar_select 0, %s13, %s11
  $region1: #{tpu_custom_call.1} parent=0
    #allocation2 [shape = 'u8[8192]{0}', space=vmem, size = 0x2000, scoped, tag = 'input window, operand 3, single buffered']
    #allocation3 [shape = 's32[1]{0}', space=sflag, size = 0x4, scoped, tag = 'scoped memory for tpu_custom_call.1']
    #allocation4 [shape = 's32[1]{0}', space=sflag, size = 0x4, scoped, tag = 'scoped memory for tpu_custom_call.1']
    #allocation5 [shape = 'u8[8192]{0}', space=vmem, size = 0x2000, scoped, tag = 'input window, operand 4, single buffered']
    #allocation6 [shape = 's32[1]{0}', space=sflag, size = 0x4, scoped, tag = 'scoped memory for tpu_custom_call.1']
    #allocation7 [shape = 'u8[8192]{0}', space=vmem, size = 0x2000, scoped, tag = 'input window, operand 5, single buffered']
    #allocation8 [shape = 'u8[8192]{0}', space=vmem, size = 0x2000, scoped, tag = 'input window, operand 6, single buffered']
    #allocation9 [shape = 's32[1]{0}', space=sflag, size = 0x4, scoped, tag = 'scoped memory for tpu_custom_call.1']
    #allocation10 [shape = 'u8[8192]{0}', space=vmem, size = 0x2000, scoped, tag = 'input window, operand 7, single buffered']
    #allocation11 [shape = 'u8[8192]{0}', space=vmem, size = 0x2000, scoped, tag = 'input window, operand 9, single buffered']
    #allocation12 [shape = 's32[1]{0}', space=sflag, size = 0x4, scoped, tag = 'scoped memory for tpu_custom_call.1']
    #allocation13 [shape = 'u8[2048]{0}', space=vmem, size = 0x800, scoped, tag = 'output window, operand 0, single buffered']
    %15 = vsyncpa [#allocation3], 0
    %16 = vsyncpa [#allocation6], 0
    %17 = vsyncpa [#allocation9], 0
    %18 = vsyncpa [#allocation12], 0
    %19 = vsyncpa [#allocation4], 0
    // Predicated region
    $region2: #{tpu_custom_call.1} parent=1 // pred_check
      _
    $region3: #{tpu_custom_call.1} parent=1 // pred_check_branch
      %21 = sbr.rel (0) target = $region5
    $region4: #{tpu_custom_call.1} parent=1 // pred_region
      _
    $region5: #{tpu_custom_call.1} parent=1 // pred_fallthru
      _
    // Predicated region
    $region6: #{tpu_custom_call.1} parent=1 // pred_check
      _
    $region7: #{tpu_custom_call.1} parent=1 // pred_check_branch
      %23 = sbr.rel (0) target = $region9
    $region8: #{tpu_custom_call.1} parent=1 // pred_region
      _
    $region9: #{tpu_custom_call.1} parent=1 // pred_fallthru
      _
    // Predicated region
    $region10: #{tpu_custom_call.1} parent=1 // pred_check
      _
    $region11: #{tpu_custom_call.1} parent=1 // pred_check_branch
      %25 = sbr.rel (0) target = $region13
    $region12: #{tpu_custom_call.1} parent=1 // pred_region
      _
    $region13: #{tpu_custom_call.1} parent=1 // pred_fallthru
      _
    // Predicated region
    $region14: #{tpu_custom_call.1} parent=1 // pred_check
      _
    $region15: #{tpu_custom_call.1} parent=1 // pred_check_branch
      %27 = sbr.rel (0) target = $region17
    $region16: #{tpu_custom_call.1} parent=1 // pred_region
      %29 = vsyncadd [#allocation3], 0
      %s30 = sshll.u32 %s3, 4
      %s31 = int_to_ptr.hbm [resolvable:$true] %s30
      %s32 = sshll.u32 [#allocation2], 4
      %s33 = int_to_ptr.vmem [resolvable:$true] %s32
      %38 = dma.hbm_to_vmem [thread:$0]  %s31, 256, %s33, [#allocation3], 64, 64, 4
    $region17: #{tpu_custom_call.1} parent=1 // pred_fallthru
      _
    // Predicated region
    $region18: #{tpu_custom_call.1} parent=1 // pred_check
      _
    $region19: #{tpu_custom_call.1} parent=1 // pred_check_branch
      %40 = sbr.rel (0) target = $region21
    $region20: #{tpu_custom_call.1} parent=1 // pred_region
      %42 = vsyncadd [#allocation6], 0
      %s43 = sshll.u32 %s4, 4
      %s44 = int_to_ptr.hbm [resolvable:$true] %s43
      %s45 = sshll.u32 [#allocation5], 4
      %s46 = int_to_ptr.vmem [resolvable:$true] %s45
      %51 = dma.hbm_to_vmem [thread:$0]  %s44, 256, %s46, [#allocation6], 64, 64, 4
    $region21: #{tpu_custom_call.1} parent=1 // pred_fallthru
      _
    // Predicated region
    $region22: #{tpu_custom_call.1} parent=1 // pred_check
      _
    $region23: #{tpu_custom_call.1} parent=1 // pred_check_branch
      %53 = sbr.rel (0) target = $region25
    $region24: #{tpu_custom_call.1} parent=1 // pred_region
      %55 = vsyncadd [#allocation6], 0
      %s56 = sshll.u32 %s5, 4
      %s57 = int_to_ptr.hbm [resolvable:$true] %s56
      %s58 = sshll.u32 [#allocation7], 4
      %s59 = int_to_ptr.vmem [resolvable:$true] %s58
      %64 = dma.hbm_to_vmem [thread:$0]  %s57, 256, %s59, [#allocation6], 64, 64, 4
    $region25: #{tpu_custom_call.1} parent=1 // pred_fallthru
      _
    // Predicated region
    $region26: #{tpu_custom_call.1} parent=1 // pred_check
      _
    $region27: #{tpu_custom_call.1} parent=1 // pred_check_branch
      %66 = sbr.rel (0) target = $region29
    $region28: #{tpu_custom_call.1} parent=1 // pred_region
      %68 = vsyncadd [#allocation9], 0
      %s69 = sshll.u32 %s6, 4
      %s70 = int_to_ptr.hbm [resolvable:$true] %s69
      %s71 = sshll.u32 [#allocation8], 4
      %s72 = int_to_ptr.vmem [resolvable:$true] %s71
      %77 = dma.hbm_to_vmem [thread:$0]  %s70, 256, %s72, [#allocation9], 64, 64, 4
    $region29: #{tpu_custom_call.1} parent=1 // pred_fallthru
      _
    // Predicated region
    $region30: #{tpu_custom_call.1} parent=1 // pred_check
      _
    $region31: #{tpu_custom_call.1} parent=1 // pred_check_branch
      %79 = sbr.rel (0) target = $region33
    $region32: #{tpu_custom_call.1} parent=1 // pred_region
      %81 = vsyncadd [#allocation9], 0
      %s82 = sshll.u32 %s7, 4
      %s83 = int_to_ptr.hbm [resolvable:$true] %s82
      %s84 = sshll.u32 [#allocation10], 4
      %s85 = int_to_ptr.vmem [resolvable:$true] %s84
      %90 = dma.hbm_to_vmem [thread:$0]  %s83, 256, %s85, [#allocation9], 64, 64, 4
    $region33: #{tpu_custom_call.1} parent=1 // pred_fallthru
      _
    // Predicated region
    $region34: #{tpu_custom_call.1} parent=1 // pred_check
      _
    $region35: #{tpu_custom_call.1} parent=1 // pred_check_branch
      %92 = sbr.rel (0) target = $region37
    $region36: #{tpu_custom_call.1} parent=1 // pred_region
      _
    $region37: #{tpu_custom_call.1} parent=1 // pred_fallthru
      _
    // Predicated region
    $region38: #{tpu_custom_call.1} parent=1 // pred_check
      _
    $region39: #{tpu_custom_call.1} parent=1 // pred_check_branch
      %94 = sbr.rel (0) target = $region41
    $region40: #{tpu_custom_call.1} parent=1 // pred_region
      %96 = vsyncadd [#allocation12], 0
      %s97 = sshll.u32 %s9, 4
      %s98 = int_to_ptr.hbm [resolvable:$true] %s97
      %s99 = sshll.u32 [#allocation11], 4
      %s100 = int_to_ptr.vmem [resolvable:$true] %s99
      %105 = dma.hbm_to_vmem [thread:$0]  %s98, 256, %s100, [#allocation12], 128, 128, 8
    $region41: #{tpu_custom_call.1} parent=1 // pred_fallthru
      _
    // Predicated region
    $region42: #{tpu_custom_call.1} parent=1 // pred_check
      _
    $region43: #{tpu_custom_call.1} parent=1 // pred_check_branch
      %107 = sbr.rel (0) target = $region45
    $region44: #{tpu_custom_call.1} parent=1 // pred_region
      %109 = dma.done [#allocation3], 256
    $region45: #{tpu_custom_call.1} parent=1 // pred_fallthru
      _
    // Predicated region
    $region46: #{tpu_custom_call.1} parent=1 // pred_check
      _
    $region47: #{tpu_custom_call.1} parent=1 // pred_check_branch
      %111 = sbr.rel (0) target = $region49
    $region48: #{tpu_custom_call.1} parent=1 // pred_region
      %113 = dma.done [#allocation6], 256
    $region49: #{tpu_custom_call.1} parent=1 // pred_fallthru
      _
    // Predicated region
    $region50: #{tpu_custom_call.1} parent=1 // pred_check
      _
    $region51: #{tpu_custom_call.1} parent=1 // pred_check_branch
      %115 = sbr.rel (0) target = $region53
    $region52: #{tpu_custom_call.1} parent=1 // pred_region
      %117 = dma.done [#allocation6], 256
    $region53: #{tpu_custom_call.1} parent=1 // pred_fallthru
      _
    // Predicated region
    $region54: #{tpu_custom_call.1} parent=1 // pred_check
      _
    $region55: #{tpu_custom_call.1} parent=1 // pred_check_branch
      %119 = sbr.rel (0) target = $region57
    $region56: #{tpu_custom_call.1} parent=1 // pred_region
      %121 = dma.done [#allocation9], 256
    $region57: #{tpu_custom_call.1} parent=1 // pred_fallthru
      _
    // Predicated region
    $region58: #{tpu_custom_call.1} parent=1 // pred_check
      _
    $region59: #{tpu_custom_call.1} parent=1 // pred_check_branch
      %123 = sbr.rel (0) target = $region61
    $region60: #{tpu_custom_call.1} parent=1 // pred_region
      %125 = dma.done [#allocation9], 256
    $region61: #{tpu_custom_call.1} parent=1 // pred_fallthru
      _
    // Predicated region
    $region62: #{tpu_custom_call.1} parent=1 // pred_check
      _
    $region63: #{tpu_custom_call.1} parent=1 // pred_check_branch
      %127 = sbr.rel (0) target = $region65
    $region64: #{tpu_custom_call.1} parent=1 // pred_region
      %129 = dma.done [#allocation12], 256
    $region65: #{tpu_custom_call.1} parent=1 // pred_fallthru
      _
    %v131 = vld [vmem:[%s0] sm:$0xff]
    %v132 = vld [vmem:[%s0 + $0x8] sm:$0xff]
    %v133 = vld [vmem:[%s1] sm:$0xff]
    %v134 = vld [vmem:[%s1 + $0x8] sm:$0xff]
    %v135 = vld [vmem:[%s2] sm:$0xff]
    %v136 = vld [vmem:[%s2 + $0x8] sm:$0xff]
    %v137 = vld [vmem:[#allocation11] sm:$0x1]
    %v138 = vld [vmem:[#allocation11 + $0x1] sm:$0x1]
    %vm139 = vcmask 261120
    %v140 = vsel %vm139, %v131, 0.0
    %141 = vadd.xlane.f32.xlu0 %v140
    %v142 = vpop.xlane.xlu0 %141
    %v143 = vsel %vm139, %v132, 0.0
    %144 = vadd.xlane.f32.xlu0 %v143
    %v145 = vpop.xlane.xlu0 %144
    %v146 = vrcp.pop 32.0
    %v147 = vmul.f32 32.0, %v146
    %v148 = vsub.f32 1.0, %v147
    %v149 = vmul.f32 %v146, %v148
    %v150 = vadd.f32 %v146, %v149
    %vm151 = vweird.f32 %v146
    %v152 = vsel %vm151, %v146, %v150
    %v153 = vmul.f32 %v142, %v152
    %v154 = vmul.f32 %v145, %v152
    %v155 = vsub.f32 %v131, %v153
    %v156 = vsub.f32 %v132, %v154
    %v157 = vmul.f32 %v155, %v155
    %v158 = vmul.f32 %v156, %v156
    %v159 = vsel %vm139, %v157, 0.0
    %160 = vadd.xlane.f32.xlu0 %v159
    %v161 = vpop.xlane.xlu0 %160
    %v162 = vsel %vm139, %v158, 0.0
    %163 = vadd.xlane.f32.xlu0 %v162
    %v164 = vpop.xlane.xlu0 %163
    %v165 = vmul.f32 %v161, %v152
    %v166 = vmul.f32 %v164, %v152
    %v167 = vadd.f32 %v165, 1e-05
    %v168 = vadd.f32 %v166, 1e-05
    %v169 = vrsqrt.pop %v167
    %v170 = vmul.f32 %v169, %v167
    %v171 = vmul.f32 %v170, %v169
    %v172 = vmul.f32 0.5, %v171
    %v173 = vsub.f32 1.5, %v172
    %v174 = vmul.f32 %v169, %v173
    %vm175 = vweird.f32 %v167
    %vm176 = vweird.f32 %v169
    %vm177 = vmor %vm175, %vm176
    %v178 = vsel %vm177, %v169, %v174
    %v179 = vrsqrt.pop %v168
    %v180 = vmul.f32 %v179, %v168
    %v181 = vmul.f32 %v180, %v179
    %v182 = vmul.f32 0.5, %v181
    %v183 = vsub.f32 1.5, %v182
    %v184 = vmul.f32 %v179, %v183
    %vm185 = vweird.f32 %v168
    %vm186 = vweird.f32 %v179
    %vm187 = vmor %vm185, %vm186
    %v188 = vsel %vm187, %v179, %v184
    %v189 = vmul.f32 %v155, %v178
    %v190 = vmul.f32 %v156, %v188
    %v191 = vperm.slane %v137, 0
    %v192 = vmul.f32 %v189, %v191
    %v193 = vmul.f32 %v190, %v191
    %v194 = vperm.slane %v138, 0
    %v195 = vadd.f32 %v192, %v194
    %v196 = vadd.f32 %v193, %v194
    %v197 = vld [vmem:[#allocation11 + $0x2] sm:$0x1]
    %v198 = vld [vmem:[#allocation11 + $0x3] sm:$0x1]
    %v199 = vsel %vm139, %v133, 0.0
    %200 = vadd.xlane.f32.xlu0 %v199
    %v201 = vpop.xlane.xlu0 %200
    %v202 = vsel %vm139, %v134, 0.0
    %203 = vadd.xlane.f32.xlu0 %v202
    %v204 = vpop.xlane.xlu0 %203
    %v205 = vmul.f32 %v201, %v152
    %v206 = vmul.f32 %v204, %v152
    %v207 = vsub.f32 %v133, %v205
    %v208 = vsub.f32 %v134, %v206
    %v209 = vmul.f32 %v207, %v207
    %v210 = vmul.f32 %v208, %v208
    %v211 = vsel %vm139, %v209, 0.0
    %212 = vadd.xlane.f32.xlu0 %v211
    %v213 = vpop.xlane.xlu0 %212
    %v214 = vsel %vm139, %v210, 0.0
    %215 = vadd.xlane.f32.xlu0 %v214
    %v216 = vpop.xlane.xlu0 %215
    %v217 = vmul.f32 %v213, %v152
    %v218 = vmul.f32 %v216, %v152
    %v219 = vadd.f32 %v217, 1e-05
    %v220 = vadd.f32 %v218, 1e-05
    %v221 = vrsqrt.pop %v219
    %v222 = vmul.f32 %v221, %v219
    %v223 = vmul.f32 %v222, %v221
    %v224 = vmul.f32 0.5, %v223
    %v225 = vsub.f32 1.5, %v224
    %v226 = vmul.f32 %v221, %v225
    %vm227 = vweird.f32 %v219
    %vm228 = vweird.f32 %v221
    %vm229 = vmor %vm227, %vm228
    %v230 = vsel %vm229, %v221, %v226
    %v231 = vrsqrt.pop %v220
    %v232 = vmul.f32 %v231, %v220
    %v233 = vmul.f32 %v232, %v231
    %v234 = vmul.f32 0.5, %v233
    %v235 = vsub.f32 1.5, %v234
    %v236 = vmul.f32 %v231, %v235
    %vm237 = vweird.f32 %v220
    %vm238 = vweird.f32 %v231
    %vm239 = vmor %vm237, %vm238
    %v240 = vsel %vm239, %v231, %v236
    %v241 = vmul.f32 %v207, %v230
    %v242 = vmul.f32 %v208, %v240
    %v243 = vperm.slane %v197, 0
    %v244 = vmul.f32 %v241, %v243
    %v245 = vmul.f32 %v242, %v243
    %v246 = vperm.slane %v198, 0
    %v247 = vadd.f32 %v244, %v246
    %v248 = vadd.f32 %v245, %v246
    %v249 = vld [vmem:[#allocation11 + $0x4] sm:$0x1]
    %v250 = vld [vmem:[#allocation11 + $0x5] sm:$0x1]
    %v251 = vsel %vm139, %v135, 0.0
    %252 = vadd.xlane.f32.xlu0 %v251
    %v253 = vpop.xlane.xlu0 %252
    %v254 = vsel %vm139, %v136, 0.0
    %255 = vadd.xlane.f32.xlu0 %v254
    %v256 = vpop.xlane.xlu0 %255
    %v257 = vmul.f32 %v253, %v152
    %v258 = vmul.f32 %v256, %v152
    %v259 = vsub.f32 %v135, %v257
    %v260 = vsub.f32 %v136, %v258
    %v261 = vmul.f32 %v259, %v259
    %v262 = vmul.f32 %v260, %v260
    %v263 = vsel %vm139, %v261, 0.0
    %264 = vadd.xlane.f32.xlu0 %v263
    %v265 = vpop.xlane.xlu0 %264
    %v266 = vsel %vm139, %v262, 0.0
    %267 = vadd.xlane.f32.xlu0 %v266
    %v268 = vpop.xlane.xlu0 %267
    %v269 = vmul.f32 %v265, %v152
    %v270 = vmul.f32 %v268, %v152
    %v271 = vadd.f32 %v269, 1e-05
    %v272 = vadd.f32 %v270, 1e-05
    %v273 = vrsqrt.pop %v271
    %v274 = vmul.f32 %v273, %v271
    %v275 = vmul.f32 %v274, %v273
    %v276 = vmul.f32 0.5, %v275
    %v277 = vsub.f32 1.5, %v276
    %v278 = vmul.f32 %v273, %v277
    %vm279 = vweird.f32 %v271
    %vm280 = vweird.f32 %v273
    %vm281 = vmor %vm279, %vm280
    %v282 = vsel %vm281, %v273, %v278
    %v283 = vrsqrt.pop %v272
    %v284 = vmul.f32 %v283, %v272
    %v285 = vmul.f32 %v284, %v283
    %v286 = vmul.f32 0.5, %v285
    %v287 = vsub.f32 1.5, %v286
    %v288 = vmul.f32 %v283, %v287
    %vm289 = vweird.f32 %v272
    %vm290 = vweird.f32 %v283
    %vm291 = vmor %vm289, %vm290
    %v292 = vsel %vm291, %v283, %v288
    %v293 = vmul.f32 %v259, %v282
    %v294 = vmul.f32 %v260, %v292
    %v295 = vperm.slane %v249, 0
    %v296 = vmul.f32 %v293, %v295
    %v297 = vmul.f32 %v294, %v295
    %v298 = vperm.slane %v250, 0
    %v299 = vadd.f32 %v296, %v298
    %v300 = vadd.f32 %v297, %v298
    %v301 = vpack.c.bf16 %v196, %v195
    %v302 = vld [vmem:[#allocation2] sm:$0xf]
    %v303 = vld [vmem:[#allocation2 + $0x4] sm:$0xf]
    %v304 = vld [vmem:[#allocation2 + $0x8] sm:$0xf]
    %v305 = vld [vmem:[#allocation2 + $0xc] sm:$0xf]
    %v306 = vld [vmem:[#allocation11 + $0x8] sm:$0x1]
    %v307 = vperm.slane %v306, 0
    %v312 = vunpack.c.l.b16 %v302
    %v313 = vunpack.c.l.b16 %v303
    %v314 = vunpack.c.l.b16 %v304
    %v315 = vunpack.c.l.b16 %v305
    %v316 = vpack.c.b16 %v313, %v312
    %v317 = vpack.c.b16 %v315, %v314
    %v321 = vsel %vm139, %v301, 0
    %323 = vmatpush.bf16.msra.mxu0 0
    %324 = vmatpush.bf16.msra.mxu0 0
    %325 = vmatpush.bf16.msra.mxu0 0
    %326 = vmatpush.bf16.msra.mxu0 0
    %327 = vmatpush.bf16.msra.mxu0 0
    %328 = vmatpush.bf16.msra.mxu0 0
    %329 = vmatpush.bf16.msra.mxu0 %v317
    %330 = vmatpush.bf16.msra.mxu0 %v316
    %331 = vmatmul.bf16.gmra.mxu0 %v321
    %v332 = vpop.f32.mrf.mxu0
    %v333 = vadd.f32 %v307, %v332
    %v334 = vpop.f32.mrf.mxu0
    %v335 = vadd.f32 %v307, %v334
    %336 = vdwg.mxu0
    %v337 = vpack.c.bf16 %v248, %v247
    %v338 = vld [vmem:[#allocation5] sm:$0xf]
    %v339 = vld [vmem:[#allocation5 + $0x4] sm:$0xf]
    %v340 = vld [vmem:[#allocation5 + $0x8] sm:$0xf]
    %v341 = vld [vmem:[#allocation5 + $0xc] sm:$0xf]
    %v342 = vld [vmem:[#allocation11 + $0x9] sm:$0x1]
    %v343 = vperm.slane %v342, 0
    %v348 = vunpack.c.l.b16 %v338
    %v349 = vunpack.c.l.b16 %v339
    %v350 = vunpack.c.l.b16 %v340
    %v351 = vunpack.c.l.b16 %v341
    %v352 = vpack.c.b16 %v349, %v348
    %v353 = vpack.c.b16 %v351, %v350
    %v357 = vsel %vm139, %v337, 0
    %359 = vmatpush.bf16.msra.mxu0 0
    %360 = vmatpush.bf16.msra.mxu0 0
    %361 = vmatpush.bf16.msra.mxu0 0
    %362 = vmatpush.bf16.msra.mxu0 0
    %363 = vmatpush.bf16.msra.mxu0 0
    %364 = vmatpush.bf16.msra.mxu0 0
    %365 = vmatpush.bf16.msra.mxu0 %v353
    %366 = vmatpush.bf16.msra.mxu0 %v352
    %367 = vmatmul.bf16.gmra.mxu0 %v357
    %v368 = vpop.f32.mrf.mxu0
    %v369 = vadd.f32 %v343, %v368
    %v370 = vpop.f32.mrf.mxu0
    %v371 = vadd.f32 %v343, %v370
    %372 = vdwg.mxu0
    %v373 = vpack.c.bf16 %v300, %v299
    %v374 = vld [vmem:[#allocation7] sm:$0xf]
    %v375 = vld [vmem:[#allocation7 + $0x4] sm:$0xf]
    %v376 = vld [vmem:[#allocation7 + $0x8] sm:$0xf]
    %v377 = vld [vmem:[#allocation7 + $0xc] sm:$0xf]
    %v378 = vld [vmem:[#allocation11 + $0xa] sm:$0x1]
    %v379 = vperm.slane %v378, 0
    %v384 = vunpack.c.l.b16 %v374
    %v385 = vunpack.c.l.b16 %v375
    %v386 = vunpack.c.l.b16 %v376
    %v387 = vunpack.c.l.b16 %v377
    %v388 = vpack.c.b16 %v385, %v384
    %v389 = vpack.c.b16 %v387, %v386
    %v393 = vsel %vm139, %v373, 0
    %395 = vmatpush.bf16.msra.mxu0 0
    %396 = vmatpush.bf16.msra.mxu0 0
    %397 = vmatpush.bf16.msra.mxu0 0
    %398 = vmatpush.bf16.msra.mxu0 0
    %399 = vmatpush.bf16.msra.mxu0 0
    %400 = vmatpush.bf16.msra.mxu0 0
    %401 = vmatpush.bf16.msra.mxu0 %v389
    %402 = vmatpush.bf16.msra.mxu0 %v388
    %403 = vmatmul.bf16.gmra.mxu0 %v393
    %v404 = vpop.f32.mrf.mxu0
    %v405 = vadd.f32 %v379, %v404
    %v406 = vpop.f32.mrf.mxu0
    %v407 = vadd.f32 %v379, %v406
    %408 = vdwg.mxu0
    %v411 = vrot.slane %v333, 1
    %v412 = vrot.slane %v333, 2
    %v413 = vrot.slane %v333, 3
    %v414 = vrot.slane %v333, 4
    %v415 = vrot.slane %v333, 5
    %v416 = vrot.slane %v333, 6
    %v417 = vrot.slane %v333, 7
    %v418 = vrot.slane %v335, 1
    %v419 = vrot.slane %v335, 2
    %v420 = vrot.slane %v335, 3
    %v421 = vrot.slane %v335, 4
    %v422 = vrot.slane %v335, 5
    %v423 = vrot.slane %v335, 6
    %v424 = vrot.slane %v335, 7
    %v425 = vperm.slane %v333, 0
    %v426 = vperm.slane %v411, 0
    %v427 = vperm.slane %v412, 0
    %v428 = vperm.slane %v413, 0
    %v429 = vperm.slane %v414, 0
    %v430 = vperm.slane %v415, 0
    %v431 = vperm.slane %v416, 0
    %v432 = vperm.slane %v417, 0
    %v433 = vperm.slane %v335, 0
    %v434 = vperm.slane %v418, 0
    %v435 = vperm.slane %v419, 0
    %v436 = vperm.slane %v420, 0
    %v437 = vperm.slane %v421, 0
    %v438 = vperm.slane %v422, 0
    %v439 = vperm.slane %v423, 0
    %v440 = vperm.slane %v424, 0
    %v457 = vmul.f32 %v425, %v369
    %v458 = vmul.f32 %v426, %v369
    %v459 = vmul.f32 %v427, %v369
    %v460 = vmul.f32 %v428, %v369
    %v461 = vmul.f32 %v429, %v369
    %v462 = vmul.f32 %v430, %v369
    %v463 = vmul.f32 %v431, %v369
    %v464 = vmul.f32 %v432, %v369
    %v465 = vmul.f32 %v433, %v371
    %v466 = vmul.f32 %v434, %v371
    %v467 = vmul.f32 %v435, %v371
    %v468 = vmul.f32 %v436, %v371
    %v469 = vmul.f32 %v437, %v371
    %v470 = vmul.f32 %v438, %v371
    %v471 = vmul.f32 %v439, %v371
    %v472 = vmul.f32 %v440, %v371
    %vm473 = vcmask 64512
    %v474 = vsel %vm473, %v457, 0.0
    %475 = vadd.xlane.f32.xlu0 %v474
    %v476 = vpop.xlane.xlu0 %475
    %v477 = vsel %vm473, %v458, 0.0
    %478 = vadd.xlane.f32.xlu0 %v477
    %v479 = vpop.xlane.xlu0 %478
    %v480 = vsel %vm473, %v459, 0.0
    %481 = vadd.xlane.f32.xlu0 %v480
    %v482 = vpop.xlane.xlu0 %481
    %v483 = vsel %vm473, %v460, 0.0
    %484 = vadd.xlane.f32.xlu0 %v483
    %v485 = vpop.xlane.xlu0 %484
    %v486 = vsel %vm473, %v461, 0.0
    %487 = vadd.xlane.f32.xlu0 %v486
    %v488 = vpop.xlane.xlu0 %487
    %v489 = vsel %vm473, %v462, 0.0
    %490 = vadd.xlane.f32.xlu0 %v489
    %v491 = vpop.xlane.xlu0 %490
    %v492 = vsel %vm473, %v463, 0.0
    %493 = vadd.xlane.f32.xlu0 %v492
    %v494 = vpop.xlane.xlu0 %493
    %v495 = vsel %vm473, %v464, 0.0
    %496 = vadd.xlane.f32.xlu0 %v495
    %v497 = vpop.xlane.xlu0 %496
    %v498 = vsel %vm473, %v465, 0.0
    %499 = vadd.xlane.f32.xlu0 %v498
    %v500 = vpop.xlane.xlu0 %499
    %v501 = vsel %vm473, %v466, 0.0
    %502 = vadd.xlane.f32.xlu0 %v501
    %v503 = vpop.xlane.xlu0 %502
    %v504 = vsel %vm473, %v467, 0.0
    %505 = vadd.xlane.f32.xlu0 %v504
    %v506 = vpop.xlane.xlu0 %505
    %v507 = vsel %vm473, %v468, 0.0
    %508 = vadd.xlane.f32.xlu0 %v507
    %v509 = vpop.xlane.xlu0 %508
    %v510 = vsel %vm473, %v469, 0.0
    %511 = vadd.xlane.f32.xlu0 %v510
    %v512 = vpop.xlane.xlu0 %511
    %v513 = vsel %vm473, %v470, 0.0
    %514 = vadd.xlane.f32.xlu0 %v513
    %v515 = vpop.xlane.xlu0 %514
    %v516 = vsel %vm473, %v471, 0.0
    %517 = vadd.xlane.f32.xlu0 %v516
    %v518 = vpop.xlane.xlu0 %517
    %v519 = vsel %vm473, %v472, 0.0
    %520 = vadd.xlane.f32.xlu0 %v519
    %v521 = vpop.xlane.xlu0 %520
    %v522 = vmul.f32 %v476, 0.35355338
    %v523 = vmul.f32 %v479, 0.35355338
    %v524 = vmul.f32 %v482, 0.35355338
    %v525 = vmul.f32 %v485, 0.35355338
    %v526 = vmul.f32 %v488, 0.35355338
    %v527 = vmul.f32 %v491, 0.35355338
    %v528 = vmul.f32 %v494, 0.35355338
    %v529 = vmul.f32 %v497, 0.35355338
    %v530 = vmul.f32 %v500, 0.35355338
    %v531 = vmul.f32 %v503, 0.35355338
    %v532 = vmul.f32 %v506, 0.35355338
    %v533 = vmul.f32 %v509, 0.35355338
    %v534 = vmul.f32 %v512, 0.35355338
    %v535 = vmul.f32 %v515, 0.35355338
    %v536 = vmul.f32 %v518, 0.35355338
    %v537 = vmul.f32 %v521, 0.35355338
    %v554 = vlaneseq
    %v555 = vand.u32 %v554, 127
    %v556 = vperm.slane %v522, %v555
    %v557 = vperm.slane %v523, %v555
    %v558 = vperm.slane %v524, %v555
    %v559 = vperm.slane %v525, %v555
    %v560 = vperm.slane %v526, %v555
    %v561 = vperm.slane %v527, %v555
    %v562 = vperm.slane %v528, %v555
    %v563 = vperm.slane %v529, %v555
    %v564 = vperm.slane %v530, %v555
    %v565 = vperm.slane %v531, %v555
    %v566 = vperm.slane %v532, %v555
    %v567 = vperm.slane %v533, %v555
    %v568 = vperm.slane %v534, %v555
    %v569 = vperm.slane %v535, %v555
    %v570 = vperm.slane %v536, %v555
    %v571 = vperm.slane %v537, %v555
    %vm572 = vcmask 1041409
    %v573 = vsel %vm572, %v557, %v556
    %vm574 = vcmask 1042434
    %v575 = vsel %vm574, %v558, %v573
    %vm576 = vcmask 1043459
    %v577 = vsel %vm576, %v559, %v575
    %vm578 = vcmask 1044484
    %v579 = vsel %vm578, %v560, %v577
    %vm580 = vcmask 1045509
    %v581 = vsel %vm580, %v561, %v579
    %vm582 = vcmask 1046534
    %v583 = vsel %vm582, %v562, %v581
    %vm584 = vcmask 1047559
    %v585 = vsel %vm584, %v563, %v583
    %v586 = vsel %vm572, %v565, %v564
    %v587 = vsel %vm574, %v566, %v586
    %v588 = vsel %vm576, %v567, %v587
    %v589 = vsel %vm578, %v568, %v588
    %v590 = vsel %vm580, %v569, %v589
    %v591 = vsel %vm582, %v570, %v590
    %v592 = vsel %vm584, %v571, %v591
    %v595 = vsel %vm473, %v585, -inf
    %596 = vmax.xlane.f32.xlu0 %v595
    %v597 = vpop.xlane.xlu0 %596
    %v598 = vsel %vm473, %v592, -inf
    %599 = vmax.xlane.f32.xlu0 %v598
    %v600 = vpop.xlane.xlu0 %599
    %v603 = vperm.slane %v597, 0
    %v604 = vperm.slane %v597, 1
    %v605 = vperm.slane %v597, 2
    %v606 = vperm.slane %v597, 3
    %v607 = vperm.slane %v597, 4
    %v608 = vperm.slane %v597, 5
    %v609 = vperm.slane %v597, 6
    %v610 = vperm.slane %v597, 7
    %v611 = vperm.slane %v600, 0
    %v612 = vperm.slane %v600, 1
    %v613 = vperm.slane %v600, 2
    %v614 = vperm.slane %v600, 3
    %v615 = vperm.slane %v600, 4
    %v616 = vperm.slane %v600, 5
    %v617 = vperm.slane %v600, 6
    %v618 = vperm.slane %v600, 7
    %v635 = vsub.f32 %v522, %v603
    %v636 = vsub.f32 %v523, %v604
    %v637 = vsub.f32 %v524, %v605
    %v638 = vsub.f32 %v525, %v606
    %v639 = vsub.f32 %v526, %v607
    %v640 = vsub.f32 %v527, %v608
    %v641 = vsub.f32 %v528, %v609
    %v642 = vsub.f32 %v529, %v610
    %v643 = vsub.f32 %v530, %v611
    %v644 = vsub.f32 %v531, %v612
    %v645 = vsub.f32 %v532, %v613
    %v646 = vsub.f32 %v533, %v614
    %v647 = vsub.f32 %v534, %v615
    %v648 = vsub.f32 %v535, %v616
    %v649 = vsub.f32 %v536, %v617
    %v650 = vsub.f32 %v537, %v618
    %v651 = vmul.f32 %v635, 1.442695
    %v652 = vpow.pop %v651
    %v653 = vmul.f32 %v636, 1.442695
    %v654 = vpow.pop %v653
    %v655 = vmul.f32 %v637, 1.442695
    %v656 = vpow.pop %v655
    %v657 = vmul.f32 %v638, 1.442695
    %v658 = vpow.pop %v657
    %v659 = vmul.f32 %v639, 1.442695
    %v660 = vpow.pop %v659
    %v661 = vmul.f32 %v640, 1.442695
    %v662 = vpow.pop %v661
    %v663 = vmul.f32 %v641, 1.442695
    %v664 = vpow.pop %v663
    %v665 = vmul.f32 %v642, 1.442695
    %v666 = vpow.pop %v665
    %v667 = vmul.f32 %v643, 1.442695
    %v668 = vpow.pop %v667
    %v669 = vmul.f32 %v644, 1.442695
    %v670 = vpow.pop %v669
    %v671 = vmul.f32 %v645, 1.442695
    %v672 = vpow.pop %v671
    %v673 = vmul.f32 %v646, 1.442695
    %v674 = vpow.pop %v673
    %v675 = vmul.f32 %v647, 1.442695
    %v676 = vpow.pop %v675
    %v677 = vmul.f32 %v648, 1.442695
    %v678 = vpow.pop %v677
    %v679 = vmul.f32 %v649, 1.442695
    %v680 = vpow.pop %v679
    %v681 = vmul.f32 %v650, 1.442695
    %v682 = vpow.pop %v681
    %699 = vset.pattern.permute.xlu0 0
    %700 = vperm.xlu0 %699, %v652
    %v701 = vpop.permute.xlu0 %700
    %702 = vset.pattern.permute.xlu0 0
    %703 = vperm.xlu0 %702, %v654
    %v704 = vpop.permute.xlu0 %703
    %705 = vset.pattern.permute.xlu0 0
    %706 = vperm.xlu0 %705, %v656
    %v707 = vpop.permute.xlu0 %706
    %708 = vset.pattern.permute.xlu0 0
    %709 = vperm.xlu0 %708, %v658
    %v710 = vpop.permute.xlu0 %709
    %711 = vset.pattern.permute.xlu0 0
    %712 = vperm.xlu0 %711, %v660
    %v713 = vpop.permute.xlu0 %712
    %714 = vset.pattern.permute.xlu0 0
    %715 = vperm.xlu0 %714, %v662
    %v716 = vpop.permute.xlu0 %715
    %717 = vset.pattern.permute.xlu0 0
    %718 = vperm.xlu0 %717, %v664
    %v719 = vpop.permute.xlu0 %718
    %720 = vset.pattern.permute.xlu0 0
    %721 = vperm.xlu0 %720, %v666
    %v722 = vpop.permute.xlu0 %721
    %723 = vset.pattern.permute.xlu0 0
    %724 = vperm.xlu0 %723, %v668
    %v725 = vpop.permute.xlu0 %724
    %726 = vset.pattern.permute.xlu0 0
    %727 = vperm.xlu0 %726, %v670
    %v728 = vpop.permute.xlu0 %727
    %729 = vset.pattern.permute.xlu0 0
    %730 = vperm.xlu0 %729, %v672
    %v731 = vpop.permute.xlu0 %730
    %732 = vset.pattern.permute.xlu0 0
    %733 = vperm.xlu0 %732, %v674
    %v734 = vpop.permute.xlu0 %733
    %735 = vset.pattern.permute.xlu0 0
    %736 = vperm.xlu0 %735, %v676
    %v737 = vpop.permute.xlu0 %736
    %738 = vset.pattern.permute.xlu0 0
    %739 = vperm.xlu0 %738, %v678
    %v740 = vpop.permute.xlu0 %739
    %741 = vset.pattern.permute.xlu0 0
    %742 = vperm.xlu0 %741, %v680
    %v743 = vpop.permute.xlu0 %742
    %744 = vset.pattern.permute.xlu0 0
    %745 = vperm.xlu0 %744, %v682
    %v746 = vpop.permute.xlu0 %745
    %v747 = vperm.slane %v701, %v555
    %v748 = vperm.slane %v704, %v555
    %v749 = vperm.slane %v707, %v555
    %v750 = vperm.slane %v710, %v555
    %v751 = vperm.slane %v713, %v555
    %v752 = vperm.slane %v716, %v555
    %v753 = vperm.slane %v719, %v555
    %v754 = vperm.slane %v722, %v555
    %v755 = vperm.slane %v725, %v555
    %v756 = vperm.slane %v728, %v555
    %v757 = vperm.slane %v731, %v555
    %v758 = vperm.slane %v734, %v555
    %v759 = vperm.slane %v737, %v555
    %v760 = vperm.slane %v740, %v555
    %v761 = vperm.slane %v743, %v555
    %v762 = vperm.slane %v746, %v555
    %v763 = vsel %vm572, %v748, %v747
    %v764 = vsel %vm574, %v749, %v763
    %v765 = vsel %vm576, %v750, %v764
    %v766 = vsel %vm578, %v751, %v765
    %v767 = vsel %vm580, %v752, %v766
    %v768 = vsel %vm582, %v753, %v767
    %v769 = vsel %vm584, %v754, %v768
    %v770 = vsel %vm572, %v756, %v755
    %v771 = vsel %vm574, %v757, %v770
    %v772 = vsel %vm576, %v758, %v771
    %v773 = vsel %vm578, %v759, %v772
    %v774 = vsel %vm580, %v760, %v773
    %v775 = vsel %vm582, %v761, %v774
    %v776 = vsel %vm584, %v762, %v775
    %v779 = vsel %vm473, %v769, 0.0
    %780 = vadd.xlane.f32.xlu0 %v779
    %v781 = vpop.xlane.xlu0 %780
    %v782 = vsel %vm473, %v776, 0.0
    %783 = vadd.xlane.f32.xlu0 %v782
    %v784 = vpop.xlane.xlu0 %783
    %v785 = vrcp.pop %v781
    %v786 = vrcp.pop %v784
    %v789 = vperm.slane %v785, 0
    %v790 = vperm.slane %v785, 1
    %v791 = vperm.slane %v785, 2
    %v792 = vperm.slane %v785, 3
    %v793 = vperm.slane %v785, 4
    %v794 = vperm.slane %v785, 5
    %v795 = vperm.slane %v785, 6
    %v796 = vperm.slane %v785, 7
    %v797 = vperm.slane %v786, 0
    %v798 = vperm.slane %v786, 1
    %v799 = vperm.slane %v786, 2
    %v800 = vperm.slane %v786, 3
    %v801 = vperm.slane %v786, 4
    %v802 = vperm.slane %v786, 5
    %v803 = vperm.slane %v786, 6
    %v804 = vperm.slane %v786, 7
    %v821 = vmul.f32 %v652, %v789
    %v822 = vmul.f32 %v654, %v790
    %v823 = vmul.f32 %v656, %v791
    %v824 = vmul.f32 %v658, %v792
    %v825 = vmul.f32 %v660, %v793
    %v826 = vmul.f32 %v662, %v794
    %v827 = vmul.f32 %v664, %v795
    %v828 = vmul.f32 %v666, %v796
    %v829 = vmul.f32 %v668, %v797
    %v830 = vmul.f32 %v670, %v798
    %v831 = vmul.f32 %v672, %v799
    %v832 = vmul.f32 %v674, %v800
    %v833 = vmul.f32 %v676, %v801
    %v834 = vmul.f32 %v678, %v802
    %v835 = vmul.f32 %v680, %v803
    %v836 = vmul.f32 %v682, %v804
    %838 = vset.pattern.permute.xlu0 0
    %839 = vperm.xlu0 %838, %v821
    %v840 = vpop.permute.xlu0 %839
    %843 = vset.pattern.permute.xlu0 0
    %844 = vperm.xlu0 %843, %v822
    %v845 = vpop.permute.xlu0 %844
    %848 = vset.pattern.permute.xlu0 0
    %849 = vperm.xlu0 %848, %v823
    %v850 = vpop.permute.xlu0 %849
    %853 = vset.pattern.permute.xlu0 0
    %854 = vperm.xlu0 %853, %v824
    %v855 = vpop.permute.xlu0 %854
    %858 = vset.pattern.permute.xlu0 0
    %859 = vperm.xlu0 %858, %v825
    %v860 = vpop.permute.xlu0 %859
    %863 = vset.pattern.permute.xlu0 0
    %864 = vperm.xlu0 %863, %v826
    %v865 = vpop.permute.xlu0 %864
    %868 = vset.pattern.permute.xlu0 0
    %869 = vperm.xlu0 %868, %v827
    %v870 = vpop.permute.xlu0 %869
    %873 = vset.pattern.permute.xlu0 0
    %874 = vperm.xlu0 %873, %v828
    %v875 = vpop.permute.xlu0 %874
    %878 = vset.pattern.permute.xlu0 0
    %879 = vperm.xlu0 %878, %v829
    %v880 = vpop.permute.xlu0 %879
    %883 = vset.pattern.permute.xlu0 0
    %884 = vperm.xlu0 %883, %v830
    %v885 = vpop.permute.xlu0 %884
    %888 = vset.pattern.permute.xlu0 0
    %889 = vperm.xlu0 %888, %v831
    %v890 = vpop.permute.xlu0 %889
    %893 = vset.pattern.permute.xlu0 0
    %894 = vperm.xlu0 %893, %v832
    %v895 = vpop.permute.xlu0 %894
    %898 = vset.pattern.permute.xlu0 0
    %899 = vperm.xlu0 %898, %v833
    %v900 = vpop.permute.xlu0 %899
    %903 = vset.pattern.permute.xlu0 0
    %904 = vperm.xlu0 %903, %v834
    %v905 = vpop.permute.xlu0 %904
    %908 = vset.pattern.permute.xlu0 0
    %909 = vperm.xlu0 %908, %v835
    %v910 = vpop.permute.xlu0 %909
    %913 = vset.pattern.permute.xlu0 0
    %914 = vperm.xlu0 %913, %v836
    %v915 = vpop.permute.xlu0 %914
    %v917 = vmul.f32 %v840, %v405
    %v918 = vmul.f32 %v845, %v405
    %v919 = vmul.f32 %v850, %v405
    %v920 = vmul.f32 %v855, %v405
    %v921 = vmul.f32 %v860, %v405
    %v922 = vmul.f32 %v865, %v405
    %v923 = vmul.f32 %v870, %v405
    %v924 = vmul.f32 %v875, %v405
    %v925 = vmul.f32 %v880, %v407
    %v926 = vmul.f32 %v885, %v407
    %v927 = vmul.f32 %v890, %v407
    %v928 = vmul.f32 %v895, %v407
    %v929 = vmul.f32 %v900, %v407
    %v930 = vmul.f32 %v905, %v407
    %v931 = vmul.f32 %v910, %v407
    %v932 = vmul.f32 %v915, %v407
    %v933 = vsel %vm473, %v917, 0.0
    %v934 = vrot.slane %v933, 4
    %v935 = vadd.f32 %v933, %v934
    %v936 = vrot.slane %v935, 2
    %v937 = vadd.f32 %v935, %v936
    %v938 = vrot.slane %v937, 1
    %v939 = vadd.f32 %v937, %v938
    %v940 = vsel %vm473, %v918, 0.0
    %v941 = vrot.slane %v940, 4
    %v942 = vadd.f32 %v940, %v941
    %v943 = vrot.slane %v942, 2
    %v944 = vadd.f32 %v942, %v943
    %v945 = vrot.slane %v944, 1
    %v946 = vadd.f32 %v944, %v945
    %v947 = vsel %vm473, %v919, 0.0
    %v948 = vrot.slane %v947, 4
    %v949 = vadd.f32 %v947, %v948
    %v950 = vrot.slane %v949, 2
    %v951 = vadd.f32 %v949, %v950
    %v952 = vrot.slane %v951, 1
    %v953 = vadd.f32 %v951, %v952
    %v954 = vsel %vm473, %v920, 0.0
    %v955 = vrot.slane %v954, 4
    %v956 = vadd.f32 %v954, %v955
    %v957 = vrot.slane %v956, 2
    %v958 = vadd.f32 %v956, %v957
    %v959 = vrot.slane %v958, 1
    %v960 = vadd.f32 %v958, %v959
    %v961 = vsel %vm473, %v921, 0.0
    %v962 = vrot.slane %v961, 4
    %v963 = vadd.f32 %v961, %v962
    %v964 = vrot.slane %v963, 2
    %v965 = vadd.f32 %v963, %v964
    %v966 = vrot.slane %v965, 1
    %v967 = vadd.f32 %v965, %v966
    %v968 = vsel %vm473, %v922, 0.0
    %v969 = vrot.slane %v968, 4
    %v970 = vadd.f32 %v968, %v969
    %v971 = vrot.slane %v970, 2
    %v972 = vadd.f32 %v970, %v971
    %v973 = vrot.slane %v972, 1
    %v974 = vadd.f32 %v972, %v973
    %v975 = vsel %vm473, %v923, 0.0
    %v976 = vrot.slane %v975, 4
    %v977 = vadd.f32 %v975, %v976
    %v978 = vrot.slane %v977, 2
    %v979 = vadd.f32 %v977, %v978
    %v980 = vrot.slane %v979, 1
    %v981 = vadd.f32 %v979, %v980
    %v982 = vsel %vm473, %v924, 0.0
    %v983 = vrot.slane %v982, 4
    %v984 = vadd.f32 %v982, %v983
    %v985 = vrot.slane %v984, 2
    %v986 = vadd.f32 %v984, %v985
    %v987 = vrot.slane %v986, 1
    %v988 = vadd.f32 %v986, %v987
    %v989 = vsel %vm473, %v925, 0.0
    %v990 = vrot.slane %v989, 4
    %v991 = vadd.f32 %v989, %v990
    %v992 = vrot.slane %v991, 2
    %v993 = vadd.f32 %v991, %v992
    %v994 = vrot.slane %v993, 1
    %v995 = vadd.f32 %v993, %v994
    %v996 = vsel %vm473, %v926, 0.0
    %v997 = vrot.slane %v996, 4
    %v998 = vadd.f32 %v996, %v997
    %v999 = vrot.slane %v998, 2
    %v1000 = vadd.f32 %v998, %v999
    %v1001 = vrot.slane %v1000, 1
    %v1002 = vadd.f32 %v1000, %v1001
    %v1003 = vsel %vm473, %v927, 0.0
    %v1004 = vrot.slane %v1003, 4
    %v1005 = vadd.f32 %v1003, %v1004
    %v1006 = vrot.slane %v1005, 2
    %v1007 = vadd.f32 %v1005, %v1006
    %v1008 = vrot.slane %v1007, 1
    %v1009 = vadd.f32 %v1007, %v1008
    %v1010 = vsel %vm473, %v928, 0.0
    %v1011 = vrot.slane %v1010, 4
    %v1012 = vadd.f32 %v1010, %v1011
    %v1013 = vrot.slane %v1012, 2
    %v1014 = vadd.f32 %v1012, %v1013
    %v1015 = vrot.slane %v1014, 1
    %v1016 = vadd.f32 %v1014, %v1015
    %v1017 = vsel %vm473, %v929, 0.0
    %v1018 = vrot.slane %v1017, 4
    %v1019 = vadd.f32 %v1017, %v1018
    %v1020 = vrot.slane %v1019, 2
    %v1021 = vadd.f32 %v1019, %v1020
    %v1022 = vrot.slane %v1021, 1
    %v1023 = vadd.f32 %v1021, %v1022
    %v1024 = vsel %vm473, %v930, 0.0
    %v1025 = vrot.slane %v1024, 4
    %v1026 = vadd.f32 %v1024, %v1025
    %v1027 = vrot.slane %v1026, 2
    %v1028 = vadd.f32 %v1026, %v1027
    %v1029 = vrot.slane %v1028, 1
    %v1030 = vadd.f32 %v1028, %v1029
    %v1031 = vsel %vm473, %v931, 0.0
    %v1032 = vrot.slane %v1031, 4
    %v1033 = vadd.f32 %v1031, %v1032
    %v1034 = vrot.slane %v1033, 2
    %v1035 = vadd.f32 %v1033, %v1034
    %v1036 = vrot.slane %v1035, 1
    %v1037 = vadd.f32 %v1035, %v1036
    %v1038 = vsel %vm473, %v932, 0.0
    %v1039 = vrot.slane %v1038, 4
    %v1040 = vadd.f32 %v1038, %v1039
    %v1041 = vrot.slane %v1040, 2
    %v1042 = vadd.f32 %v1040, %v1041
    %v1043 = vrot.slane %v1042, 1
    %v1044 = vadd.f32 %v1042, %v1043
    %1061 = vrot.lane.b32.xlu0 %v457, 120
    %v1062 = vpop.permute.xlu0 %1061
    %1063 = vrot.lane.b32.xlu0 %v458, 120
    %v1064 = vpop.permute.xlu0 %1063
    %1065 = vrot.lane.b32.xlu0 %v459, 120
    %v1066 = vpop.permute.xlu0 %1065
    %1067 = vrot.lane.b32.xlu0 %v460, 120
    %v1068 = vpop.permute.xlu0 %1067
    %1069 = vrot.lane.b32.xlu0 %v461, 120
    %v1070 = vpop.permute.xlu0 %1069
    %1071 = vrot.lane.b32.xlu0 %v462, 120
    %v1072 = vpop.permute.xlu0 %1071
    %1073 = vrot.lane.b32.xlu0 %v463, 120
    %v1074 = vpop.permute.xlu0 %1073
    %1075 = vrot.lane.b32.xlu0 %v464, 120
    %v1076 = vpop.permute.xlu0 %1075
    %1077 = vrot.lane.b32.xlu0 %v465, 120
    %v1078 = vpop.permute.xlu0 %1077
    %1079 = vrot.lane.b32.xlu0 %v466, 120
    %v1080 = vpop.permute.xlu0 %1079
    %1081 = vrot.lane.b32.xlu0 %v467, 120
    %v1082 = vpop.permute.xlu0 %1081
    %1083 = vrot.lane.b32.xlu0 %v468, 120
    %v1084 = vpop.permute.xlu0 %1083
    %1085 = vrot.lane.b32.xlu0 %v469, 120
    %v1086 = vpop.permute.xlu0 %1085
    %1087 = vrot.lane.b32.xlu0 %v470, 120
    %v1088 = vpop.permute.xlu0 %1087
    %1089 = vrot.lane.b32.xlu0 %v471, 120
    %v1090 = vpop.permute.xlu0 %1089
    %1091 = vrot.lane.b32.xlu0 %v472, 120
    %v1092 = vpop.permute.xlu0 %1091
    %v1109 = vsel %vm473, %v1062, 0.0
    %1110 = vadd.xlane.f32.xlu0 %v1109
    %v1111 = vpop.xlane.xlu0 %1110
    %v1112 = vsel %vm473, %v1064, 0.0
    %1113 = vadd.xlane.f32.xlu0 %v1112
    %v1114 = vpop.xlane.xlu0 %1113
    %v1115 = vsel %vm473, %v1066, 0.0
    %1116 = vadd.xlane.f32.xlu0 %v1115
    %v1117 = vpop.xlane.xlu0 %1116
    %v1118 = vsel %vm473, %v1068, 0.0
    %1119 = vadd.xlane.f32.xlu0 %v1118
    %v1120 = vpop.xlane.xlu0 %1119
    %v1121 = vsel %vm473, %v1070, 0.0
    %1122 = vadd.xlane.f32.xlu0 %v1121
    %v1123 = vpop.xlane.xlu0 %1122
    %v1124 = vsel %vm473, %v1072, 0.0
    %1125 = vadd.xlane.f32.xlu0 %v1124
    %v1126 = vpop.xlane.xlu0 %1125
    %v1127 = vsel %vm473, %v1074, 0.0
    %1128 = vadd.xlane.f32.xlu0 %v1127
    %v1129 = vpop.xlane.xlu0 %1128
    %v1130 = vsel %vm473, %v1076, 0.0
    %1131 = vadd.xlane.f32.xlu0 %v1130
    %v1132 = vpop.xlane.xlu0 %1131
    %v1133 = vsel %vm473, %v1078, 0.0
    %1134 = vadd.xlane.f32.xlu0 %v1133
    %v1135 = vpop.xlane.xlu0 %1134
    %v1136 = vsel %vm473, %v1080, 0.0
    %1137 = vadd.xlane.f32.xlu0 %v1136
    %v1138 = vpop.xlane.xlu0 %1137
    %v1139 = vsel %vm473, %v1082, 0.0
    %1140 = vadd.xlane.f32.xlu0 %v1139
    %v1141 = vpop.xlane.xlu0 %1140
    %v1142 = vsel %vm473, %v1084, 0.0
    %1143 = vadd.xlane.f32.xlu0 %v1142
    %v1144 = vpop.xlane.xlu0 %1143
    %v1145 = vsel %vm473, %v1086, 0.0
    %1146 = vadd.xlane.f32.xlu0 %v1145
    %v1147 = vpop.xlane.xlu0 %1146
    %v1148 = vsel %vm473, %v1088, 0.0
    %1149 = vadd.xlane.f32.xlu0 %v1148
    %v1150 = vpop.xlane.xlu0 %1149
    %v1151 = vsel %vm473, %v1090, 0.0
    %1152 = vadd.xlane.f32.xlu0 %v1151
    %v1153 = vpop.xlane.xlu0 %1152
    %v1154 = vsel %vm473, %v1092, 0.0
    %1155 = vadd.xlane.f32.xlu0 %v1154
    %v1156 = vpop.xlane.xlu0 %1155
    %v1157 = vmul.f32 %v1111, 0.35355338
    %v1158 = vmul.f32 %v1114, 0.35355338
    %v1159 = vmul.f32 %v1117, 0.35355338
    %v1160 = vmul.f32 %v1120, 0.35355338
    %v1161 = vmul.f32 %v1123, 0.35355338
    %v1162 = vmul.f32 %v1126, 0.35355338
    %v1163 = vmul.f32 %v1129, 0.35355338
    %v1164 = vmul.f32 %v1132, 0.35355338
    %v1165 = vmul.f32 %v1135, 0.35355338
    %v1166 = vmul.f32 %v1138, 0.35355338
    %v1167 = vmul.f32 %v1141, 0.35355338
    %v1168 = vmul.f32 %v1144, 0.35355338
    %v1169 = vmul.f32 %v1147, 0.35355338
    %v1170 = vmul.f32 %v1150, 0.35355338
    %v1171 = vmul.f32 %v1153, 0.35355338
    %v1172 = vmul.f32 %v1156, 0.35355338
    %v1189 = vperm.slane %v1157, %v555
    %v1190 = vperm.slane %v1158, %v555
    %v1191 = vperm.slane %v1159, %v555
    %v1192 = vperm.slane %v1160, %v555
    %v1193 = vperm.slane %v1161, %v555
    %v1194 = vperm.slane %v1162, %v555
    %v1195 = vperm.slane %v1163, %v555
    %v1196 = vperm.slane %v1164, %v555
    %v1197 = vperm.slane %v1165, %v555
    %v1198 = vperm.slane %v1166, %v555
    %v1199 = vperm.slane %v1167, %v555
    %v1200 = vperm.slane %v1168, %v555
    %v1201 = vperm.slane %v1169, %v555
    %v1202 = vperm.slane %v1170, %v555
    %v1203 = vperm.slane %v1171, %v555
    %v1204 = vperm.slane %v1172, %v555
    %v1205 = vsel %vm572, %v1190, %v1189
    %v1206 = vsel %vm574, %v1191, %v1205
    %v1207 = vsel %vm576, %v1192, %v1206
    %v1208 = vsel %vm578, %v1193, %v1207
    %v1209 = vsel %vm580, %v1194, %v1208
    %v1210 = vsel %vm582, %v1195, %v1209
    %v1211 = vsel %vm584, %v1196, %v1210
    %v1212 = vsel %vm572, %v1198, %v1197
    %v1213 = vsel %vm574, %v1199, %v1212
    %v1214 = vsel %vm576, %v1200, %v1213
    %v1215 = vsel %vm578, %v1201, %v1214
    %v1216 = vsel %vm580, %v1202, %v1215
    %v1217 = vsel %vm582, %v1203, %v1216
    %v1218 = vsel %vm584, %v1204, %v1217
    %v1221 = vsel %vm473, %v1211, -inf
    %1222 = vmax.xlane.f32.xlu0 %v1221
    %v1223 = vpop.xlane.xlu0 %1222
    %v1224 = vsel %vm473, %v1218, -inf
    %1225 = vmax.xlane.f32.xlu0 %v1224
    %v1226 = vpop.xlane.xlu0 %1225
    %v1229 = vperm.slane %v1223, 0
    %v1230 = vperm.slane %v1223, 1
    %v1231 = vperm.slane %v1223, 2
    %v1232 = vperm.slane %v1223, 3
    %v1233 = vperm.slane %v1223, 4
    %v1234 = vperm.slane %v1223, 5
    %v1235 = vperm.slane %v1223, 6
    %v1236 = vperm.slane %v1223, 7
    %v1237 = vperm.slane %v1226, 0
    %v1238 = vperm.slane %v1226, 1
    %v1239 = vperm.slane %v1226, 2
    %v1240 = vperm.slane %v1226, 3
    %v1241 = vperm.slane %v1226, 4
    %v1242 = vperm.slane %v1226, 5
    %v1243 = vperm.slane %v1226, 6
    %v1244 = vperm.slane %v1226, 7
    %v1261 = vsub.f32 %v1157, %v1229
    %v1262 = vsub.f32 %v1158, %v1230
    %v1263 = vsub.f32 %v1159, %v1231
    %v1264 = vsub.f32 %v1160, %v1232
    %v1265 = vsub.f32 %v1161, %v1233
    %v1266 = vsub.f32 %v1162, %v1234
    %v1267 = vsub.f32 %v1163, %v1235
    %v1268 = vsub.f32 %v1164, %v1236
    %v1269 = vsub.f32 %v1165, %v1237
    %v1270 = vsub.f32 %v1166, %v1238
    %v1271 = vsub.f32 %v1167, %v1239
    %v1272 = vsub.f32 %v1168, %v1240
    %v1273 = vsub.f32 %v1169, %v1241
    %v1274 = vsub.f32 %v1170, %v1242
    %v1275 = vsub.f32 %v1171, %v1243
    %v1276 = vsub.f32 %v1172, %v1244
    %v1277 = vmul.f32 %v1261, 1.442695
    %v1278 = vpow.pop %v1277
    %v1279 = vmul.f32 %v1262, 1.442695
    %v1280 = vpow.pop %v1279
    %v1281 = vmul.f32 %v1263, 1.442695
    %v1282 = vpow.pop %v1281
    %v1283 = vmul.f32 %v1264, 1.442695
    %v1284 = vpow.pop %v1283
    %v1285 = vmul.f32 %v1265, 1.442695
    %v1286 = vpow.pop %v1285
    %v1287 = vmul.f32 %v1266, 1.442695
    %v1288 = vpow.pop %v1287
    %v1289 = vmul.f32 %v1267, 1.442695
    %v1290 = vpow.pop %v1289
    %v1291 = vmul.f32 %v1268, 1.442695
    %v1292 = vpow.pop %v1291
    %v1293 = vmul.f32 %v1269, 1.442695
    %v1294 = vpow.pop %v1293
    %v1295 = vmul.f32 %v1270, 1.442695
    %v1296 = vpow.pop %v1295
    %v1297 = vmul.f32 %v1271, 1.442695
    %v1298 = vpow.pop %v1297
    %v1299 = vmul.f32 %v1272, 1.442695
    %v1300 = vpow.pop %v1299
    %v1301 = vmul.f32 %v1273, 1.442695
    %v1302 = vpow.pop %v1301
    %v1303 = vmul.f32 %v1274, 1.442695
    %v1304 = vpow.pop %v1303
    %v1305 = vmul.f32 %v1275, 1.442695
    %v1306 = vpow.pop %v1305
    %v1307 = vmul.f32 %v1276, 1.442695
    %v1308 = vpow.pop %v1307
    %1325 = vset.pattern.permute.xlu0 0
    %1326 = vperm.xlu0 %1325, %v1278
    %v1327 = vpop.permute.xlu0 %1326
    %1328 = vset.pattern.permute.xlu0 0
    %1329 = vperm.xlu0 %1328, %v1280
    %v1330 = vpop.permute.xlu0 %1329
    %1331 = vset.pattern.permute.xlu0 0
    %1332 = vperm.xlu0 %1331, %v1282
    %v1333 = vpop.permute.xlu0 %1332
    %1334 = vset.pattern.permute.xlu0 0
    %1335 = vperm.xlu0 %1334, %v1284
    %v1336 = vpop.permute.xlu0 %1335
    %1337 = vset.pattern.permute.xlu0 0
    %1338 = vperm.xlu0 %1337, %v1286
    %v1339 = vpop.permute.xlu0 %1338
    %1340 = vset.pattern.permute.xlu0 0
    %1341 = vperm.xlu0 %1340, %v1288
    %v1342 = vpop.permute.xlu0 %1341
    %1343 = vset.pattern.permute.xlu0 0
    %1344 = vperm.xlu0 %1343, %v1290
    %v1345 = vpop.permute.xlu0 %1344
    %1346 = vset.pattern.permute.xlu0 0
    %1347 = vperm.xlu0 %1346, %v1292
    %v1348 = vpop.permute.xlu0 %1347
    %1349 = vset.pattern.permute.xlu0 0
    %1350 = vperm.xlu0 %1349, %v1294
    %v1351 = vpop.permute.xlu0 %1350
    %1352 = vset.pattern.permute.xlu0 0
    %1353 = vperm.xlu0 %1352, %v1296
    %v1354 = vpop.permute.xlu0 %1353
    %1355 = vset.pattern.permute.xlu0 0
    %1356 = vperm.xlu0 %1355, %v1298
    %v1357 = vpop.permute.xlu0 %1356
    %1358 = vset.pattern.permute.xlu0 0
    %1359 = vperm.xlu0 %1358, %v1300
    %v1360 = vpop.permute.xlu0 %1359
    %1361 = vset.pattern.permute.xlu0 0
    %1362 = vperm.xlu0 %1361, %v1302
    %v1363 = vpop.permute.xlu0 %1362
    %1364 = vset.pattern.permute.xlu0 0
    %1365 = vperm.xlu0 %1364, %v1304
    %v1366 = vpop.permute.xlu0 %1365
    %1367 = vset.pattern.permute.xlu0 0
    %1368 = vperm.xlu0 %1367, %v1306
    %v1369 = vpop.permute.xlu0 %1368
    %1370 = vset.pattern.permute.xlu0 0
    %1371 = vperm.xlu0 %1370, %v1308
    %v1372 = vpop.permute.xlu0 %1371
    %v1373 = vperm.slane %v1327, %v555
    %v1374 = vperm.slane %v1330, %v555
    %v1375 = vperm.slane %v1333, %v555
    %v1376 = vperm.slane %v1336, %v555
    %v1377 = vperm.slane %v1339, %v555
    %v1378 = vperm.slane %v1342, %v555
    %v1379 = vperm.slane %v1345, %v555
    %v1380 = vperm.slane %v1348, %v555
    %v1381 = vperm.slane %v1351, %v555
    %v1382 = vperm.slane %v1354, %v555
    %v1383 = vperm.slane %v1357, %v555
    %v1384 = vperm.slane %v1360, %v555
    %v1385 = vperm.slane %v1363, %v555
    %v1386 = vperm.slane %v1366, %v555
    %v1387 = vperm.slane %v1369, %v555
    %v1388 = vperm.slane %v1372, %v555
    %v1389 = vsel %vm572, %v1374, %v1373
    %v1390 = vsel %vm574, %v1375, %v1389
    %v1391 = vsel %vm576, %v1376, %v1390
    %v1392 = vsel %vm578, %v1377, %v1391
    %v1393 = vsel %vm580, %v1378, %v1392
    %v1394 = vsel %vm582, %v1379, %v1393
    %v1395 = vsel %vm584, %v1380, %v1394
    %v1396 = vsel %vm572, %v1382, %v1381
    %v1397 = vsel %vm574, %v1383, %v1396
    %v1398 = vsel %vm576, %v1384, %v1397
    %v1399 = vsel %vm578, %v1385, %v1398
    %v1400 = vsel %vm580, %v1386, %v1399
    %v1401 = vsel %vm582, %v1387, %v1400
    %v1402 = vsel %vm584, %v1388, %v1401
    %v1405 = vsel %vm473, %v1395, 0.0
    %1406 = vadd.xlane.f32.xlu0 %v1405
    %v1407 = vpop.xlane.xlu0 %1406
    %v1408 = vsel %vm473, %v1402, 0.0
    %1409 = vadd.xlane.f32.xlu0 %v1408
    %v1410 = vpop.xlane.xlu0 %1409
    %v1411 = vrcp.pop %v1407
    %v1412 = vrcp.pop %v1410
    %v1415 = vperm.slane %v1411, 0
    %v1416 = vperm.slane %v1411, 1
    %v1417 = vperm.slane %v1411, 2
    %v1418 = vperm.slane %v1411, 3
    %v1419 = vperm.slane %v1411, 4
    %v1420 = vperm.slane %v1411, 5
    %v1421 = vperm.slane %v1411, 6
    %v1422 = vperm.slane %v1411, 7
    %v1423 = vperm.slane %v1412, 0
    %v1424 = vperm.slane %v1412, 1
    %v1425 = vperm.slane %v1412, 2
    %v1426 = vperm.slane %v1412, 3
    %v1427 = vperm.slane %v1412, 4
    %v1428 = vperm.slane %v1412, 5
    %v1429 = vperm.slane %v1412, 6
    %v1430 = vperm.slane %v1412, 7
    %v1447 = vmul.f32 %v1278, %v1415
    %v1448 = vmul.f32 %v1280, %v1416
    %v1449 = vmul.f32 %v1282, %v1417
    %v1450 = vmul.f32 %v1284, %v1418
    %v1451 = vmul.f32 %v1286, %v1419
    %v1452 = vmul.f32 %v1288, %v1420
    %v1453 = vmul.f32 %v1290, %v1421
    %v1454 = vmul.f32 %v1292, %v1422
    %v1455 = vmul.f32 %v1294, %v1423
    %v1456 = vmul.f32 %v1296, %v1424
    %v1457 = vmul.f32 %v1298, %v1425
    %v1458 = vmul.f32 %v1300, %v1426
    %v1459 = vmul.f32 %v1302, %v1427
    %v1460 = vmul.f32 %v1304, %v1428
    %v1461 = vmul.f32 %v1306, %v1429
    %v1462 = vmul.f32 %v1308, %v1430
    %1464 = vset.pattern.permute.xlu0 0
    %1465 = vperm.xlu0 %1464, %v1447
    %v1466 = vpop.permute.xlu0 %1465
    %1469 = vset.pattern.permute.xlu0 0
    %1470 = vperm.xlu0 %1469, %v1448
    %v1471 = vpop.permute.xlu0 %1470
    %1474 = vset.pattern.permute.xlu0 0
    %1475 = vperm.xlu0 %1474, %v1449
    %v1476 = vpop.permute.xlu0 %1475
    %1479 = vset.pattern.permute.xlu0 0
    %1480 = vperm.xlu0 %1479, %v1450
    %v1481 = vpop.permute.xlu0 %1480
    %1484 = vset.pattern.permute.xlu0 0
    %1485 = vperm.xlu0 %1484, %v1451
    %v1486 = vpop.permute.xlu0 %1485
    %1489 = vset.pattern.permute.xlu0 0
    %1490 = vperm.xlu0 %1489, %v1452
    %v1491 = vpop.permute.xlu0 %1490
    %1494 = vset.pattern.permute.xlu0 0
    %1495 = vperm.xlu0 %1494, %v1453
    %v1496 = vpop.permute.xlu0 %1495
    %1499 = vset.pattern.permute.xlu0 0
    %1500 = vperm.xlu0 %1499, %v1454
    %v1501 = vpop.permute.xlu0 %1500
    %1504 = vset.pattern.permute.xlu0 0
    %1505 = vperm.xlu0 %1504, %v1455
    %v1506 = vpop.permute.xlu0 %1505
    %1509 = vset.pattern.permute.xlu0 0
    %1510 = vperm.xlu0 %1509, %v1456
    %v1511 = vpop.permute.xlu0 %1510
    %1514 = vset.pattern.permute.xlu0 0
    %1515 = vperm.xlu0 %1514, %v1457
    %v1516 = vpop.permute.xlu0 %1515
    %1519 = vset.pattern.permute.xlu0 0
    %1520 = vperm.xlu0 %1519, %v1458
    %v1521 = vpop.permute.xlu0 %1520
    %1524 = vset.pattern.permute.xlu0 0
    %1525 = vperm.xlu0 %1524, %v1459
    %v1526 = vpop.permute.xlu0 %1525
    %1529 = vset.pattern.permute.xlu0 0
    %1530 = vperm.xlu0 %1529, %v1460
    %v1531 = vpop.permute.xlu0 %1530
    %1534 = vset.pattern.permute.xlu0 0
    %1535 = vperm.xlu0 %1534, %v1461
    %v1536 = vpop.permute.xlu0 %1535
    %1539 = vset.pattern.permute.xlu0 0
    %1540 = vperm.xlu0 %1539, %v1462
    %v1541 = vpop.permute.xlu0 %1540
    %v1543 = vmul.f32 %v1466, %v405
    %v1544 = vmul.f32 %v1471, %v405
    %v1545 = vmul.f32 %v1476, %v405
    %v1546 = vmul.f32 %v1481, %v405
    %v1547 = vmul.f32 %v1486, %v405
    %v1548 = vmul.f32 %v1491, %v405
    %v1549 = vmul.f32 %v1496, %v405
    %v1550 = vmul.f32 %v1501, %v405
    %v1551 = vmul.f32 %v1506, %v407
    %v1552 = vmul.f32 %v1511, %v407
    %v1553 = vmul.f32 %v1516, %v407
    %v1554 = vmul.f32 %v1521, %v407
    %v1555 = vmul.f32 %v1526, %v407
    %v1556 = vmul.f32 %v1531, %v407
    %v1557 = vmul.f32 %v1536, %v407
    %v1558 = vmul.f32 %v1541, %v407
    %vm1559 = vcmask 130112
    %v1560 = vsel %vm1559, %v1543, 0.0
    %v1561 = vrot.slane %v1560, 4
    %v1562 = vadd.f32 %v1560, %v1561
    %v1563 = vrot.slane %v1562, 2
    %v1564 = vadd.f32 %v1562, %v1563
    %v1565 = vrot.slane %v1564, 1
    %v1566 = vadd.f32 %v1564, %v1565
    %v1567 = vsel %vm1559, %v1544, 0.0
    %v1568 = vrot.slane %v1567, 4
    %v1569 = vadd.f32 %v1567, %v1568
    %v1570 = vrot.slane %v1569, 2
    %v1571 = vadd.f32 %v1569, %v1570
    %v1572 = vrot.slane %v1571, 1
    %v1573 = vadd.f32 %v1571, %v1572
    %v1574 = vsel %vm1559, %v1545, 0.0
    %v1575 = vrot.slane %v1574, 4
    %v1576 = vadd.f32 %v1574, %v1575
    %v1577 = vrot.slane %v1576, 2
    %v1578 = vadd.f32 %v1576, %v1577
    %v1579 = vrot.slane %v1578, 1
    %v1580 = vadd.f32 %v1578, %v1579
    %v1581 = vsel %vm1559, %v1546, 0.0
    %v1582 = vrot.slane %v1581, 4
    %v1583 = vadd.f32 %v1581, %v1582
    %v1584 = vrot.slane %v1583, 2
    %v1585 = vadd.f32 %v1583, %v1584
    %v1586 = vrot.slane %v1585, 1
    %v1587 = vadd.f32 %v1585, %v1586
    %v1588 = vsel %vm1559, %v1547, 0.0
    %v1589 = vrot.slane %v1588, 4
    %v1590 = vadd.f32 %v1588, %v1589
    %v1591 = vrot.slane %v1590, 2
    %v1592 = vadd.f32 %v1590, %v1591
    %v1593 = vrot.slane %v1592, 1
    %v1594 = vadd.f32 %v1592, %v1593
    %v1595 = vsel %vm1559, %v1548, 0.0
    %v1596 = vrot.slane %v1595, 4
    %v1597 = vadd.f32 %v1595, %v1596
    %v1598 = vrot.slane %v1597, 2
    %v1599 = vadd.f32 %v1597, %v1598
    %v1600 = vrot.slane %v1599, 1
    %v1601 = vadd.f32 %v1599, %v1600
    %v1602 = vsel %vm1559, %v1549, 0.0
    %v1603 = vrot.slane %v1602, 4
    %v1604 = vadd.f32 %v1602, %v1603
    %v1605 = vrot.slane %v1604, 2
    %v1606 = vadd.f32 %v1604, %v1605
    %v1607 = vrot.slane %v1606, 1
    %v1608 = vadd.f32 %v1606, %v1607
    %v1609 = vsel %vm1559, %v1550, 0.0
    %v1610 = vrot.slane %v1609, 4
    %v1611 = vadd.f32 %v1609, %v1610
    %v1612 = vrot.slane %v1611, 2
    %v1613 = vadd.f32 %v1611, %v1612
    %v1614 = vrot.slane %v1613, 1
    %v1615 = vadd.f32 %v1613, %v1614
    %v1616 = vsel %vm1559, %v1551, 0.0
    %v1617 = vrot.slane %v1616, 4
    %v1618 = vadd.f32 %v1616, %v1617
    %v1619 = vrot.slane %v1618, 2
    %v1620 = vadd.f32 %v1618, %v1619
    %v1621 = vrot.slane %v1620, 1
    %v1622 = vadd.f32 %v1620, %v1621
    %v1623 = vsel %vm1559, %v1552, 0.0
    %v1624 = vrot.slane %v1623, 4
    %v1625 = vadd.f32 %v1623, %v1624
    %v1626 = vrot.slane %v1625, 2
    %v1627 = vadd.f32 %v1625, %v1626
    %v1628 = vrot.slane %v1627, 1
    %v1629 = vadd.f32 %v1627, %v1628
    %v1630 = vsel %vm1559, %v1553, 0.0
    %v1631 = vrot.slane %v1630, 4
    %v1632 = vadd.f32 %v1630, %v1631
    %v1633 = vrot.slane %v1632, 2
    %v1634 = vadd.f32 %v1632, %v1633
    %v1635 = vrot.slane %v1634, 1
    %v1636 = vadd.f32 %v1634, %v1635
    %v1637 = vsel %vm1559, %v1554, 0.0
    %v1638 = vrot.slane %v1637, 4
    %v1639 = vadd.f32 %v1637, %v1638
    %v1640 = vrot.slane %v1639, 2
    %v1641 = vadd.f32 %v1639, %v1640
    %v1642 = vrot.slane %v1641, 1
    %v1643 = vadd.f32 %v1641, %v1642
    %v1644 = vsel %vm1559, %v1555, 0.0
    %v1645 = vrot.slane %v1644, 4
    %v1646 = vadd.f32 %v1644, %v1645
    %v1647 = vrot.slane %v1646, 2
    %v1648 = vadd.f32 %v1646, %v1647
    %v1649 = vrot.slane %v1648, 1
    %v1650 = vadd.f32 %v1648, %v1649
    %v1651 = vsel %vm1559, %v1556, 0.0
    %v1652 = vrot.slane %v1651, 4
    %v1653 = vadd.f32 %v1651, %v1652
    %v1654 = vrot.slane %v1653, 2
    %v1655 = vadd.f32 %v1653, %v1654
    %v1656 = vrot.slane %v1655, 1
    %v1657 = vadd.f32 %v1655, %v1656
    %v1658 = vsel %vm1559, %v1557, 0.0
    %v1659 = vrot.slane %v1658, 4
    %v1660 = vadd.f32 %v1658, %v1659
    %v1661 = vrot.slane %v1660, 2
    %v1662 = vadd.f32 %v1660, %v1661
    %v1663 = vrot.slane %v1662, 1
    %v1664 = vadd.f32 %v1662, %v1663
    %v1665 = vsel %vm1559, %v1558, 0.0
    %v1666 = vrot.slane %v1665, 4
    %v1667 = vadd.f32 %v1665, %v1666
    %v1668 = vrot.slane %v1667, 2
    %v1669 = vadd.f32 %v1667, %v1668
    %v1670 = vrot.slane %v1669, 1
    %v1671 = vadd.f32 %v1669, %v1670
    %1672 = vrot.lane.b32.xlu0 %v457, 112
    %v1673 = vpop.permute.xlu0 %1672
    %1674 = vrot.lane.b32.xlu0 %v458, 112
    %v1675 = vpop.permute.xlu0 %1674
    %1676 = vrot.lane.b32.xlu0 %v459, 112
    %v1677 = vpop.permute.xlu0 %1676
    %1678 = vrot.lane.b32.xlu0 %v460, 112
    %v1679 = vpop.permute.xlu0 %1678
    %1680 = vrot.lane.b32.xlu0 %v461, 112
    %v1681 = vpop.permute.xlu0 %1680
    %1682 = vrot.lane.b32.xlu0 %v462, 112
    %v1683 = vpop.permute.xlu0 %1682
    %1684 = vrot.lane.b32.xlu0 %v463, 112
    %v1685 = vpop.permute.xlu0 %1684
    %1686 = vrot.lane.b32.xlu0 %v464, 112
    %v1687 = vpop.permute.xlu0 %1686
    %1688 = vrot.lane.b32.xlu0 %v465, 112
    %v1689 = vpop.permute.xlu0 %1688
    %1690 = vrot.lane.b32.xlu0 %v466, 112
    %v1691 = vpop.permute.xlu0 %1690
    %1692 = vrot.lane.b32.xlu0 %v467, 112
    %v1693 = vpop.permute.xlu0 %1692
    %1694 = vrot.lane.b32.xlu0 %v468, 112
    %v1695 = vpop.permute.xlu0 %1694
    %1696 = vrot.lane.b32.xlu0 %v469, 112
    %v1697 = vpop.permute.xlu0 %1696
    %1698 = vrot.lane.b32.xlu0 %v470, 112
    %v1699 = vpop.permute.xlu0 %1698
    %1700 = vrot.lane.b32.xlu0 %v471, 112
    %v1701 = vpop.permute.xlu0 %1700
    %1702 = vrot.lane.b32.xlu0 %v472, 112
    %v1703 = vpop.permute.xlu0 %1702
    %v1720 = vsel %vm473, %v1673, 0.0
    %1721 = vadd.xlane.f32.xlu0 %v1720
    %v1722 = vpop.xlane.xlu0 %1721
    %v1723 = vsel %vm473, %v1675, 0.0
    %1724 = vadd.xlane.f32.xlu0 %v1723
    %v1725 = vpop.xlane.xlu0 %1724
    %v1726 = vsel %vm473, %v1677, 0.0
    %1727 = vadd.xlane.f32.xlu0 %v1726
    %v1728 = vpop.xlane.xlu0 %1727
    %v1729 = vsel %vm473, %v1679, 0.0
    %1730 = vadd.xlane.f32.xlu0 %v1729
    %v1731 = vpop.xlane.xlu0 %1730
    %v1732 = vsel %vm473, %v1681, 0.0
    %1733 = vadd.xlane.f32.xlu0 %v1732
    %v1734 = vpop.xlane.xlu0 %1733
    %v1735 = vsel %vm473, %v1683, 0.0
    %1736 = vadd.xlane.f32.xlu0 %v1735
    %v1737 = vpop.xlane.xlu0 %1736
    %v1738 = vsel %vm473, %v1685, 0.0
    %1739 = vadd.xlane.f32.xlu0 %v1738
    %v1740 = vpop.xlane.xlu0 %1739
    %v1741 = vsel %vm473, %v1687, 0.0
    %1742 = vadd.xlane.f32.xlu0 %v1741
    %v1743 = vpop.xlane.xlu0 %1742
    %v1744 = vsel %vm473, %v1689, 0.0
    %1745 = vadd.xlane.f32.xlu0 %v1744
    %v1746 = vpop.xlane.xlu0 %1745
    %v1747 = vsel %vm473, %v1691, 0.0
    %1748 = vadd.xlane.f32.xlu0 %v1747
    %v1749 = vpop.xlane.xlu0 %1748
    %v1750 = vsel %vm473, %v1693, 0.0
    %1751 = vadd.xlane.f32.xlu0 %v1750
    %v1752 = vpop.xlane.xlu0 %1751
    %v1753 = vsel %vm473, %v1695, 0.0
    %1754 = vadd.xlane.f32.xlu0 %v1753
    %v1755 = vpop.xlane.xlu0 %1754
    %v1756 = vsel %vm473, %v1697, 0.0
    %1757 = vadd.xlane.f32.xlu0 %v1756
    %v1758 = vpop.xlane.xlu0 %1757
    %v1759 = vsel %vm473, %v1699, 0.0
    %1760 = vadd.xlane.f32.xlu0 %v1759
    %v1761 = vpop.xlane.xlu0 %1760
    %v1762 = vsel %vm473, %v1701, 0.0
    %1763 = vadd.xlane.f32.xlu0 %v1762
    %v1764 = vpop.xlane.xlu0 %1763
    %v1765 = vsel %vm473, %v1703, 0.0
    %1766 = vadd.xlane.f32.xlu0 %v1765
    %v1767 = vpop.xlane.xlu0 %1766
    %v1768 = vmul.f32 %v1722, 0.35355338
    %v1769 = vmul.f32 %v1725, 0.35355338
    %v1770 = vmul.f32 %v1728, 0.35355338
    %v1771 = vmul.f32 %v1731, 0.35355338
    %v1772 = vmul.f32 %v1734, 0.35355338
    %v1773 = vmul.f32 %v1737, 0.35355338
    %v1774 = vmul.f32 %v1740, 0.35355338
    %v1775 = vmul.f32 %v1743, 0.35355338
    %v1776 = vmul.f32 %v1746, 0.35355338
    %v1777 = vmul.f32 %v1749, 0.35355338
    %v1778 = vmul.f32 %v1752, 0.35355338
    %v1779 = vmul.f32 %v1755, 0.35355338
    %v1780 = vmul.f32 %v1758, 0.35355338
    %v1781 = vmul.f32 %v1761, 0.35355338
    %v1782 = vmul.f32 %v1764, 0.35355338
    %v1783 = vmul.f32 %v1767, 0.35355338
    %v1800 = vperm.slane %v1768, %v555
    %v1801 = vperm.slane %v1769, %v555
    %v1802 = vperm.slane %v1770, %v555
    %v1803 = vperm.slane %v1771, %v555
    %v1804 = vperm.slane %v1772, %v555
    %v1805 = vperm.slane %v1773, %v555
    %v1806 = vperm.slane %v1774, %v555
    %v1807 = vperm.slane %v1775, %v555
    %v1808 = vperm.slane %v1776, %v555
    %v1809 = vperm.slane %v1777, %v555
    %v1810 = vperm.slane %v1778, %v555
    %v1811 = vperm.slane %v1779, %v555
    %v1812 = vperm.slane %v1780, %v555
    %v1813 = vperm.slane %v1781, %v555
    %v1814 = vperm.slane %v1782, %v555
    %v1815 = vperm.slane %v1783, %v555
    %v1816 = vsel %vm572, %v1801, %v1800
    %v1817 = vsel %vm574, %v1802, %v1816
    %v1818 = vsel %vm576, %v1803, %v1817
    %v1819 = vsel %vm578, %v1804, %v1818
    %v1820 = vsel %vm580, %v1805, %v1819
    %v1821 = vsel %vm582, %v1806, %v1820
    %v1822 = vsel %vm584, %v1807, %v1821
    %v1823 = vsel %vm572, %v1809, %v1808
    %v1824 = vsel %vm574, %v1810, %v1823
    %v1825 = vsel %vm576, %v1811, %v1824
    %v1826 = vsel %vm578, %v1812, %v1825
    %v1827 = vsel %vm580, %v1813, %v1826
    %v1828 = vsel %vm582, %v1814, %v1827
    %v1829 = vsel %vm584, %v1815, %v1828
    %v1832 = vsel %vm473, %v1822, -inf
    %1833 = vmax.xlane.f32.xlu0 %v1832
    %v1834 = vpop.xlane.xlu0 %1833
    %v1835 = vsel %vm473, %v1829, -inf
    %1836 = vmax.xlane.f32.xlu0 %v1835
    %v1837 = vpop.xlane.xlu0 %1836
    %v1840 = vperm.slane %v1834, 0
    %v1841 = vperm.slane %v1834, 1
    %v1842 = vperm.slane %v1834, 2
    %v1843 = vperm.slane %v1834, 3
    %v1844 = vperm.slane %v1834, 4
    %v1845 = vperm.slane %v1834, 5
    %v1846 = vperm.slane %v1834, 6
    %v1847 = vperm.slane %v1834, 7
    %v1848 = vperm.slane %v1837, 0
    %v1849 = vperm.slane %v1837, 1
    %v1850 = vperm.slane %v1837, 2
    %v1851 = vperm.slane %v1837, 3
    %v1852 = vperm.slane %v1837, 4
    %v1853 = vperm.slane %v1837, 5
    %v1854 = vperm.slane %v1837, 6
    %v1855 = vperm.slane %v1837, 7
    %v1872 = vsub.f32 %v1768, %v1840
    %v1873 = vsub.f32 %v1769, %v1841
    %v1874 = vsub.f32 %v1770, %v1842
    %v1875 = vsub.f32 %v1771, %v1843
    %v1876 = vsub.f32 %v1772, %v1844
    %v1877 = vsub.f32 %v1773, %v1845
    %v1878 = vsub.f32 %v1774, %v1846
    %v1879 = vsub.f32 %v1775, %v1847
    %v1880 = vsub.f32 %v1776, %v1848
    %v1881 = vsub.f32 %v1777, %v1849
    %v1882 = vsub.f32 %v1778, %v1850
    %v1883 = vsub.f32 %v1779, %v1851
    %v1884 = vsub.f32 %v1780, %v1852
    %v1885 = vsub.f32 %v1781, %v1853
    %v1886 = vsub.f32 %v1782, %v1854
    %v1887 = vsub.f32 %v1783, %v1855
    %v1888 = vmul.f32 %v1872, 1.442695
    %v1889 = vpow.pop %v1888
    %v1890 = vmul.f32 %v1873, 1.442695
    %v1891 = vpow.pop %v1890
    %v1892 = vmul.f32 %v1874, 1.442695
    %v1893 = vpow.pop %v1892
    %v1894 = vmul.f32 %v1875, 1.442695
    %v1895 = vpow.pop %v1894
    %v1896 = vmul.f32 %v1876, 1.442695
    %v1897 = vpow.pop %v1896
    %v1898 = vmul.f32 %v1877, 1.442695
    %v1899 = vpow.pop %v1898
    %v1900 = vmul.f32 %v1878, 1.442695
    %v1901 = vpow.pop %v1900
    %v1902 = vmul.f32 %v1879, 1.442695
    %v1903 = vpow.pop %v1902
    %v1904 = vmul.f32 %v1880, 1.442695
    %v1905 = vpow.pop %v1904
    %v1906 = vmul.f32 %v1881, 1.442695
    %v1907 = vpow.pop %v1906
    %v1908 = vmul.f32 %v1882, 1.442695
    %v1909 = vpow.pop %v1908
    %v1910 = vmul.f32 %v1883, 1.442695
    %v1911 = vpow.pop %v1910
    %v1912 = vmul.f32 %v1884, 1.442695
    %v1913 = vpow.pop %v1912
    %v1914 = vmul.f32 %v1885, 1.442695
    %v1915 = vpow.pop %v1914
    %v1916 = vmul.f32 %v1886, 1.442695
    %v1917 = vpow.pop %v1916
    %v1918 = vmul.f32 %v1887, 1.442695
    %v1919 = vpow.pop %v1918
    %1936 = vset.pattern.permute.xlu0 0
    %1937 = vperm.xlu0 %1936, %v1889
    %v1938 = vpop.permute.xlu0 %1937
    %1939 = vset.pattern.permute.xlu0 0
    %1940 = vperm.xlu0 %1939, %v1891
    %v1941 = vpop.permute.xlu0 %1940
    %1942 = vset.pattern.permute.xlu0 0
    %1943 = vperm.xlu0 %1942, %v1893
    %v1944 = vpop.permute.xlu0 %1943
    %1945 = vset.pattern.permute.xlu0 0
    %1946 = vperm.xlu0 %1945, %v1895
    %v1947 = vpop.permute.xlu0 %1946
    %1948 = vset.pattern.permute.xlu0 0
    %1949 = vperm.xlu0 %1948, %v1897
    %v1950 = vpop.permute.xlu0 %1949
    %1951 = vset.pattern.permute.xlu0 0
    %1952 = vperm.xlu0 %1951, %v1899
    %v1953 = vpop.permute.xlu0 %1952
    %1954 = vset.pattern.permute.xlu0 0
    %1955 = vperm.xlu0 %1954, %v1901
    %v1956 = vpop.permute.xlu0 %1955
    %1957 = vset.pattern.permute.xlu0 0
    %1958 = vperm.xlu0 %1957, %v1903
    %v1959 = vpop.permute.xlu0 %1958
    %1960 = vset.pattern.permute.xlu0 0
    %1961 = vperm.xlu0 %1960, %v1905
    %v1962 = vpop.permute.xlu0 %1961
    %1963 = vset.pattern.permute.xlu0 0
    %1964 = vperm.xlu0 %1963, %v1907
    %v1965 = vpop.permute.xlu0 %1964
    %1966 = vset.pattern.permute.xlu0 0
    %1967 = vperm.xlu0 %1966, %v1909
    %v1968 = vpop.permute.xlu0 %1967
    %1969 = vset.pattern.permute.xlu0 0
    %1970 = vperm.xlu0 %1969, %v1911
    %v1971 = vpop.permute.xlu0 %1970
    %1972 = vset.pattern.permute.xlu0 0
    %1973 = vperm.xlu0 %1972, %v1913
    %v1974 = vpop.permute.xlu0 %1973
    %1975 = vset.pattern.permute.xlu0 0
    %1976 = vperm.xlu0 %1975, %v1915
    %v1977 = vpop.permute.xlu0 %1976
    %1978 = vset.pattern.permute.xlu0 0
    %1979 = vperm.xlu0 %1978, %v1917
    %v1980 = vpop.permute.xlu0 %1979
    %1981 = vset.pattern.permute.xlu0 0
    %1982 = vperm.xlu0 %1981, %v1919
    %v1983 = vpop.permute.xlu0 %1982
    %v1984 = vperm.slane %v1938, %v555
    %v1985 = vperm.slane %v1941, %v555
    %v1986 = vperm.slane %v1944, %v555
    %v1987 = vperm.slane %v1947, %v555
    %v1988 = vperm.slane %v1950, %v555
    %v1989 = vperm.slane %v1953, %v555
    %v1990 = vperm.slane %v1956, %v555
    %v1991 = vperm.slane %v1959, %v555
    %v1992 = vperm.slane %v1962, %v555
    %v1993 = vperm.slane %v1965, %v555
    %v1994 = vperm.slane %v1968, %v555
    %v1995 = vperm.slane %v1971, %v555
    %v1996 = vperm.slane %v1974, %v555
    %v1997 = vperm.slane %v1977, %v555
    %v1998 = vperm.slane %v1980, %v555
    %v1999 = vperm.slane %v1983, %v555
    %v2000 = vsel %vm572, %v1985, %v1984
    %v2001 = vsel %vm574, %v1986, %v2000
    %v2002 = vsel %vm576, %v1987, %v2001
    %v2003 = vsel %vm578, %v1988, %v2002
    %v2004 = vsel %vm580, %v1989, %v2003
    %v2005 = vsel %vm582, %v1990, %v2004
    %v2006 = vsel %vm584, %v1991, %v2005
    %v2007 = vsel %vm572, %v1993, %v1992
    %v2008 = vsel %vm574, %v1994, %v2007
    %v2009 = vsel %vm576, %v1995, %v2008
    %v2010 = vsel %vm578, %v1996, %v2009
    %v2011 = vsel %vm580, %v1997, %v2010
    %v2012 = vsel %vm582, %v1998, %v2011
    %v2013 = vsel %vm584, %v1999, %v2012
    %v2016 = vsel %vm473, %v2006, 0.0
    %2017 = vadd.xlane.f32.xlu0 %v2016
    %v2018 = vpop.xlane.xlu0 %2017
    %v2019 = vsel %vm473, %v2013, 0.0
    %2020 = vadd.xlane.f32.xlu0 %v2019
    %v2021 = vpop.xlane.xlu0 %2020
    %v2022 = vrcp.pop %v2018
    %v2023 = vrcp.pop %v2021
    %v2026 = vperm.slane %v2022, 0
    %v2027 = vperm.slane %v2022, 1
    %v2028 = vperm.slane %v2022, 2
    %v2029 = vperm.slane %v2022, 3
    %v2030 = vperm.slane %v2022, 4
    %v2031 = vperm.slane %v2022, 5
    %v2032 = vperm.slane %v2022, 6
    %v2033 = vperm.slane %v2022, 7
    %v2034 = vperm.slane %v2023, 0
    %v2035 = vperm.slane %v2023, 1
    %v2036 = vperm.slane %v2023, 2
    %v2037 = vperm.slane %v2023, 3
    %v2038 = vperm.slane %v2023, 4
    %v2039 = vperm.slane %v2023, 5
    %v2040 = vperm.slane %v2023, 6
    %v2041 = vperm.slane %v2023, 7
    %v2058 = vmul.f32 %v1889, %v2026
    %v2059 = vmul.f32 %v1891, %v2027
    %v2060 = vmul.f32 %v1893, %v2028
    %v2061 = vmul.f32 %v1895, %v2029
    %v2062 = vmul.f32 %v1897, %v2030
    %v2063 = vmul.f32 %v1899, %v2031
    %v2064 = vmul.f32 %v1901, %v2032
    %v2065 = vmul.f32 %v1903, %v2033
    %v2066 = vmul.f32 %v1905, %v2034
    %v2067 = vmul.f32 %v1907, %v2035
    %v2068 = vmul.f32 %v1909, %v2036
    %v2069 = vmul.f32 %v1911, %v2037
    %v2070 = vmul.f32 %v1913, %v2038
    %v2071 = vmul.f32 %v1915, %v2039
    %v2072 = vmul.f32 %v1917, %v2040
    %v2073 = vmul.f32 %v1919, %v2041
    %2075 = vset.pattern.permute.xlu0 0
    %2076 = vperm.xlu0 %2075, %v2058
    %v2077 = vpop.permute.xlu0 %2076
    %2080 = vset.pattern.permute.xlu0 0
    %2081 = vperm.xlu0 %2080, %v2059
    %v2082 = vpop.permute.xlu0 %2081
    %2085 = vset.pattern.permute.xlu0 0
    %2086 = vperm.xlu0 %2085, %v2060
    %v2087 = vpop.permute.xlu0 %2086
    %2090 = vset.pattern.permute.xlu0 0
    %2091 = vperm.xlu0 %2090, %v2061
    %v2092 = vpop.permute.xlu0 %2091
    %2095 = vset.pattern.permute.xlu0 0
    %2096 = vperm.xlu0 %2095, %v2062
    %v2097 = vpop.permute.xlu0 %2096
    %2100 = vset.pattern.permute.xlu0 0
    %2101 = vperm.xlu0 %2100, %v2063
    %v2102 = vpop.permute.xlu0 %2101
    %2105 = vset.pattern.permute.xlu0 0
    %2106 = vperm.xlu0 %2105, %v2064
    %v2107 = vpop.permute.xlu0 %2106
    %2110 = vset.pattern.permute.xlu0 0
    %2111 = vperm.xlu0 %2110, %v2065
    %v2112 = vpop.permute.xlu0 %2111
    %2115 = vset.pattern.permute.xlu0 0
    %2116 = vperm.xlu0 %2115, %v2066
    %v2117 = vpop.permute.xlu0 %2116
    %2120 = vset.pattern.permute.xlu0 0
    %2121 = vperm.xlu0 %2120, %v2067
    %v2122 = vpop.permute.xlu0 %2121
    %2125 = vset.pattern.permute.xlu0 0
    %2126 = vperm.xlu0 %2125, %v2068
    %v2127 = vpop.permute.xlu0 %2126
    %2130 = vset.pattern.permute.xlu0 0
    %2131 = vperm.xlu0 %2130, %v2069
    %v2132 = vpop.permute.xlu0 %2131
    %2135 = vset.pattern.permute.xlu0 0
    %2136 = vperm.xlu0 %2135, %v2070
    %v2137 = vpop.permute.xlu0 %2136
    %2140 = vset.pattern.permute.xlu0 0
    %2141 = vperm.xlu0 %2140, %v2071
    %v2142 = vpop.permute.xlu0 %2141
    %2145 = vset.pattern.permute.xlu0 0
    %2146 = vperm.xlu0 %2145, %v2072
    %v2147 = vpop.permute.xlu0 %2146
    %2150 = vset.pattern.permute.xlu0 0
    %2151 = vperm.xlu0 %2150, %v2073
    %v2152 = vpop.permute.xlu0 %2151
    %v2154 = vmul.f32 %v2077, %v405
    %v2155 = vmul.f32 %v2082, %v405
    %v2156 = vmul.f32 %v2087, %v405
    %v2157 = vmul.f32 %v2092, %v405
    %v2158 = vmul.f32 %v2097, %v405
    %v2159 = vmul.f32 %v2102, %v405
    %v2160 = vmul.f32 %v2107, %v405
    %v2161 = vmul.f32 %v2112, %v405
    %v2162 = vmul.f32 %v2117, %v407
    %v2163 = vmul.f32 %v2122, %v407
    %v2164 = vmul.f32 %v2127, %v407
    %v2165 = vmul.f32 %v2132, %v407
    %v2166 = vmul.f32 %v2137, %v407
    %v2167 = vmul.f32 %v2142, %v407
    %v2168 = vmul.f32 %v2147, %v407
    %v2169 = vmul.f32 %v2152, %v407
    %vm2170 = vcmask 195712
    %v2171 = vsel %vm2170, %v2154, 0.0
    %v2172 = vrot.slane %v2171, 4
    %v2173 = vadd.f32 %v2171, %v2172
    %v2174 = vrot.slane %v2173, 2
    %v2175 = vadd.f32 %v2173, %v2174
    %v2176 = vrot.slane %v2175, 1
    %v2177 = vadd.f32 %v2175, %v2176
    %v2178 = vsel %vm2170, %v2155, 0.0
    %v2179 = vrot.slane %v2178, 4
    %v2180 = vadd.f32 %v2178, %v2179
    %v2181 = vrot.slane %v2180, 2
    %v2182 = vadd.f32 %v2180, %v2181
    %v2183 = vrot.slane %v2182, 1
    %v2184 = vadd.f32 %v2182, %v2183
    %v2185 = vsel %vm2170, %v2156, 0.0
    %v2186 = vrot.slane %v2185, 4
    %v2187 = vadd.f32 %v2185, %v2186
    %v2188 = vrot.slane %v2187, 2
    %v2189 = vadd.f32 %v2187, %v2188
    %v2190 = vrot.slane %v2189, 1
    %v2191 = vadd.f32 %v2189, %v2190
    %v2192 = vsel %vm2170, %v2157, 0.0
    %v2193 = vrot.slane %v2192, 4
    %v2194 = vadd.f32 %v2192, %v2193
    %v2195 = vrot.slane %v2194, 2
    %v2196 = vadd.f32 %v2194, %v2195
    %v2197 = vrot.slane %v2196, 1
    %v2198 = vadd.f32 %v2196, %v2197
    %v2199 = vsel %vm2170, %v2158, 0.0
    %v2200 = vrot.slane %v2199, 4
    %v2201 = vadd.f32 %v2199, %v2200
    %v2202 = vrot.slane %v2201, 2
    %v2203 = vadd.f32 %v2201, %v2202
    %v2204 = vrot.slane %v2203, 1
    %v2205 = vadd.f32 %v2203, %v2204
    %v2206 = vsel %vm2170, %v2159, 0.0
    %v2207 = vrot.slane %v2206, 4
    %v2208 = vadd.f32 %v2206, %v2207
    %v2209 = vrot.slane %v2208, 2
    %v2210 = vadd.f32 %v2208, %v2209
    %v2211 = vrot.slane %v2210, 1
    %v2212 = vadd.f32 %v2210, %v2211
    %v2213 = vsel %vm2170, %v2160, 0.0
    %v2214 = vrot.slane %v2213, 4
    %v2215 = vadd.f32 %v2213, %v2214
    %v2216 = vrot.slane %v2215, 2
    %v2217 = vadd.f32 %v2215, %v2216
    %v2218 = vrot.slane %v2217, 1
    %v2219 = vadd.f32 %v2217, %v2218
    %v2220 = vsel %vm2170, %v2161, 0.0
    %v2221 = vrot.slane %v2220, 4
    %v2222 = vadd.f32 %v2220, %v2221
    %v2223 = vrot.slane %v2222, 2
    %v2224 = vadd.f32 %v2222, %v2223
    %v2225 = vrot.slane %v2224, 1
    %v2226 = vadd.f32 %v2224, %v2225
    %v2227 = vsel %vm2170, %v2162, 0.0
    %v2228 = vrot.slane %v2227, 4
    %v2229 = vadd.f32 %v2227, %v2228
    %v2230 = vrot.slane %v2229, 2
    %v2231 = vadd.f32 %v2229, %v2230
    %v2232 = vrot.slane %v2231, 1
    %v2233 = vadd.f32 %v2231, %v2232
    %v2234 = vsel %vm2170, %v2163, 0.0
    %v2235 = vrot.slane %v2234, 4
    %v2236 = vadd.f32 %v2234, %v2235
    %v2237 = vrot.slane %v2236, 2
    %v2238 = vadd.f32 %v2236, %v2237
    %v2239 = vrot.slane %v2238, 1
    %v2240 = vadd.f32 %v2238, %v2239
    %v2241 = vsel %vm2170, %v2164, 0.0
    %v2242 = vrot.slane %v2241, 4
    %v2243 = vadd.f32 %v2241, %v2242
    %v2244 = vrot.slane %v2243, 2
    %v2245 = vadd.f32 %v2243, %v2244
    %v2246 = vrot.slane %v2245, 1
    %v2247 = vadd.f32 %v2245, %v2246
    %v2248 = vsel %vm2170, %v2165, 0.0
    %v2249 = vrot.slane %v2248, 4
    %v2250 = vadd.f32 %v2248, %v2249
    %v2251 = vrot.slane %v2250, 2
    %v2252 = vadd.f32 %v2250, %v2251
    %v2253 = vrot.slane %v2252, 1
    %v2254 = vadd.f32 %v2252, %v2253
    %v2255 = vsel %vm2170, %v2166, 0.0
    %v2256 = vrot.slane %v2255, 4
    %v2257 = vadd.f32 %v2255, %v2256
    %v2258 = vrot.slane %v2257, 2
    %v2259 = vadd.f32 %v2257, %v2258
    %v2260 = vrot.slane %v2259, 1
    %v2261 = vadd.f32 %v2259, %v2260
    %v2262 = vsel %vm2170, %v2167, 0.0
    %v2263 = vrot.slane %v2262, 4
    %v2264 = vadd.f32 %v2262, %v2263
    %v2265 = vrot.slane %v2264, 2
    %v2266 = vadd.f32 %v2264, %v2265
    %v2267 = vrot.slane %v2266, 1
    %v2268 = vadd.f32 %v2266, %v2267
    %v2269 = vsel %vm2170, %v2168, 0.0
    %v2270 = vrot.slane %v2269, 4
    %v2271 = vadd.f32 %v2269, %v2270
    %v2272 = vrot.slane %v2271, 2
    %v2273 = vadd.f32 %v2271, %v2272
    %v2274 = vrot.slane %v2273, 1
    %v2275 = vadd.f32 %v2273, %v2274
    %v2276 = vsel %vm2170, %v2169, 0.0
    %v2277 = vrot.slane %v2276, 4
    %v2278 = vadd.f32 %v2276, %v2277
    %v2279 = vrot.slane %v2278, 2
    %v2280 = vadd.f32 %v2278, %v2279
    %v2281 = vrot.slane %v2280, 1
    %v2282 = vadd.f32 %v2280, %v2281
    %2283 = vrot.lane.b32.xlu0 %v457, 104
    %v2284 = vpop.permute.xlu0 %2283
    %2285 = vrot.lane.b32.xlu0 %v458, 104
    %v2286 = vpop.permute.xlu0 %2285
    %2287 = vrot.lane.b32.xlu0 %v459, 104
    %v2288 = vpop.permute.xlu0 %2287
    %2289 = vrot.lane.b32.xlu0 %v460, 104
    %v2290 = vpop.permute.xlu0 %2289
    %2291 = vrot.lane.b32.xlu0 %v461, 104
    %v2292 = vpop.permute.xlu0 %2291
    %2293 = vrot.lane.b32.xlu0 %v462, 104
    %v2294 = vpop.permute.xlu0 %2293
    %2295 = vrot.lane.b32.xlu0 %v463, 104
    %v2296 = vpop.permute.xlu0 %2295
    %2297 = vrot.lane.b32.xlu0 %v464, 104
    %v2298 = vpop.permute.xlu0 %2297
    %2299 = vrot.lane.b32.xlu0 %v465, 104
    %v2300 = vpop.permute.xlu0 %2299
    %2301 = vrot.lane.b32.xlu0 %v466, 104
    %v2302 = vpop.permute.xlu0 %2301
    %2303 = vrot.lane.b32.xlu0 %v467, 104
    %v2304 = vpop.permute.xlu0 %2303
    %2305 = vrot.lane.b32.xlu0 %v468, 104
    %v2306 = vpop.permute.xlu0 %2305
    %2307 = vrot.lane.b32.xlu0 %v469, 104
    %v2308 = vpop.permute.xlu0 %2307
    %2309 = vrot.lane.b32.xlu0 %v470, 104
    %v2310 = vpop.permute.xlu0 %2309
    %2311 = vrot.lane.b32.xlu0 %v471, 104
    %v2312 = vpop.permute.xlu0 %2311
    %2313 = vrot.lane.b32.xlu0 %v472, 104
    %v2314 = vpop.permute.xlu0 %2313
    %v2331 = vsel %vm473, %v2284, 0.0
    %2332 = vadd.xlane.f32.xlu0 %v2331
    %v2333 = vpop.xlane.xlu0 %2332
    %v2334 = vsel %vm473, %v2286, 0.0
    %2335 = vadd.xlane.f32.xlu0 %v2334
    %v2336 = vpop.xlane.xlu0 %2335
    %v2337 = vsel %vm473, %v2288, 0.0
    %2338 = vadd.xlane.f32.xlu0 %v2337
    %v2339 = vpop.xlane.xlu0 %2338
    %v2340 = vsel %vm473, %v2290, 0.0
    %2341 = vadd.xlane.f32.xlu0 %v2340
    %v2342 = vpop.xlane.xlu0 %2341
    %v2343 = vsel %vm473, %v2292, 0.0
    %2344 = vadd.xlane.f32.xlu0 %v2343
    %v2345 = vpop.xlane.xlu0 %2344
    %v2346 = vsel %vm473, %v2294, 0.0
    %2347 = vadd.xlane.f32.xlu0 %v2346
    %v2348 = vpop.xlane.xlu0 %2347
    %v2349 = vsel %vm473, %v2296, 0.0
    %2350 = vadd.xlane.f32.xlu0 %v2349
    %v2351 = vpop.xlane.xlu0 %2350
    %v2352 = vsel %vm473, %v2298, 0.0
    %2353 = vadd.xlane.f32.xlu0 %v2352
    %v2354 = vpop.xlane.xlu0 %2353
    %v2355 = vsel %vm473, %v2300, 0.0
    %2356 = vadd.xlane.f32.xlu0 %v2355
    %v2357 = vpop.xlane.xlu0 %2356
    %v2358 = vsel %vm473, %v2302, 0.0
    %2359 = vadd.xlane.f32.xlu0 %v2358
    %v2360 = vpop.xlane.xlu0 %2359
    %v2361 = vsel %vm473, %v2304, 0.0
    %2362 = vadd.xlane.f32.xlu0 %v2361
    %v2363 = vpop.xlane.xlu0 %2362
    %v2364 = vsel %vm473, %v2306, 0.0
    %2365 = vadd.xlane.f32.xlu0 %v2364
    %v2366 = vpop.xlane.xlu0 %2365
    %v2367 = vsel %vm473, %v2308, 0.0
    %2368 = vadd.xlane.f32.xlu0 %v2367
    %v2369 = vpop.xlane.xlu0 %2368
    %v2370 = vsel %vm473, %v2310, 0.0
    %2371 = vadd.xlane.f32.xlu0 %v2370
    %v2372 = vpop.xlane.xlu0 %2371
    %v2373 = vsel %vm473, %v2312, 0.0
    %2374 = vadd.xlane.f32.xlu0 %v2373
    %v2375 = vpop.xlane.xlu0 %2374
    %v2376 = vsel %vm473, %v2314, 0.0
    %2377 = vadd.xlane.f32.xlu0 %v2376
    %v2378 = vpop.xlane.xlu0 %2377
    %v2379 = vmul.f32 %v2333, 0.35355338
    %v2380 = vmul.f32 %v2336, 0.35355338
    %v2381 = vmul.f32 %v2339, 0.35355338
    %v2382 = vmul.f32 %v2342, 0.35355338
    %v2383 = vmul.f32 %v2345, 0.35355338
    %v2384 = vmul.f32 %v2348, 0.35355338
    %v2385 = vmul.f32 %v2351, 0.35355338
    %v2386 = vmul.f32 %v2354, 0.35355338
    %v2387 = vmul.f32 %v2357, 0.35355338
    %v2388 = vmul.f32 %v2360, 0.35355338
    %v2389 = vmul.f32 %v2363, 0.35355338
    %v2390 = vmul.f32 %v2366, 0.35355338
    %v2391 = vmul.f32 %v2369, 0.35355338
    %v2392 = vmul.f32 %v2372, 0.35355338
    %v2393 = vmul.f32 %v2375, 0.35355338
    %v2394 = vmul.f32 %v2378, 0.35355338
    %v2411 = vperm.slane %v2379, %v555
    %v2412 = vperm.slane %v2380, %v555
    %v2413 = vperm.slane %v2381, %v555
    %v2414 = vperm.slane %v2382, %v555
    %v2415 = vperm.slane %v2383, %v555
    %v2416 = vperm.slane %v2384, %v555
    %v2417 = vperm.slane %v2385, %v555
    %v2418 = vperm.slane %v2386, %v555
    %v2419 = vperm.slane %v2387, %v555
    %v2420 = vperm.slane %v2388, %v555
    %v2421 = vperm.slane %v2389, %v555
    %v2422 = vperm.slane %v2390, %v555
    %v2423 = vperm.slane %v2391, %v555
    %v2424 = vperm.slane %v2392, %v555
    %v2425 = vperm.slane %v2393, %v555
    %v2426 = vperm.slane %v2394, %v555
    %v2427 = vsel %vm572, %v2412, %v2411
    %v2428 = vsel %vm574, %v2413, %v2427
    %v2429 = vsel %vm576, %v2414, %v2428
    %v2430 = vsel %vm578, %v2415, %v2429
    %v2431 = vsel %vm580, %v2416, %v2430
    %v2432 = vsel %vm582, %v2417, %v2431
    %v2433 = vsel %vm584, %v2418, %v2432
    %v2434 = vsel %vm572, %v2420, %v2419
    %v2435 = vsel %vm574, %v2421, %v2434
    %v2436 = vsel %vm576, %v2422, %v2435
    %v2437 = vsel %vm578, %v2423, %v2436
    %v2438 = vsel %vm580, %v2424, %v2437
    %v2439 = vsel %vm582, %v2425, %v2438
    %v2440 = vsel %vm584, %v2426, %v2439
    %v2443 = vsel %vm473, %v2433, -inf
    %2444 = vmax.xlane.f32.xlu0 %v2443
    %v2445 = vpop.xlane.xlu0 %2444
    %v2446 = vsel %vm473, %v2440, -inf
    %2447 = vmax.xlane.f32.xlu0 %v2446
    %v2448 = vpop.xlane.xlu0 %2447
    %v2451 = vperm.slane %v2445, 0
    %v2452 = vperm.slane %v2445, 1
    %v2453 = vperm.slane %v2445, 2
    %v2454 = vperm.slane %v2445, 3
    %v2455 = vperm.slane %v2445, 4
    %v2456 = vperm.slane %v2445, 5
    %v2457 = vperm.slane %v2445, 6
    %v2458 = vperm.slane %v2445, 7
    %v2459 = vperm.slane %v2448, 0
    %v2460 = vperm.slane %v2448, 1
    %v2461 = vperm.slane %v2448, 2
    %v2462 = vperm.slane %v2448, 3
    %v2463 = vperm.slane %v2448, 4
    %v2464 = vperm.slane %v2448, 5
    %v2465 = vperm.slane %v2448, 6
    %v2466 = vperm.slane %v2448, 7
    %v2483 = vsub.f32 %v2379, %v2451
    %v2484 = vsub.f32 %v2380, %v2452
    %v2485 = vsub.f32 %v2381, %v2453
    %v2486 = vsub.f32 %v2382, %v2454
    %v2487 = vsub.f32 %v2383, %v2455
    %v2488 = vsub.f32 %v2384, %v2456
    %v2489 = vsub.f32 %v2385, %v2457
    %v2490 = vsub.f32 %v2386, %v2458
    %v2491 = vsub.f32 %v2387, %v2459
    %v2492 = vsub.f32 %v2388, %v2460
    %v2493 = vsub.f32 %v2389, %v2461
    %v2494 = vsub.f32 %v2390, %v2462
    %v2495 = vsub.f32 %v2391, %v2463
    %v2496 = vsub.f32 %v2392, %v2464
    %v2497 = vsub.f32 %v2393, %v2465
    %v2498 = vsub.f32 %v2394, %v2466
    %v2499 = vmul.f32 %v2483, 1.442695
    %v2500 = vpow.pop %v2499
    %v2501 = vmul.f32 %v2484, 1.442695
    %v2502 = vpow.pop %v2501
    %v2503 = vmul.f32 %v2485, 1.442695
    %v2504 = vpow.pop %v2503
    %v2505 = vmul.f32 %v2486, 1.442695
    %v2506 = vpow.pop %v2505
    %v2507 = vmul.f32 %v2487, 1.442695
    %v2508 = vpow.pop %v2507
    %v2509 = vmul.f32 %v2488, 1.442695
    %v2510 = vpow.pop %v2509
    %v2511 = vmul.f32 %v2489, 1.442695
    %v2512 = vpow.pop %v2511
    %v2513 = vmul.f32 %v2490, 1.442695
    %v2514 = vpow.pop %v2513
    %v2515 = vmul.f32 %v2491, 1.442695
    %v2516 = vpow.pop %v2515
    %v2517 = vmul.f32 %v2492, 1.442695
    %v2518 = vpow.pop %v2517
    %v2519 = vmul.f32 %v2493, 1.442695
    %v2520 = vpow.pop %v2519
    %v2521 = vmul.f32 %v2494, 1.442695
    %v2522 = vpow.pop %v2521
    %v2523 = vmul.f32 %v2495, 1.442695
    %v2524 = vpow.pop %v2523
    %v2525 = vmul.f32 %v2496, 1.442695
    %v2526 = vpow.pop %v2525
    %v2527 = vmul.f32 %v2497, 1.442695
    %v2528 = vpow.pop %v2527
    %v2529 = vmul.f32 %v2498, 1.442695
    %v2530 = vpow.pop %v2529
    %2547 = vset.pattern.permute.xlu0 0
    %2548 = vperm.xlu0 %2547, %v2500
    %v2549 = vpop.permute.xlu0 %2548
    %2550 = vset.pattern.permute.xlu0 0
    %2551 = vperm.xlu0 %2550, %v2502
    %v2552 = vpop.permute.xlu0 %2551
    %2553 = vset.pattern.permute.xlu0 0
    %2554 = vperm.xlu0 %2553, %v2504
    %v2555 = vpop.permute.xlu0 %2554
    %2556 = vset.pattern.permute.xlu0 0
    %2557 = vperm.xlu0 %2556, %v2506
    %v2558 = vpop.permute.xlu0 %2557
    %2559 = vset.pattern.permute.xlu0 0
    %2560 = vperm.xlu0 %2559, %v2508
    %v2561 = vpop.permute.xlu0 %2560
    %2562 = vset.pattern.permute.xlu0 0
    %2563 = vperm.xlu0 %2562, %v2510
    %v2564 = vpop.permute.xlu0 %2563
    %2565 = vset.pattern.permute.xlu0 0
    %2566 = vperm.xlu0 %2565, %v2512
    %v2567 = vpop.permute.xlu0 %2566
    %2568 = vset.pattern.permute.xlu0 0
    %2569 = vperm.xlu0 %2568, %v2514
    %v2570 = vpop.permute.xlu0 %2569
    %2571 = vset.pattern.permute.xlu0 0
    %2572 = vperm.xlu0 %2571, %v2516
    %v2573 = vpop.permute.xlu0 %2572
    %2574 = vset.pattern.permute.xlu0 0
    %2575 = vperm.xlu0 %2574, %v2518
    %v2576 = vpop.permute.xlu0 %2575
    %2577 = vset.pattern.permute.xlu0 0
    %2578 = vperm.xlu0 %2577, %v2520
    %v2579 = vpop.permute.xlu0 %2578
    %2580 = vset.pattern.permute.xlu0 0
    %2581 = vperm.xlu0 %2580, %v2522
    %v2582 = vpop.permute.xlu0 %2581
    %2583 = vset.pattern.permute.xlu0 0
    %2584 = vperm.xlu0 %2583, %v2524
    %v2585 = vpop.permute.xlu0 %2584
    %2586 = vset.pattern.permute.xlu0 0
    %2587 = vperm.xlu0 %2586, %v2526
    %v2588 = vpop.permute.xlu0 %2587
    %2589 = vset.pattern.permute.xlu0 0
    %2590 = vperm.xlu0 %2589, %v2528
    %v2591 = vpop.permute.xlu0 %2590
    %2592 = vset.pattern.permute.xlu0 0
    %2593 = vperm.xlu0 %2592, %v2530
    %v2594 = vpop.permute.xlu0 %2593
    %v2595 = vperm.slane %v2549, %v555
    %v2596 = vperm.slane %v2552, %v555
    %v2597 = vperm.slane %v2555, %v555
    %v2598 = vperm.slane %v2558, %v555
    %v2599 = vperm.slane %v2561, %v555
    %v2600 = vperm.slane %v2564, %v555
    %v2601 = vperm.slane %v2567, %v555
    %v2602 = vperm.slane %v2570, %v555
    %v2603 = vperm.slane %v2573, %v555
    %v2604 = vperm.slane %v2576, %v555
    %v2605 = vperm.slane %v2579, %v555
    %v2606 = vperm.slane %v2582, %v555
    %v2607 = vperm.slane %v2585, %v555
    %v2608 = vperm.slane %v2588, %v555
    %v2609 = vperm.slane %v2591, %v555
    %v2610 = vperm.slane %v2594, %v555
    %v2611 = vsel %vm572, %v2596, %v2595
    %v2612 = vsel %vm574, %v2597, %v2611
    %v2613 = vsel %vm576, %v2598, %v2612
    %v2614 = vsel %vm578, %v2599, %v2613
    %v2615 = vsel %vm580, %v2600, %v2614
    %v2616 = vsel %vm582, %v2601, %v2615
    %v2617 = vsel %vm584, %v2602, %v2616
    %v2618 = vsel %vm572, %v2604, %v2603
    %v2619 = vsel %vm574, %v2605, %v2618
    %v2620 = vsel %vm576, %v2606, %v2619
    %v2621 = vsel %vm578, %v2607, %v2620
    %v2622 = vsel %vm580, %v2608, %v2621
    %v2623 = vsel %vm582, %v2609, %v2622
    %v2624 = vsel %vm584, %v2610, %v2623
    %v2627 = vsel %vm473, %v2617, 0.0
    %2628 = vadd.xlane.f32.xlu0 %v2627
    %v2629 = vpop.xlane.xlu0 %2628
    %v2630 = vsel %vm473, %v2624, 0.0
    %2631 = vadd.xlane.f32.xlu0 %v2630
    %v2632 = vpop.xlane.xlu0 %2631
    %v2633 = vrcp.pop %v2629
    %v2634 = vrcp.pop %v2632
    %v2637 = vperm.slane %v2633, 0
    %v2638 = vperm.slane %v2633, 1
    %v2639 = vperm.slane %v2633, 2
    %v2640 = vperm.slane %v2633, 3
    %v2641 = vperm.slane %v2633, 4
    %v2642 = vperm.slane %v2633, 5
    %v2643 = vperm.slane %v2633, 6
    %v2644 = vperm.slane %v2633, 7
    %v2645 = vperm.slane %v2634, 0
    %v2646 = vperm.slane %v2634, 1
    %v2647 = vperm.slane %v2634, 2
    %v2648 = vperm.slane %v2634, 3
    %v2649 = vperm.slane %v2634, 4
    %v2650 = vperm.slane %v2634, 5
    %v2651 = vperm.slane %v2634, 6
    %v2652 = vperm.slane %v2634, 7
    %v2669 = vmul.f32 %v2500, %v2637
    %v2670 = vmul.f32 %v2502, %v2638
    %v2671 = vmul.f32 %v2504, %v2639
    %v2672 = vmul.f32 %v2506, %v2640
    %v2673 = vmul.f32 %v2508, %v2641
    %v2674 = vmul.f32 %v2510, %v2642
    %v2675 = vmul.f32 %v2512, %v2643
    %v2676 = vmul.f32 %v2514, %v2644
    %v2677 = vmul.f32 %v2516, %v2645
    %v2678 = vmul.f32 %v2518, %v2646
    %v2679 = vmul.f32 %v2520, %v2647
    %v2680 = vmul.f32 %v2522, %v2648
    %v2681 = vmul.f32 %v2524, %v2649
    %v2682 = vmul.f32 %v2526, %v2650
    %v2683 = vmul.f32 %v2528, %v2651
    %v2684 = vmul.f32 %v2530, %v2652
    %2686 = vset.pattern.permute.xlu0 0
    %2687 = vperm.xlu0 %2686, %v2669
    %v2688 = vpop.permute.xlu0 %2687
    %2691 = vset.pattern.permute.xlu0 0
    %2692 = vperm.xlu0 %2691, %v2670
    %v2693 = vpop.permute.xlu0 %2692
    %2696 = vset.pattern.permute.xlu0 0
    %2697 = vperm.xlu0 %2696, %v2671
    %v2698 = vpop.permute.xlu0 %2697
    %2701 = vset.pattern.permute.xlu0 0
    %2702 = vperm.xlu0 %2701, %v2672
    %v2703 = vpop.permute.xlu0 %2702
    %2706 = vset.pattern.permute.xlu0 0
    %2707 = vperm.xlu0 %2706, %v2673
    %v2708 = vpop.permute.xlu0 %2707
    %2711 = vset.pattern.permute.xlu0 0
    %2712 = vperm.xlu0 %2711, %v2674
    %v2713 = vpop.permute.xlu0 %2712
    %2716 = vset.pattern.permute.xlu0 0
    %2717 = vperm.xlu0 %2716, %v2675
    %v2718 = vpop.permute.xlu0 %2717
    %2721 = vset.pattern.permute.xlu0 0
    %2722 = vperm.xlu0 %2721, %v2676
    %v2723 = vpop.permute.xlu0 %2722
    %2726 = vset.pattern.permute.xlu0 0
    %2727 = vperm.xlu0 %2726, %v2677
    %v2728 = vpop.permute.xlu0 %2727
    %2731 = vset.pattern.permute.xlu0 0
    %2732 = vperm.xlu0 %2731, %v2678
    %v2733 = vpop.permute.xlu0 %2732
    %2736 = vset.pattern.permute.xlu0 0
    %2737 = vperm.xlu0 %2736, %v2679
    %v2738 = vpop.permute.xlu0 %2737
    %2741 = vset.pattern.permute.xlu0 0
    %2742 = vperm.xlu0 %2741, %v2680
    %v2743 = vpop.permute.xlu0 %2742
    %2746 = vset.pattern.permute.xlu0 0
    %2747 = vperm.xlu0 %2746, %v2681
    %v2748 = vpop.permute.xlu0 %2747
    %2751 = vset.pattern.permute.xlu0 0
    %2752 = vperm.xlu0 %2751, %v2682
    %v2753 = vpop.permute.xlu0 %2752
    %2756 = vset.pattern.permute.xlu0 0
    %2757 = vperm.xlu0 %2756, %v2683
    %v2758 = vpop.permute.xlu0 %2757
    %2761 = vset.pattern.permute.xlu0 0
    %2762 = vperm.xlu0 %2761, %v2684
    %v2763 = vpop.permute.xlu0 %2762
    %v2765 = vmul.f32 %v2688, %v405
    %v2766 = vmul.f32 %v2693, %v405
    %v2767 = vmul.f32 %v2698, %v405
    %v2768 = vmul.f32 %v2703, %v405
    %v2769 = vmul.f32 %v2708, %v405
    %v2770 = vmul.f32 %v2713, %v405
    %v2771 = vmul.f32 %v2718, %v405
    %v2772 = vmul.f32 %v2723, %v405
    %v2773 = vmul.f32 %v2728, %v407
    %v2774 = vmul.f32 %v2733, %v407
    %v2775 = vmul.f32 %v2738, %v407
    %v2776 = vmul.f32 %v2743, %v407
    %v2777 = vmul.f32 %v2748, %v407
    %v2778 = vmul.f32 %v2753, %v407
    %v2779 = vmul.f32 %v2758, %v407
    %v2780 = vmul.f32 %v2763, %v407
    %vm2781 = vcmask 261312
    %v2782 = vsel %vm2781, %v2765, 0.0
    %v2783 = vrot.slane %v2782, 4
    %v2784 = vadd.f32 %v2782, %v2783
    %v2785 = vrot.slane %v2784, 2
    %v2786 = vadd.f32 %v2784, %v2785
    %v2787 = vrot.slane %v2786, 1
    %v2788 = vadd.f32 %v2786, %v2787
    %v2789 = vsel %vm2781, %v2766, 0.0
    %v2790 = vrot.slane %v2789, 4
    %v2791 = vadd.f32 %v2789, %v2790
    %v2792 = vrot.slane %v2791, 2
    %v2793 = vadd.f32 %v2791, %v2792
    %v2794 = vrot.slane %v2793, 1
    %v2795 = vadd.f32 %v2793, %v2794
    %v2796 = vsel %vm2781, %v2767, 0.0
    %v2797 = vrot.slane %v2796, 4
    %v2798 = vadd.f32 %v2796, %v2797
    %v2799 = vrot.slane %v2798, 2
    %v2800 = vadd.f32 %v2798, %v2799
    %v2801 = vrot.slane %v2800, 1
    %v2802 = vadd.f32 %v2800, %v2801
    %v2803 = vsel %vm2781, %v2768, 0.0
    %v2804 = vrot.slane %v2803, 4
    %v2805 = vadd.f32 %v2803, %v2804
    %v2806 = vrot.slane %v2805, 2
    %v2807 = vadd.f32 %v2805, %v2806
    %v2808 = vrot.slane %v2807, 1
    %v2809 = vadd.f32 %v2807, %v2808
    %v2810 = vsel %vm2781, %v2769, 0.0
    %v2811 = vrot.slane %v2810, 4
    %v2812 = vadd.f32 %v2810, %v2811
    %v2813 = vrot.slane %v2812, 2
    %v2814 = vadd.f32 %v2812, %v2813
    %v2815 = vrot.slane %v2814, 1
    %v2816 = vadd.f32 %v2814, %v2815
    %v2817 = vsel %vm2781, %v2770, 0.0
    %v2818 = vrot.slane %v2817, 4
    %v2819 = vadd.f32 %v2817, %v2818
    %v2820 = vrot.slane %v2819, 2
    %v2821 = vadd.f32 %v2819, %v2820
    %v2822 = vrot.slane %v2821, 1
    %v2823 = vadd.f32 %v2821, %v2822
    %v2824 = vsel %vm2781, %v2771, 0.0
    %v2825 = vrot.slane %v2824, 4
    %v2826 = vadd.f32 %v2824, %v2825
    %v2827 = vrot.slane %v2826, 2
    %v2828 = vadd.f32 %v2826, %v2827
    %v2829 = vrot.slane %v2828, 1
    %v2830 = vadd.f32 %v2828, %v2829
    %v2831 = vsel %vm2781, %v2772, 0.0
    %v2832 = vrot.slane %v2831, 4
    %v2833 = vadd.f32 %v2831, %v2832
    %v2834 = vrot.slane %v2833, 2
    %v2835 = vadd.f32 %v2833, %v2834
    %v2836 = vrot.slane %v2835, 1
    %v2837 = vadd.f32 %v2835, %v2836
    %v2838 = vsel %vm2781, %v2773, 0.0
    %v2839 = vrot.slane %v2838, 4
    %v2840 = vadd.f32 %v2838, %v2839
    %v2841 = vrot.slane %v2840, 2
    %v2842 = vadd.f32 %v2840, %v2841
    %v2843 = vrot.slane %v2842, 1
    %v2844 = vadd.f32 %v2842, %v2843
    %v2845 = vsel %vm2781, %v2774, 0.0
    %v2846 = vrot.slane %v2845, 4
    %v2847 = vadd.f32 %v2845, %v2846
    %v2848 = vrot.slane %v2847, 2
    %v2849 = vadd.f32 %v2847, %v2848
    %v2850 = vrot.slane %v2849, 1
    %v2851 = vadd.f32 %v2849, %v2850
    %v2852 = vsel %vm2781, %v2775, 0.0
    %v2853 = vrot.slane %v2852, 4
    %v2854 = vadd.f32 %v2852, %v2853
    %v2855 = vrot.slane %v2854, 2
    %v2856 = vadd.f32 %v2854, %v2855
    %v2857 = vrot.slane %v2856, 1
    %v2858 = vadd.f32 %v2856, %v2857
    %v2859 = vsel %vm2781, %v2776, 0.0
    %v2860 = vrot.slane %v2859, 4
    %v2861 = vadd.f32 %v2859, %v2860
    %v2862 = vrot.slane %v2861, 2
    %v2863 = vadd.f32 %v2861, %v2862
    %v2864 = vrot.slane %v2863, 1
    %v2865 = vadd.f32 %v2863, %v2864
    %v2866 = vsel %vm2781, %v2777, 0.0
    %v2867 = vrot.slane %v2866, 4
    %v2868 = vadd.f32 %v2866, %v2867
    %v2869 = vrot.slane %v2868, 2
    %v2870 = vadd.f32 %v2868, %v2869
    %v2871 = vrot.slane %v2870, 1
    %v2872 = vadd.f32 %v2870, %v2871
    %v2873 = vsel %vm2781, %v2778, 0.0
    %v2874 = vrot.slane %v2873, 4
    %v2875 = vadd.f32 %v2873, %v2874
    %v2876 = vrot.slane %v2875, 2
    %v2877 = vadd.f32 %v2875, %v2876
    %v2878 = vrot.slane %v2877, 1
    %v2879 = vadd.f32 %v2877, %v2878
    %v2880 = vsel %vm2781, %v2779, 0.0
    %v2881 = vrot.slane %v2880, 4
    %v2882 = vadd.f32 %v2880, %v2881
    %v2883 = vrot.slane %v2882, 2
    %v2884 = vadd.f32 %v2882, %v2883
    %v2885 = vrot.slane %v2884, 1
    %v2886 = vadd.f32 %v2884, %v2885
    %v2887 = vsel %vm2781, %v2780, 0.0
    %v2888 = vrot.slane %v2887, 4
    %v2889 = vadd.f32 %v2887, %v2888
    %v2890 = vrot.slane %v2889, 2
    %v2891 = vadd.f32 %v2889, %v2890
    %v2892 = vrot.slane %v2891, 1
    %v2893 = vadd.f32 %v2891, %v2892
    %v2910 = vsel %vm572, %v946, %v939
    %v2911 = vsel %vm574, %v953, %v2910
    %v2912 = vsel %vm576, %v960, %v2911
    %v2913 = vsel %vm578, %v967, %v2912
    %v2914 = vsel %vm580, %v974, %v2913
    %v2915 = vsel %vm582, %v981, %v2914
    %v2916 = vsel %vm584, %v988, %v2915
    %v2917 = vsel %vm572, %v1002, %v995
    %v2918 = vsel %vm574, %v1009, %v2917
    %v2919 = vsel %vm576, %v1016, %v2918
    %v2920 = vsel %vm578, %v1023, %v2919
    %v2921 = vsel %vm580, %v1030, %v2920
    %v2922 = vsel %vm582, %v1037, %v2921
    %v2923 = vsel %vm584, %v1044, %v2922
    %v2942 = vsel %vm572, %v1573, %v1566
    %v2943 = vsel %vm574, %v1580, %v2942
    %v2944 = vsel %vm576, %v1587, %v2943
    %v2945 = vsel %vm578, %v1594, %v2944
    %v2946 = vsel %vm580, %v1601, %v2945
    %v2947 = vsel %vm582, %v1608, %v2946
    %v2948 = vsel %vm584, %v1615, %v2947
    %v2949 = vsel %vm572, %v1629, %v1622
    %v2950 = vsel %vm574, %v1636, %v2949
    %v2951 = vsel %vm576, %v1643, %v2950
    %v2952 = vsel %vm578, %v1650, %v2951
    %v2953 = vsel %vm580, %v1657, %v2952
    %v2954 = vsel %vm582, %v1664, %v2953
    %v2955 = vsel %vm584, %v1671, %v2954
    %v2974 = vsel %vm572, %v2184, %v2177
    %v2975 = vsel %vm574, %v2191, %v2974
    %v2976 = vsel %vm576, %v2198, %v2975
    %v2977 = vsel %vm578, %v2205, %v2976
    %v2978 = vsel %vm580, %v2212, %v2977
    %v2979 = vsel %vm582, %v2219, %v2978
    %v2980 = vsel %vm584, %v2226, %v2979
    %v2981 = vsel %vm572, %v2240, %v2233
    %v2982 = vsel %vm574, %v2247, %v2981
    %v2983 = vsel %vm576, %v2254, %v2982
    %v2984 = vsel %vm578, %v2261, %v2983
    %v2985 = vsel %vm580, %v2268, %v2984
    %v2986 = vsel %vm582, %v2275, %v2985
    %v2987 = vsel %vm584, %v2282, %v2986
    %v3006 = vsel %vm572, %v2795, %v2788
    %v3007 = vsel %vm574, %v2802, %v3006
    %v3008 = vsel %vm576, %v2809, %v3007
    %v3009 = vsel %vm578, %v2816, %v3008
    %v3010 = vsel %vm580, %v2823, %v3009
    %v3011 = vsel %vm582, %v2830, %v3010
    %v3012 = vsel %vm584, %v2837, %v3011
    %v3013 = vsel %vm572, %v2851, %v2844
    %v3014 = vsel %vm574, %v2858, %v3013
    %v3015 = vsel %vm576, %v2865, %v3014
    %v3016 = vsel %vm578, %v2872, %v3015
    %v3017 = vsel %vm580, %v2879, %v3016
    %v3018 = vsel %vm582, %v2886, %v3017
    %v3019 = vsel %vm584, %v2893, %v3018
    %v3022 = vsel %vm473, %v2916, %v2948
    %v3023 = vsel %vm473, %v2923, %v2955
    %vm3024 = vcmask 130048
    %v3025 = vsel %vm3024, %v3022, %v2980
    %v3026 = vsel %vm3024, %v3023, %v2987
    %vm3027 = vcmask 195584
    %v3028 = vsel %vm3027, %v3025, %v3012
    %v3029 = vsel %vm3027, %v3026, %v3019
    %v3030 = vpack.c.bf16 %v3029, %v3028
    %v3031 = vld [vmem:[#allocation8] sm:$0xf]
    %v3032 = vld [vmem:[#allocation8 + $0x4] sm:$0xf]
    %v3033 = vld [vmem:[#allocation8 + $0x8] sm:$0xf]
    %v3034 = vld [vmem:[#allocation8 + $0xc] sm:$0xf]
    %v3035 = vld [vmem:[#allocation11 + $0xb] sm:$0x1]
    %v3036 = vperm.slane %v3035, 0
    %v3041 = vunpack.c.l.b16 %v3031
    %v3042 = vunpack.c.l.b16 %v3032
    %v3043 = vunpack.c.l.b16 %v3033
    %v3044 = vunpack.c.l.b16 %v3034
    %v3045 = vpack.c.b16 %v3042, %v3041
    %v3046 = vpack.c.b16 %v3044, %v3043
    %v3050 = vsel %vm139, %v3030, 0
    %3052 = vmatpush.bf16.msra.mxu0 0
    %3053 = vmatpush.bf16.msra.mxu0 0
    %3054 = vmatpush.bf16.msra.mxu0 0
    %3055 = vmatpush.bf16.msra.mxu0 0
    %3056 = vmatpush.bf16.msra.mxu0 0
    %3057 = vmatpush.bf16.msra.mxu0 0
    %3058 = vmatpush.bf16.msra.mxu0 %v3046
    %3059 = vmatpush.bf16.msra.mxu0 %v3045
    %3060 = vmatmul.bf16.gmra.mxu0 %v3050
    %v3061 = vpop.f32.mrf.mxu0
    %v3062 = vadd.f32 %v3036, %v3061
    %v3063 = vpop.f32.mrf.mxu0
    %v3064 = vadd.f32 %v3036, %v3063
    %3065 = vdwg.mxu0
    %v3066 = vadd.f32 %v131, %v3062
    %v3067 = vadd.f32 %v132, %v3064
    %v3068 = vld [vmem:[#allocation11 + $0x6] sm:$0x1]
    %v3069 = vld [vmem:[#allocation11 + $0x7] sm:$0x1]
    %v3070 = vsel %vm139, %v3066, 0.0
    %3071 = vadd.xlane.f32.xlu0 %v3070
    %v3072 = vpop.xlane.xlu0 %3071
    %v3073 = vsel %vm139, %v3067, 0.0
    %3074 = vadd.xlane.f32.xlu0 %v3073
    %v3075 = vpop.xlane.xlu0 %3074
    %v3076 = vmul.f32 %v3072, %v152
    %v3077 = vmul.f32 %v3075, %v152
    %v3078 = vsub.f32 %v3066, %v3076
    %v3079 = vsub.f32 %v3067, %v3077
    %v3080 = vmul.f32 %v3078, %v3078
    %v3081 = vmul.f32 %v3079, %v3079
    %v3082 = vsel %vm139, %v3080, 0.0
    %3083 = vadd.xlane.f32.xlu0 %v3082
    %v3084 = vpop.xlane.xlu0 %3083
    %v3085 = vsel %vm139, %v3081, 0.0
    %3086 = vadd.xlane.f32.xlu0 %v3085
    %v3087 = vpop.xlane.xlu0 %3086
    %v3088 = vmul.f32 %v3084, %v152
    %v3089 = vmul.f32 %v3087, %v152
    %v3090 = vadd.f32 %v3088, 1e-05
    %v3091 = vadd.f32 %v3089, 1e-05
    %v3092 = vrsqrt.pop %v3090
    %v3093 = vmul.f32 %v3092, %v3090
    %v3094 = vmul.f32 %v3093, %v3092
    %v3095 = vmul.f32 0.5, %v3094
    %v3096 = vsub.f32 1.5, %v3095
    %v3097 = vmul.f32 %v3092, %v3096
    %vm3098 = vweird.f32 %v3090
    %vm3099 = vweird.f32 %v3092
    %vm3100 = vmor %vm3098, %vm3099
    %v3101 = vsel %vm3100, %v3092, %v3097
    %v3102 = vrsqrt.pop %v3091
    %v3103 = vmul.f32 %v3102, %v3091
    %v3104 = vmul.f32 %v3103, %v3102
    %v3105 = vmul.f32 0.5, %v3104
    %v3106 = vsub.f32 1.5, %v3105
    %v3107 = vmul.f32 %v3102, %v3106
    %vm3108 = vweird.f32 %v3091
    %vm3109 = vweird.f32 %v3102
    %vm3110 = vmor %vm3108, %vm3109
    %v3111 = vsel %vm3110, %v3102, %v3107
    %v3112 = vmul.f32 %v3078, %v3101
    %v3113 = vmul.f32 %v3079, %v3111
    %v3114 = vperm.slane %v3068, 0
    %v3115 = vmul.f32 %v3112, %v3114
    %v3116 = vmul.f32 %v3113, %v3114
    %v3117 = vperm.slane %v3069, 0
    %v3118 = vadd.f32 %v3115, %v3117
    %v3119 = vadd.f32 %v3116, %v3117
    %v3120 = vpack.c.bf16 %v3119, %v3118
    %v3121 = vld [vmem:[#allocation10] sm:$0xf]
    %v3122 = vld [vmem:[#allocation10 + $0x4] sm:$0xf]
    %v3123 = vld [vmem:[#allocation10 + $0x8] sm:$0xf]
    %v3124 = vld [vmem:[#allocation10 + $0xc] sm:$0xf]
    %v3125 = vld [vmem:[#allocation11 + $0xc] sm:$0x1]
    %v3126 = vperm.slane %v3125, 0
    %v3131 = vunpack.c.l.b16 %v3121
    %v3132 = vunpack.c.l.b16 %v3122
    %v3133 = vunpack.c.l.b16 %v3123
    %v3134 = vunpack.c.l.b16 %v3124
    %v3135 = vpack.c.b16 %v3132, %v3131
    %v3136 = vpack.c.b16 %v3134, %v3133
    %v3140 = vsel %vm139, %v3120, 0
    %3142 = vmatpush.bf16.msra.mxu0 0
    %3143 = vmatpush.bf16.msra.mxu0 0
    %3144 = vmatpush.bf16.msra.mxu0 0
    %3145 = vmatpush.bf16.msra.mxu0 0
    %3146 = vmatpush.bf16.msra.mxu0 0
    %3147 = vmatpush.bf16.msra.mxu0 0
    %3148 = vmatpush.bf16.msra.mxu0 %v3136
    %3149 = vmatpush.bf16.msra.mxu0 %v3135
    %3150 = vmatmul.bf16.gmra.mxu0 %v3140
    %v3151 = vpop.f32.mrf.mxu0
    %v3152 = vadd.f32 %v3126, %v3151
    %v3153 = vpop.f32.mrf.mxu0
    %v3154 = vadd.f32 %v3126, %v3153
    %3155 = vdwg.mxu0
    %v3156 = vmax.f32 %v3152, 0.0
    %v3157 = vmax.f32 %v3154, 0.0
    %v3158 = vpack.c.bf16 %v3157, %v3156
    %v3159 = vld [vmem:[%s8] sm:$0xf]
    %v3160 = vld [vmem:[%s8 + $0x4] sm:$0xf]
    %v3161 = vld [vmem:[%s8 + $0x8] sm:$0xf]
    %v3162 = vld [vmem:[%s8 + $0xc] sm:$0xf]
    %v3163 = vld [vmem:[%s8 + $0x10] sm:$0xf]
    %v3164 = vld [vmem:[%s8 + $0x14] sm:$0xf]
    %v3165 = vld [vmem:[%s8 + $0x18] sm:$0xf]
    %v3166 = vld [vmem:[%s8 + $0x1c] sm:$0xf]
    %v3167 = vld [vmem:[#allocation11 + $0xd] sm:$0x1]
    %v3168 = vperm.slane %v3167, 0
    %v3177 = vunpack.c.l.b16 %v3159
    %v3178 = vunpack.c.l.b16 %v3160
    %v3179 = vunpack.c.l.b16 %v3161
    %v3180 = vunpack.c.l.b16 %v3162
    %v3181 = vunpack.c.l.b16 %v3163
    %v3182 = vunpack.c.l.b16 %v3164
    %v3183 = vunpack.c.l.b16 %v3165
    %v3184 = vunpack.c.l.b16 %v3166
    %v3185 = vpack.c.b16 %v3178, %v3177
    %v3186 = vpack.c.b16 %v3180, %v3179
    %v3187 = vpack.c.b16 %v3182, %v3181
    %v3188 = vpack.c.b16 %v3184, %v3183
    %vm3193 = vcmask 523264
    %v3195 = vsel %vm3193, %v3158, 0
    %3197 = vmatpush.bf16.msra.mxu0 0
    %3198 = vmatpush.bf16.msra.mxu0 0
    %3199 = vmatpush.bf16.msra.mxu0 0
    %3200 = vmatpush.bf16.msra.mxu0 0
    %3201 = vmatpush.bf16.msra.mxu0 %v3188
    %3202 = vmatpush.bf16.msra.mxu0 %v3187
    %3203 = vmatpush.bf16.msra.mxu0 %v3186
    %3204 = vmatpush.bf16.msra.mxu0 %v3185
    %3205 = vmatmul.bf16.gmra.mxu0 %v3195
    %v3206 = vpop.f32.mrf.mxu0
    %v3207 = vadd.f32 %v3168, %v3206
    %v3208 = vpop.f32.mrf.mxu0
    %v3209 = vadd.f32 %v3168, %v3208
    %3210 = vdwg.mxu0
    %v3211 = vadd.f32 %v3066, %v3207
    %v3212 = vadd.f32 %v3067, %v3209
    %v3215 = vrot.slane %v3212, 7
    %v3216 = vsel %vm572, %v3215, %v3211
    %v3218 = vrot.slane %v3211, 1
    %v3219 = vsel %vm572, %v3212, %v3218
    %3220 = vrot.lane.b32.xlu0 %v3219, 32
    %v3221 = vpop.permute.xlu0 %3220
    %v3223 = vrot.slane %v3211, 2
    %v3224 = vrot.slane %v3212, 1
    %v3225 = vsel %vm572, %v3224, %v3223
    %3226 = vrot.lane.b32.xlu0 %v3225, 64
    %v3227 = vpop.permute.xlu0 %3226
    %v3229 = vrot.slane %v3211, 3
    %v3230 = vrot.slane %v3212, 2
    %v3231 = vsel %vm572, %v3230, %v3229
    %3232 = vrot.lane.b32.xlu0 %v3231, 96
    %v3233 = vpop.permute.xlu0 %3232
    %v3235 = vrot.slane %v3211, 4
    %v3236 = vrot.slane %v3212, 3
    %v3237 = vsel %vm572, %v3236, %v3235
    %v3239 = vrot.slane %v3211, 5
    %v3240 = vrot.slane %v3212, 4
    %v3241 = vsel %vm572, %v3240, %v3239
    %3242 = vrot.lane.b32.xlu0 %v3241, 32
    %v3243 = vpop.permute.xlu0 %3242
    %v3245 = vrot.slane %v3211, 6
    %v3246 = vrot.slane %v3212, 5
    %v3247 = vsel %vm572, %v3246, %v3245
    %3248 = vrot.lane.b32.xlu0 %v3247, 64
    %v3249 = vpop.permute.xlu0 %3248
    %v3251 = vrot.slane %v3211, 7
    %v3252 = vrot.slane %v3212, 6
    %v3253 = vsel %vm572, %v3252, %v3251
    %3254 = vrot.lane.b32.xlu0 %v3253, 96
    %v3255 = vpop.permute.xlu0 %3254
    %v3257 = vsel %vm139, %v3216, %v3221
    %v3258 = vsel %vm3193, %v3257, %v3227
    %vm3259 = vcmask 785408
    %v3260 = vsel %vm3259, %v3258, %v3233
    %v3261 = vsel %vm139, %v3237, %v3243
    %v3262 = vsel %vm3193, %v3261, %v3249
    %v3263 = vsel %vm3259, %v3262, %v3255
    %v3266 = vrot.slane %v3263, 6
    %vm3267 = vcmask 1041408
    %v3268 = vsel %vm3267, %v3260, %v3266
    %3270 = vst [vmem:[#allocation13] sm:$0xf] %v3268
    // Predicated region
    $region66: #{tpu_custom_call.1} parent=1 // pred_check
      _
    $region67: #{tpu_custom_call.1} parent=1 // pred_check_branch
      %3272 = sbr.rel (0) target = $region69
    $region68: #{tpu_custom_call.1} parent=1 // pred_region
      %3274 = vsyncadd [#allocation4], 0
      %s3276 = sshll.u32 [#allocation13], 4
      %s3277 = int_to_ptr.vmem [resolvable:$true] %s3276
      %s3278 = sshll.u32 %s10, 4
      %s3279 = int_to_ptr.hbm [resolvable:$true] %s3278
      %3281 = dma.vmem_to_hbm [thread:$0]  %s3277, 64, %s3279, [#allocation4]
    $region69: #{tpu_custom_call.1} parent=1 // pred_fallthru
      _
    // Predicated region
    $region70: #{tpu_custom_call.1} parent=1 // pred_check
      _
    $region71: #{tpu_custom_call.1} parent=1 // pred_check_branch
      %3283 = sbr.rel (0) target = $region73
    $region72: #{tpu_custom_call.1} parent=1 // pred_region
      %3285 = dma.done [#allocation4], 64
    $region73: #{tpu_custom_call.1} parent=1 // pred_fallthru
      _
    %3286 = vsyncpa [#allocation3], 1
    %3287 = vsyncpa [#allocation6], 1
    %3288 = vsyncpa [#allocation9], 1
    %3289 = vsyncpa [#allocation12], 1
    %3290 = vsyncpa [#allocation4], 1

</llo_original>
